<compile_context>
chip_gen: v6e
topology: v6e:2x2x1
jax: 0.10.0
libtpu: 0.0.40
codegen_flags: <defaults>
</compile_context>

<pallas_src>
import functools

import jax
import jax.numpy as jnp
from jax import lax
from jax.experimental import pallas as pl
from jax.experimental.pallas import tpu as pltpu


def _round_up(a, b):
    return ((a + b - 1) // b) * b


def _spline_conv_kernel(x_ref, src_ref, u_ref, dst_ref, wcat_ref, wroot_ref,
                        out_ref, acc_ref, *, c_out):
    n_idx = pl.program_id(0)            # node-tile index ("parallel")
    e_idx = pl.program_id(1)            # edge-tile index ("arbitrary", reduction)

    n_tile = acc_ref.shape[0]
    cout_pad = acc_ref.shape[1]
    hp = lax.Precision.HIGHEST

    @pl.when(e_idx == 0)
    def _init():
        acc_ref[...] = jnp.zeros_like(acc_ref)

    x = x_ref[...]                      # [N_pad, Cin]   f32 (resident, loaded once)
    src = src_ref[...]                  # [E_tile, 1]    i32
    u = u_ref[...]                      # [E_tile, 1]    f32
    dst = dst_ref[...]                  # [1, E_tile]    i32

    n_total = x.shape[0]
    e_tile = src.shape[0]

    # ---- Gather-first: xg[e, :] = x[src[e], :] via one-hot matmul (MXU). ----
    iota_en = lax.broadcasted_iota(jnp.int32, (e_tile, n_total), 1)    # [E_tile, N_pad]
    oh_src = (iota_en == src).astype(jnp.float32)
    xg = jnp.dot(oh_src, x, preferred_element_type=jnp.float32,
                 precision=hp)                                         # [E_tile, Cin]

    # ---- Spline weighting on the narrow [E_tile, Cin]; one fused K=2*Cin dot. ----
    xg2 = jnp.concatenate([(1.0 - u) * xg, u * xg], axis=1)           # [E_tile, 2*Cin]
    msg = jnp.dot(xg2, wcat_ref[...], preferred_element_type=jnp.float32,
                  precision=hp)                                        # [E_tile, Cout_pad]

    # Mean denominator rides through the scatter matmul: a per-edge 1.0 is
    # injected into padded lane `c_out` (wcat/wroot columns >= c_out are zero).
    lane = lax.broadcasted_iota(jnp.int32, (1, cout_pad), 1)
    ones_col = (lane == c_out).astype(jnp.float32)
    msg_ext = msg + ones_col

    # ---- Scatter-sum into this node tile (counts arrive in lane c_out). ----
    row_global = (lax.broadcasted_iota(jnp.int32, (n_tile, e_tile), 0)
                  + n_idx * n_tile)
    oh_dst = (row_global == dst).astype(jnp.float32)                   # [n_tile, E_tile]
    acc_ref[...] += jnp.dot(oh_dst, msg_ext,
                            preferred_element_type=jnp.float32, precision=hp)

    # ---- Finalize on the last edge tile: mean divide + root term + store. ----
    @pl.when(e_idx == pl.num_programs(1) - 1)
    def _finalize():
        agg = acc_ref[...]
        counts = jnp.maximum(agg[:, c_out:c_out + 1], 1.0)             # [n_tile, 1]
        inv = pl.reciprocal(counts, approx=True)                       # EUP slot
        inv = inv * (2.0 - counts * inv)                               # one Newton step
        start = pl.multiple_of(n_idx * n_tile, 8)
        x_tile = x_ref[pl.ds(start, n_tile), :]                        # [n_tile, Cin]
        yr = jnp.dot(x_tile, wroot_ref[...],
                     preferred_element_type=jnp.float32, precision=hp)
        out_ref[...] = (agg * inv + yr).astype(out_ref.dtype)


def prepare_spline_weights(w0, w1, wroot):
    """Pad/fuse weights once per weight set (hoisted out of the per-call path).

    NOTE: columns >= c_out MUST remain exactly zero — the scatter-mean
    denominator rides through padded output lane `c_out`.
    """
    c_in, c_out = w0.shape
    cout_pad = _round_up(c_out + 1, 128)        # +1 spare lane for the counts
    wcat = jnp.zeros((2 * c_in, cout_pad), jnp.float32)
    wcat = wcat.at[:c_in, :c_out].set(w0.astype(jnp.float32))
    wcat = wcat.at[c_in:, :c_out].set(w1.astype(jnp.float32))
    wroot_pad = jnp.zeros((c_in, cout_pad), jnp.float32)
    wroot_pad = wroot_pad.at[:, :c_out].set(wroot.astype(jnp.float32))
    return wcat, wroot_pad


@functools.partial(jax.jit, static_argnames=("c_out", "n_tile", "e_tile"))
def spline_conv(x, edge_index, edge_attr, wcat, wroot_pad, *, c_out,
                n_tile=256, e_tile=512):
    """x: [N, Cin] f32; edge_index: [2, E] i32; edge_attr: [E, 1] f32 in [0,1).

    wcat / wroot_pad come from prepare_spline_weights().
    Production sizing: keep e_tile >= 512 (amortize per-step overhead, fill MXU
    contraction depth) and re-derive tiles for v7x's 64 MiB VMEM.
    """
    N, c_in = x.shape
    E = edge_index.shape[1]
    cout_pad = wcat.shape[1]

    # Tile sizes: lane axis multiples of 128, sublane axis multiples of 8.
    e_tile = max(128, _round_up(min(e_tile, _round_up(E, 128)), 128))
    n_tile = max(8, _round_up(min(n_tile, _round_up(N, 8)), 8))
    E_pad = _round_up(E, e_tile)
    N_pad = _round_up(N, n_tile)
    n_blocks = N_pad // n_tile
    e_blocks = E_pad // e_tile

    src = edge_index[0].astype(jnp.int32)
    dst = edge_index[1].astype(jnp.int32)
    u = edge_attr.reshape(-1).astype(jnp.float32)

    # Padded edges scatter to out-of-range node N_pad -> contribute nothing.
    x_p = jnp.pad(x.astype(jnp.float32), ((0, N_pad - N), (0, 0)))
    src_p = jnp.pad(src, (0, E_pad - E)).reshape(E_pad, 1)
    dst_p = jnp.pad(dst, (0, E_pad - E), constant_values=N_pad).reshape(1, E_pad)
    u_p = jnp.pad(u, (0, E_pad - E)).reshape(E_pad, 1)

    grid_spec = pltpu.PrefetchScalarGridSpec(
        num_scalar_prefetch=0,
        grid=(n_blocks, e_blocks),
        in_specs=[
            pl.BlockSpec((N_pad, c_in), lambda n, e: (0, 0)),        # x (resident)
            pl.BlockSpec((e_tile, 1), lambda n, e: (e, 0)),          # src per edge tile
            pl.BlockSpec((e_tile, 1), lambda n, e: (e, 0)),          # u per edge tile
            pl.BlockSpec((1, e_tile), lambda n, e: (0, e)),          # dst per edge tile
            pl.BlockSpec((2 * c_in, cout_pad), lambda n, e: (0, 0)), # fused spline W
            pl.BlockSpec((c_in, cout_pad), lambda n, e: (0, 0)),     # root W
        ],
        out_specs=pl.BlockSpec((n_tile, cout_pad), lambda n, e: (n, 0)),
        scratch_shapes=[pltpu.VMEM((n_tile, cout_pad), jnp.float32)],
    )

    flops = 2 * (E_pad * N_pad * c_in                 # gather matmul
                 + E_pad * (2 * c_in) * cout_pad      # fused spline matmul
                 + N_pad * E_pad * cout_pad           # scatter matmul (incl. counts)
                 + N_pad * c_in * cout_pad)           # root matmul
    bytes_accessed = 4 * (N_pad * c_in + 3 * E_pad
                          + 3 * c_in * cout_pad + N_pad * cout_pad)

    out_padded = pl.pallas_call(
        functools.partial(_spline_conv_kernel, c_out=c_out),
        out_shape=jax.ShapeDtypeStruct((N_pad, cout_pad), jnp.float32),
        grid_spec=grid_spec,
        compiler_params=pltpu.CompilerParams(
            dimension_semantics=("parallel", "arbitrary"),
            vmem_limit_bytes=32 * 1024 * 1024),
        cost_estimate=pl.CostEstimate(
            flops=flops, transcendentals=0, bytes_accessed=bytes_accessed),
    )(x_p, src_p, u_p, dst_p, wcat, wroot_pad)

    return out_padded[:N, :c_out]


def spline_conv_ref(x, edge_index, edge_attr, w0, w1, wroot):
    """Pure-JAX reference matching PyG SplineConv(dim=1, kernel_size=2, bias=False)."""
    N = x.shape[0]
    c_out = w0.shape[1]
    hp = lax.Precision.HIGHEST
    src = edge_index[0]
    dst = edge_index[1]
    u = edge_attr.reshape(-1, 1).astype(jnp.float32)
    xs = x[src]
    msg = (1.0 - u) * jnp.dot(xs, w0, precision=hp) + u * jnp.dot(xs, w1, precision=hp)
    summ = jnp.zeros((N, c_out), jnp.float32).at[dst].add(msg)
    cnt = jnp.zeros((N,), jnp.float32).at[dst].add(1.0)
    mean = summ / jnp.maximum(cnt, 1.0)[:, None]
    return mean + jnp.dot(x, wroot, precision=hp)


if __name__ == "__main__":
    # Small, deterministic problem.
    N, E, C_IN, C_OUT = 64, 256, 16, 32

    key = jax.random.PRNGKey(0)
    kx, ks, kd, ku, kw, kr = jax.random.split(key, 6)

    x = jax.random.normal(kx, (N, C_IN), dtype=jnp.float32)
    src_idx = jax.random.randint(ks, (E,), 0, N, dtype=jnp.int32)
    dst_idx = jax.random.randint(kd, (E,), 0, N, dtype=jnp.int32)
    edge_index = jnp.stack([src_idx, dst_idx], axis=0)               # [2, E]
    edge_attr = jax.random.uniform(ku, (E, 1), dtype=jnp.float32)    # pseudo in [0,1)

    # Parameters (PyG shapes: weight [K=2, Cin, Cout], root [Cin, Cout]).
    weight = jax.random.uniform(kw, (2, C_IN, C_OUT), dtype=jnp.float32,
                                minval=-0.25, maxval=0.25)
    wroot = jax.random.uniform(kr, (C_IN, C_OUT), dtype=jnp.float32,
                               minval=-0.25, maxval=0.25)
    w0, w1 = weight[0], weight[1]

    # Weight padding is done once, outside the per-call path.
    wcat, wroot_pad = prepare_spline_weights(w0, w1, wroot)

    # Small tiles chosen to exercise both grid axes (grid = (2, 2)) at this
    # toy size; production should use n_tile>=256, e_tile>=512.
    out = spline_conv(x, edge_index, edge_attr, wcat, wroot_pad,
                      c_out=C_OUT, n_tile=32, e_tile=128)
    out = jax.block_until_ready(out)

    ref = spline_conv_ref(x, edge_index, edge_attr, w0, w1, wroot)
    assert out.shape == (N, C_OUT)
    assert jnp.allclose(out, ref, atol=1e-4, rtol=1e-4), "mismatch vs reference"

    print("KERNEL_OK")
</pallas_src>

<mosaic_0001>
module attributes {stable_mosaic.version = 11 : i64} {
  func.func @_spline_conv_kernel(%arg0: i32, %arg1: i32, %arg2: memref<64x16xf32, #tpu.memory_space<vmem>>, %arg3: memref<128x1xi32, #tpu.memory_space<vmem>>, %arg4: memref<128x1xf32, #tpu.memory_space<vmem>>, %arg5: memref<1x128xi32, #tpu.memory_space<vmem>>, %arg6: memref<32x128xf32, #tpu.memory_space<vmem>>, %arg7: memref<16x128xf32, #tpu.memory_space<vmem>>, %arg8: memref<32x128xf32, #tpu.memory_space<vmem>>, %arg9: memref<32x128xf32, #tpu.memory_space<vmem>>) attributes {dimension_semantics = [#tpu.dimension_semantics<parallel>, #tpu.dimension_semantics<arbitrary>], iteration_bounds = array<i64: 2, 2>, scalar_prefetch = 0 : i64, scratch_operands = 1 : i64, tpu.core_type = #tpu.core_type<tc>, window_params = [{pipeline_mode = #tpu.pipeline_mode<synchronous>, transform_indices = @transform_0, window_bounds = array<i64: 64, 16>}, {transform_indices = @transform_1, window_bounds = array<i64: 128, 1>}, {transform_indices = @transform_2, window_bounds = array<i64: 128, 1>}, {transform_indices = @transform_3, window_bounds = array<i64: 1, 128>}, {pipeline_mode = #tpu.pipeline_mode<synchronous>, transform_indices = @transform_4, window_bounds = array<i64: 32, 128>}, {pipeline_mode = #tpu.pipeline_mode<synchronous>, transform_indices = @transform_5, window_bounds = array<i64: 16, 128>}, {transform_indices = @transform_6, window_bounds = array<i64: 32, 128>}]} {
    %c0_i32 = arith.constant 0 : i32
    %0 = arith.cmpi eq, %arg1, %c0_i32 : i32
    %1 = arith.extui %0 : i1 to i32
    %c0_i32_0 = arith.constant 0 : i32
    %2 = arith.cmpi ne, %1, %c0_i32_0 : i32
    scf.if %2 {
      %cst_19 = arith.constant 0.000000e+00 : f32
      %44 = vector.broadcast %cst_19 : f32 to vector<32x128xf32>
      %c0_20 = arith.constant 0 : index
      %c0_21 = arith.constant 0 : index
      %45 = vector.load %arg9[%c0_20, %c0_21] : memref<32x128xf32, #tpu.memory_space<vmem>>, vector<32x128xf32>
      tpu.vector_store %arg9[%c0_20, %c0_21], %44 {strides = array<i32>} : memref<32x128xf32, #tpu.memory_space<vmem>>, vector<32x128xf32>,
    } else {
    }
    %c0 = arith.constant 0 : index
    %c0_1 = arith.constant 0 : index
    %3 = vector.load %arg2[%c0, %c0_1] : memref<64x16xf32, #tpu.memory_space<vmem>>, vector<64x16xf32>
    %c0_2 = arith.constant 0 : index
    %c0_3 = arith.constant 0 : index
    %4 = vector.load %arg3[%c0_2, %c0_3] : memref<128x1xi32, #tpu.memory_space<vmem>>, vector<128x1xi32>
    %c0_4 = arith.constant 0 : index
    %c0_5 = arith.constant 0 : index
    %5 = vector.load %arg4[%c0_4, %c0_5] : memref<128x1xf32, #tpu.memory_space<vmem>>, vector<128x1xf32>
    %c0_6 = arith.constant 0 : index
    %c0_7 = arith.constant 0 : index
    %6 = vector.load %arg5[%c0_6, %c0_7] : memref<1x128xi32, #tpu.memory_space<vmem>>, vector<1x128xi32>
    %7 = tpu.iota {dimensions = array<i32: 1>} : vector<128x64xi32>
    %8 = vector.broadcast %4 : vector<128x1xi32> to vector<128x64xi32>
    %9 = arith.cmpi eq, %7, %8 : vector<128x64xi32>
    %10 = arith.extui %9 : vector<128x64xi1> to vector<128x64xi32>
    %11 = arith.sitofp %10 : vector<128x64xi32> to vector<128x64xf32>
    %cst = arith.constant dense<0.000000e+00> : vector<128x16xf32>
    %12 = tpu.matmul %11, %3, %cst {dimension_numbers = #tpu.dot_dimension_numbers<[1], [0], [0], [1], [0, 0, 1, 1], [], []>, precision = #tpu.contract_precision<fp32>} : vector<128x64xf32>, vector<64x16xf32>, vector<128x16xf32> -> vector<128x16xf32>
    %cst_8 = arith.constant 1.000000e+00 : f32
    %13 = vector.broadcast %cst_8 : f32 to vector<128x1xf32>
    %14 = arith.subf %13, %5 : vector<128x1xf32>
    %15 = vector.broadcast %14 : vector<128x1xf32> to vector<128x16xf32>
    %16 = arith.mulf %15, %12 : vector<128x16xf32>
    %17 = vector.broadcast %5 : vector<128x1xf32> to vector<128x16xf32>
    %18 = arith.mulf %17, %12 : vector<128x16xf32>
    %19 = tpu.concatenate %16, %18 in 1 : vector<128x16xf32>, vector<128x16xf32> -> vector<128x32xf32>
    %c0_9 = arith.constant 0 : index
    %c0_10 = arith.constant 0 : index
    %20 = vector.load %arg6[%c0_9, %c0_10] : memref<32x128xf32, #tpu.memory_space<vmem>>, vector<32x128xf32>
    %cst_11 = arith.constant dense<0.000000e+00> : vector<128x128xf32>
    %21 = tpu.matmul %19, %20, %cst_11 {dimension_numbers = #tpu.dot_dimension_numbers<[1], [0], [0], [1], [0, 0, 1, 1], [], []>, precision = #tpu.contract_precision<fp32>} : vector<128x32xf32>, vector<32x128xf32>, vector<128x128xf32> -> vector<128x128xf32>
    %22 = tpu.iota {dimensions = array<i32: 1>} : vector<1x128xi32>
    %c32_i32 = arith.constant 32 : i32
    %23 = vector.broadcast %c32_i32 : i32 to vector<1x128xi32>
    %24 = arith.cmpi eq, %22, %23 : vector<1x128xi32>
    %25 = arith.extui %24 : vector<1x128xi1> to vector<1x128xi32>
    %26 = arith.sitofp %25 : vector<1x128xi32> to vector<1x128xf32>
    %27 = vector.broadcast %26 : vector<1x128xf32> to vector<128x128xf32>
    %28 = arith.addf %21, %27 : vector<128x128xf32>
    %29 = tpu.iota {dimensions = array<i32: 0>} : vector<32x128xi32>
    %c32_i32_12 = arith.constant 32 : i32
    %30 = arith.muli %arg0, %c32_i32_12 : i32
    %31 = vector.broadcast %30 : i32 to vector<32x128xi32>
    %32 = arith.addi %29, %31 : vector<32x128xi32>
    %33 = vector.broadcast %6 : vector<1x128xi32> to vector<32x128xi32>
    %34 = arith.cmpi eq, %32, %33 : vector<32x128xi32>
    %35 = arith.extui %34 : vector<32x128xi1> to vector<32x128xi32>
    %36 = arith.sitofp %35 : vector<32x128xi32> to vector<32x128xf32>
    %c0_13 = arith.constant 0 : index
    %c0_14 = arith.constant 0 : index
    %37 = vector.load %arg9[%c0_13, %c0_14] : memref<32x128xf32, #tpu.memory_space<vmem>>, vector<32x128xf32>
    %cst_15 = arith.constant dense<0.000000e+00> : vector<32x128xf32>
    %38 = tpu.matmul %36, %28, %cst_15 {dimension_numbers = #tpu.dot_dimension_numbers<[1], [0], [0], [1], [0, 0, 1, 1], [], []>, precision = #tpu.contract_precision<fp32>} : vector<32x128xf32>, vector<128x128xf32>, vector<32x128xf32> -> vector<32x128xf32>
    %39 = arith.addf %37, %38 : vector<32x128xf32>
    %c0_16 = arith.constant 0 : index
    %c0_17 = arith.constant 0 : index
    %40 = vector.load %arg9[%c0_16, %c0_17] : memref<32x128xf32, #tpu.memory_space<vmem>>, vector<32x128xf32>
    tpu.vector_store %arg9[%c0_16, %c0_17], %39 {strides = array<i32>} : memref<32x128xf32, #tpu.memory_space<vmem>>, vector<32x128xf32>,
    %c1_i32 = arith.constant 1 : i32
    %41 = arith.cmpi eq, %arg1, %c1_i32 : i32
    %42 = arith.extui %41 : i1 to i32
    %c0_i32_18 = arith.constant 0 : i32
    %43 = arith.cmpi ne, %42, %c0_i32_18 : i32
    scf.if %43 {
      %c0_19 = arith.constant 0 : index
      %c0_20 = arith.constant 0 : index
      %44 = vector.load %arg9[%c0_19, %c0_20] : memref<32x128xf32, #tpu.memory_space<vmem>>, vector<32x128xf32>
      %45 = vector.extract_strided_slice %44 {offsets = [0, 32], sizes = [32, 1], strides = [1, 1]} : vector<32x128xf32> to vector<32x1xf32>
      %cst_21 = arith.constant 1.000000e+00 : f32
      %46 = vector.broadcast %cst_21 : f32 to vector<32x1xf32>
      %47 = arith.maximumf %45, %46 : vector<32x1xf32>
      %48 = tpu.reciprocal %47 {approx = true} : vector<32x1xf32> -> vector<32x1xf32>
      %49 = arith.mulf %47, %48 : vector<32x1xf32>
      %cst_22 = arith.constant 2.000000e+00 : f32
      %50 = vector.broadcast %cst_22 : f32 to vector<32x1xf32>
      %51 = arith.subf %50, %49 : vector<32x1xf32>
      %52 = arith.mulf %48, %51 : vector<32x1xf32>
      %c32_i32_23 = arith.constant 32 : i32
      %53 = arith.muli %arg0, %c32_i32_23 : i32
      %54 = tpu.assume_multiple %53, 8 : i32
      %55 = arith.index_cast %54 : i32 to index
      %c0_24 = arith.constant 0 : index
      %56 = vector.load %arg2[%55, %c0_24] : memref<64x16xf32, #tpu.memory_space<vmem>>, vector<32x16xf32>
      %c0_25 = arith.constant 0 : index
      %c0_26 = arith.constant 0 : index
      %57 = vector.load %arg7[%c0_25, %c0_26] : memref<16x128xf32, #tpu.memory_space<vmem>>, vector<16x128xf32>
      %cst_27 = arith.constant dense<0.000000e+00> : vector<32x128xf32>
      %58 = tpu.matmul %56, %57, %cst_27 {dimension_numbers = #tpu.dot_dimension_numbers<[1], [0], [0], [1], [0, 0, 1, 1], [], []>, precision = #tpu.contract_precision<fp32>} : vector<32x16xf32>, vector<16x128xf32>, vector<32x128xf32> -> vector<32x128xf32>
      %59 = vector.broadcast %52 : vector<32x1xf32> to vector<32x128xf32>
      %60 = arith.mulf %44, %59 : vector<32x128xf32>
      %61 = arith.addf %60, %58 : vector<32x128xf32>
      %c0_28 = arith.constant 0 : index
      %c0_29 = arith.constant 0 : index
      %62 = vector.load %arg8[%c0_28, %c0_29] : memref<32x128xf32, #tpu.memory_space<vmem>>, vector<32x128xf32>
      tpu.vector_store %arg8[%c0_28, %c0_29], %61 {strides = array<i32>} : memref<32x128xf32, #tpu.memory_space<vmem>>, vector<32x128xf32>,
    } else {
    }
    return
  }
  func.func @transform_0(%arg0: i32, %arg1: i32) -> (i32, i32) {
    %c0_i32 = arith.constant 0 : i32
    %c0_i32_0 = arith.constant 0 : i32
    %c0_i32_1 = arith.constant 0 : i32
    return %c0_i32, %c0_i32_0 : i32, i32
  }
  func.func @transform_1(%arg0: i32, %arg1: i32) -> (i32, i32) {
    %c0_i32 = arith.constant 0 : i32
    %c0_i32_0 = arith.constant 0 : i32
    return %arg1, %c0_i32 : i32, i32
  }
  func.func @transform_2(%arg0: i32, %arg1: i32) -> (i32, i32) {
    %c0_i32 = arith.constant 0 : i32
    %c0_i32_0 = arith.constant 0 : i32
    return %arg1, %c0_i32 : i32, i32
  }
  func.func @transform_3(%arg0: i32, %arg1: i32) -> (i32, i32) {
    %c0_i32 = arith.constant 0 : i32
    %c0_i32_0 = arith.constant 0 : i32
    return %c0_i32, %arg1 : i32, i32
  }
  func.func @transform_4(%arg0: i32, %arg1: i32) -> (i32, i32) {
    %c0_i32 = arith.constant 0 : i32
    %c0_i32_0 = arith.constant 0 : i32
    %c0_i32_1 = arith.constant 0 : i32
    return %c0_i32, %c0_i32_0 : i32, i32
  }
  func.func @transform_5(%arg0: i32, %arg1: i32) -> (i32, i32) {
    %c0_i32 = arith.constant 0 : i32
    %c0_i32_0 = arith.constant 0 : i32
    %c0_i32_1 = arith.constant 0 : i32
    return %c0_i32, %c0_i32_0 : i32, i32
  }
  func.func @transform_6(%arg0: i32, %arg1: i32) -> (i32, i32) {
    %c0_i32 = arith.constant 0 : i32
    %c0_i32_0 = arith.constant 0 : i32
    return %arg0, %c0_i32 : i32, i32
  }
}

</mosaic_0001>

<llo_original>
// kernel: spline_conv.1
$region0: #{spline_conv.1}
  #allocation0 [shape = 'u32[]', space=smem, size = 0x4, offset = 0x4, fixed_abs, tag = 'smem constant byte address 0x4 - core index']
  #allocation1 [shape = 'u32[144,128]{1,0:T(1,128)}', space=vmem, size = 0x12000, scoped, tag = 'internal scratch']
  #allocation2 [shape = 'f32[32,128]{1,0:T(8,128)}', space=vmem, size = 0x4000, scoped, tag = 'scratch operand']
  %s0 = inlined_call_operand.vmem [shape: f32[64,16], index: 0, kind: input, shape index: {}]
  %s1 = inlined_call_operand.vmem [shape: s32[256,1], index: 1, kind: input, shape index: {}]
  %s2 = inlined_call_operand.vmem [shape: f32[256,1], index: 2, kind: input, shape index: {}]
  %s3 = inlined_call_operand.vmem [shape: s32[1,256], index: 3, kind: input, shape index: {}]
  %s4 = inlined_call_operand.vmem [shape: f32[32,128], index: 4, kind: input, shape index: {}]
  %s5 = inlined_call_operand.vmem [shape: f32[16,128], index: 5, kind: input, shape index: {}]
  %s6 = inlined_call_operand.vmem [shape: f32[64,128], index: 6, kind: output, shape index: {}]
  %s7 = sld [smem:[#allocation0]]
  $region65: #{spline_conv.1} parent=0
    _
  %s9 = ssub.s32 1, %s7
  %s10 = scalar_select 0, %s9, %s7
  loop: start=0, step=1, limit=6
  $region2: #{spline_conv.1} parent=0 // loop_pre_header
    _
  $region3: #{spline_conv.1} parent=0 // loop_header
    %s12 = sphi 0, %s16
    %p13 = scmp.ge.s32.totalorder %s12, 6
    %s19 = sphi 0, %s31
    %s20 = sphi 0, %s27
    %s21 = sphi 0, %s19
    %s22 = sphi 0, %s20
    %s23 = sphi 0, %s21
    %s24 = sphi 0, %s22
    %s32 = sphi 0, %s32
    %s34 = sphi 0, %s32
    %s35 = sphi 0, %s34
    %s49 = sphi 0, %s35
    %s55 = sphi 0, %s57
    %s58 = sphi 0, %s55
    %s59 = sphi 0, %s58
    %s75 = sphi 0, %s59
    %s81 = sphi 0, %s83
    %s84 = sphi 0, %s81
    %s85 = sphi 0, %s84
    %s101 = sphi 0, %s85
    %s107 = sphi 0, %s109
    %s110 = sphi 0, %s107
    %s111 = sphi 0, %s110
    %s127 = sphi 0, %s111
    %s131 = sphi 0, %s131
    %s133 = sphi 0, %s131
    %s134 = sphi 0, %s133
    %s148 = sphi 0, %s134
    %s152 = sphi 0, %s152
    %s154 = sphi 0, %s152
    %s155 = sphi 0, %s154
    %s169 = sphi 0, %s155
    %s175 = sphi 0, %s177
    %s178 = sphi 0, %s175
    %s179 = sphi 0, %s178
    %s195 = sphi 0, %s179
  $region4: #{spline_conv.1} parent=0 // loop_header_branch
    %15 = sbr.rel (%p13) target = $region8
  $region5: #{spline_conv.1} parent=0 // loop_body
    %s17 = ssub.s32 %s12, 1
    %s18 = ssub.s32 %s12, 2
    %s25 = sadd.s32 1, %s20
    %p26 = scmp.ge.s32.totalorder %s25, 2
    %s27 = scalar_select %p26, 0, %s25
    %s28 = sadd.s32 1, %s19
    %s29 = scalar_select %p26, %s28, %s19
    %p30 = scmp.ge.s32.totalorder %s29, 2
    %s31 = scalar_select %p30, 0, %s29
    %s33 = sadd.s32 %s32, 1
    %p36 = scmp.eq.s32.totalorder %s12, 3
    %p37 = scmp.ne.s32.totalorder %s32, %s34
    %p38 = scmp.eq.s32.totalorder %s12, 0
    %p39 = por %p37, %p38
    %p40 = scmp.ne.s32.totalorder %s32, %s34
    %p41 = scmp.eq.s32.totalorder %s17, 3
    %p42 = por %p40, %p41
    %p43 = scmp.ne.s32.totalorder %s34, %s35
    %p44 = scmp.eq.s32.totalorder %s17, 0
    %p45 = por %p43, %p44
    %p46 = scmp.ne.s32.totalorder %s34, %s35
    %p47 = scmp.eq.s32.totalorder %s18, 3
    %p48 = por %p46, %p47
    %p50 = scmp.ne.s32.totalorder %s35, %s49
    %p51 = scmp.eq.s32.totalorder %s18, 0
    %p52 = por %p50, %p51
    %s53 = ssub.s32 %s20, %s27
    %p54 = scmp.eq.s32.totalorder %s53, 0
    %s56 = sadd.s32 %s55, 1
    %s57 = scalar_select %p54, %s55, %s56
    %p60 = pneg %p54
    %p61 = scmp.eq.s32.totalorder %s12, 3
    %p62 = por %p60, %p61
    %p63 = scmp.ne.s32.totalorder %s55, %s58
    %p64 = scmp.eq.s32.totalorder %s12, 0
    %p65 = por %p63, %p64
    %p66 = scmp.ne.s32.totalorder %s55, %s58
    %p67 = scmp.eq.s32.totalorder %s17, 3
    %p68 = por %p66, %p67
    %p69 = scmp.ne.s32.totalorder %s58, %s59
    %p70 = scmp.eq.s32.totalorder %s17, 0
    %p71 = por %p69, %p70
    %p72 = scmp.ne.s32.totalorder %s58, %s59
    %p73 = scmp.eq.s32.totalorder %s18, 3
    %p74 = por %p72, %p73
    %p76 = scmp.ne.s32.totalorder %s59, %s75
    %p77 = scmp.eq.s32.totalorder %s18, 0
    %p78 = por %p76, %p77
    %s79 = ssub.s32 %s20, %s27
    %p80 = scmp.eq.s32.totalorder %s79, 0
    %s82 = sadd.s32 %s81, 1
    %s83 = scalar_select %p80, %s81, %s82
    %p86 = pneg %p80
    %p87 = scmp.eq.s32.totalorder %s12, 3
    %p88 = por %p86, %p87
    %p89 = scmp.ne.s32.totalorder %s81, %s84
    %p90 = scmp.eq.s32.totalorder %s12, 0
    %p91 = por %p89, %p90
    %p92 = scmp.ne.s32.totalorder %s81, %s84
    %p93 = scmp.eq.s32.totalorder %s17, 3
    %p94 = por %p92, %p93
    %p95 = scmp.ne.s32.totalorder %s84, %s85
    %p96 = scmp.eq.s32.totalorder %s17, 0
    %p97 = por %p95, %p96
    %p98 = scmp.ne.s32.totalorder %s84, %s85
    %p99 = scmp.eq.s32.totalorder %s18, 3
    %p100 = por %p98, %p99
    %p102 = scmp.ne.s32.totalorder %s85, %s101
    %p103 = scmp.eq.s32.totalorder %s18, 0
    %p104 = por %p102, %p103
    %s105 = ssub.s32 %s20, %s27
    %p106 = scmp.eq.s32.totalorder %s105, 0
    %s108 = sadd.s32 %s107, 1
    %s109 = scalar_select %p106, %s107, %s108
    %p112 = pneg %p106
    %p113 = scmp.eq.s32.totalorder %s12, 3
    %p114 = por %p112, %p113
    %p115 = scmp.ne.s32.totalorder %s107, %s110
    %p116 = scmp.eq.s32.totalorder %s12, 0
    %p117 = por %p115, %p116
    %p118 = scmp.ne.s32.totalorder %s107, %s110
    %p119 = scmp.eq.s32.totalorder %s17, 3
    %p120 = por %p118, %p119
    %p121 = scmp.ne.s32.totalorder %s110, %s111
    %p122 = scmp.eq.s32.totalorder %s17, 0
    %p123 = por %p121, %p122
    %p124 = scmp.ne.s32.totalorder %s110, %s111
    %p125 = scmp.eq.s32.totalorder %s18, 3
    %p126 = por %p124, %p125
    %p128 = scmp.ne.s32.totalorder %s111, %s127
    %p129 = scmp.eq.s32.totalorder %s18, 0
    %p130 = por %p128, %p129
    %s132 = sadd.s32 %s131, 1
    %p135 = scmp.eq.s32.totalorder %s12, 3
    %p136 = scmp.ne.s32.totalorder %s131, %s133
    %p137 = scmp.eq.s32.totalorder %s12, 0
    %p138 = por %p136, %p137
    %p139 = scmp.ne.s32.totalorder %s131, %s133
    %p140 = scmp.eq.s32.totalorder %s17, 3
    %p141 = por %p139, %p140
    %p142 = scmp.ne.s32.totalorder %s133, %s134
    %p143 = scmp.eq.s32.totalorder %s17, 0
    %p144 = por %p142, %p143
    %p145 = scmp.ne.s32.totalorder %s133, %s134
    %p146 = scmp.eq.s32.totalorder %s18, 3
    %p147 = por %p145, %p146
    %p149 = scmp.ne.s32.totalorder %s134, %s148
    %p150 = scmp.eq.s32.totalorder %s18, 0
    %p151 = por %p149, %p150
    %s153 = sadd.s32 %s152, 1
    %p156 = scmp.eq.s32.totalorder %s12, 3
    %p157 = scmp.ne.s32.totalorder %s152, %s154
    %p158 = scmp.eq.s32.totalorder %s12, 0
    %p159 = por %p157, %p158
    %p160 = scmp.ne.s32.totalorder %s152, %s154
    %p161 = scmp.eq.s32.totalorder %s17, 3
    %p162 = por %p160, %p161
    %p163 = scmp.ne.s32.totalorder %s154, %s155
    %p164 = scmp.eq.s32.totalorder %s17, 0
    %p165 = por %p163, %p164
    %p166 = scmp.ne.s32.totalorder %s154, %s155
    %p167 = scmp.eq.s32.totalorder %s18, 3
    %p168 = por %p166, %p167
    %p170 = scmp.ne.s32.totalorder %s155, %s169
    %p171 = scmp.eq.s32.totalorder %s18, 0
    %p172 = por %p170, %p171
    %s173 = ssub.s32 %s19, %s31
    %p174 = scmp.eq.s32.totalorder %s173, 0
    %s176 = sadd.s32 %s175, 1
    %s177 = scalar_select %p174, %s175, %s176
    %p180 = pneg %p174
    %p181 = scmp.eq.s32.totalorder %s12, 3
    %p182 = por %p180, %p181
    %p183 = scmp.ne.s32.totalorder %s175, %s178
    %p184 = scmp.eq.s32.totalorder %s12, 0
    %p185 = por %p183, %p184
    %p186 = scmp.ne.s32.totalorder %s175, %s178
    %p187 = scmp.eq.s32.totalorder %s17, 3
    %p188 = por %p186, %p187
    %p189 = scmp.ne.s32.totalorder %s178, %s179
    %p190 = scmp.eq.s32.totalorder %s17, 0
    %p191 = por %p189, %p190
    %p192 = scmp.ne.s32.totalorder %s178, %s179
    %p193 = scmp.eq.s32.totalorder %s18, 3
    %p194 = por %p192, %p193
    %p196 = scmp.ne.s32.totalorder %s179, %s195
    %p197 = scmp.eq.s32.totalorder %s18, 0
    %p198 = por %p196, %p197
    %p199 = scmp.le.s32.totalorder 1, %s12
    %p200 = scmp.lt.s32.totalorder %s12, 5
    %p201 = pnand %p199, %p200
    %p202 = pneg %p201
    // Predicated region
    $region9: #{spline_conv.1} parent=5 // pred_check
      _
    $region10: #{spline_conv.1} parent=5 // pred_check_branch
      %204 = sbr.rel (%p201) target = $region12
    $region11: #{spline_conv.1} parent=5 // pred_region
      %s205 = ssub.s32 %s12, 1
      // Predicated region
      $region13: #{spline_conv.1} parent=11 // pred_check
        %p206 = pneg %p45
      $region14: #{spline_conv.1} parent=11 // pred_check_branch
        %208 = sbr.rel (%p206) target = $region16
      $region15: #{spline_conv.1} parent=11 // pred_region
        _
      $region16: #{spline_conv.1} parent=11 // pred_fallthru
        _
      // Predicated region
      $region17: #{spline_conv.1} parent=11 // pred_check
        %p209 = pneg %p144
      $region18: #{spline_conv.1} parent=11 // pred_check_branch
        %211 = sbr.rel (%p209) target = $region20
      $region19: #{spline_conv.1} parent=11 // pred_region
        _
      $region20: #{spline_conv.1} parent=11 // pred_fallthru
        _
      // Predicated region
      $region21: #{spline_conv.1} parent=11 // pred_check
        %p212 = pneg %p165
      $region22: #{spline_conv.1} parent=11 // pred_check_branch
        %214 = sbr.rel (%p212) target = $region24
      $region23: #{spline_conv.1} parent=11 // pred_region
        _
      $region24: #{spline_conv.1} parent=11 // pred_fallthru
        _
    $region12: #{spline_conv.1} parent=5 // pred_fallthru
      _
    %p215 = scmp.lt.s32.totalorder %s12, 4
    // Predicated region
    $region25: #{spline_conv.1} parent=5 // pred_check
      %p216 = pneg %p215
    $region26: #{spline_conv.1} parent=5 // pred_check_branch
      %218 = sbr.rel (%p216) target = $region28
    $region27: #{spline_conv.1} parent=5 // pred_region
      // Predicated region
      $region29: #{spline_conv.1} parent=27 // pred_check
        %p219 = pneg %p65
      $region30: #{spline_conv.1} parent=27 // pred_check_branch
        %221 = sbr.rel (%p219) target = $region32
      $region31: #{spline_conv.1} parent=27 // pred_region
        %s222 = smul.u32 16, %s20
        %p223 = scmp.lt.s32.totalorder %s222, 31
        %s224 = scalar_select %p223, %s222, 31
        %s225 = smul.addr %s224, 8
        %s226 = scalar_lea.vmem %s1, %s225
        %s227 = smul.u32 16, %s20
      $region32: #{spline_conv.1} parent=27 // pred_fallthru
        _
      // Predicated region
      $region33: #{spline_conv.1} parent=27 // pred_check
        %p228 = pneg %p91
      $region34: #{spline_conv.1} parent=27 // pred_check_branch
        %230 = sbr.rel (%p228) target = $region36
      $region35: #{spline_conv.1} parent=27 // pred_region
        %s231 = smul.u32 16, %s20
        %p232 = scmp.lt.s32.totalorder %s231, 31
        %s233 = scalar_select %p232, %s231, 31
        %s234 = smul.addr %s233, 8
        %s235 = scalar_lea.vmem %s2, %s234
        %s236 = smul.u32 16, %s20
      $region36: #{spline_conv.1} parent=27 // pred_fallthru
        _
      // Predicated region
      $region37: #{spline_conv.1} parent=27 // pred_check
        %p237 = pneg %p117
      $region38: #{spline_conv.1} parent=27 // pred_check_branch
        %239 = sbr.rel (%p237) target = $region40
      $region39: #{spline_conv.1} parent=27 // pred_region
        %p240 = scmp.lt.s32.totalorder %s20, 1
        %s241 = scalar_select %p240, %s20, 1
        %s242 = scalar_lea.vmem %s3, %s241
      $region40: #{spline_conv.1} parent=27 // pred_fallthru
        _
    $region28: #{spline_conv.1} parent=5 // pred_fallthru
      _
    %p243 = scmp.le.s32.totalorder 1, %s12
    %p244 = scmp.lt.s32.totalorder %s12, 5
    %p245 = pnand %p243, %p244
    %p246 = pneg %p245
    // Predicated region
    $region41: #{spline_conv.1} parent=5 // pred_check
      _
    $region42: #{spline_conv.1} parent=5 // pred_check_branch
      %248 = sbr.rel (%p245) target = $region44
    $region43: #{spline_conv.1} parent=5 // pred_region
      %s249 = ssub.s32 %s12, 1
      %p250 = pneg %p45
      %p251 = pneg %p42
      %s252 = smul.u32 16, %s22
      %p253 = scmp.lt.s32.totalorder %s252, 31
      %s254 = scalar_select %p253, %s252, 31
      %s255 = smul.addr %s254, 8
      %s256 = scalar_lea.vmem %s1, %s255
      %p257 = pneg %p71
      %p258 = pneg %p68
      %s259 = smul.u32 16, %s22
      %p260 = scmp.lt.s32.totalorder %s259, 31
      %s261 = scalar_select %p260, %s259, 31
      %s262 = smul.addr %s261, 8
      %s263 = scalar_lea.vmem %s2, %s262
      %p264 = pneg %p97
      %p265 = pneg %p94
      %p266 = scmp.lt.s32.totalorder %s22, 1
      %s267 = scalar_select %p266, %s22, 1
      %s268 = scalar_lea.vmem %s3, %s267
      %p269 = pneg %p123
      %p270 = pneg %p120
      %p271 = pneg %p144
      %p272 = pneg %p141
      %p273 = pneg %p165
      %p274 = pneg %p162
      %p275 = pneg %p191
      %p276 = pneg %p188
      %s277 = smul.u32 4, %s21
      %p278 = scmp.lt.s32.totalorder %s277, 7
      %s279 = scalar_select %p278, %s277, 7
      %s280 = smul.addr %s279, 8
      %s281 = scalar_lea.vmem %s6, %s280
      %s282 = smul.u32 16, %s22
      %p283 = scmp.lt.s32.totalorder %s282, 31
      %s284 = scalar_select %p283, %s282, 31
      %s285 = smul.addr %s284, 8
      %s286 = scalar_lea.vmem %s1, %s285
      %s287 = smul.u32 16, %s22
      %s288 = smul.u32 16, %s22
      %p289 = scmp.lt.s32.totalorder %s288, 31
      %s290 = scalar_select %p289, %s288, 31
      %s291 = smul.addr %s290, 8
      %s292 = scalar_lea.vmem %s2, %s291
      %s293 = smul.u32 16, %s22
      %p294 = scmp.lt.s32.totalorder %s22, 1
      %s295 = scalar_select %p294, %s22, 1
      %s296 = scalar_lea.vmem %s3, %s295
      %s297 = smul.u32 4, %s21
      %p298 = scmp.lt.s32.totalorder %s297, 7
      %s299 = scalar_select %p298, %s297, 7
      %s300 = smul.addr %s299, 8
      %s301 = scalar_lea.vmem %s6, %s300
      %s302 = smul.u32 4, %s21
      %p303 = scmp.eq.s32.totalorder %s22, 0
      // Predicated region
      $region45: #{spline_conv.1} parent=43 // pred_check
        %p304 = pneg %p303
      $region46: #{spline_conv.1} parent=43 // pred_check_branch
        %306 = sbr.rel (%p304) target = $region48
      $region47: #{spline_conv.1} parent=43 // pred_region
        %307 = vst [vmem:[#allocation2] sm:$0xff] 0.0
        %308 = vst [vmem:[#allocation2 + $0x8] sm:$0xff] 0.0
        %309 = vst [vmem:[#allocation2 + $0x10] sm:$0xff] 0.0
        %310 = vst [vmem:[#allocation2 + $0x18] sm:$0xff] 0.0
      $region48: #{spline_conv.1} parent=43 // pred_fallthru
        _
      %v311 = vld [vmem:[%s0] sm:$0xff]
      %v312 = vld [vmem:[%s0 + $0x8] sm:$0xff]
      %v313 = vld [vmem:[%s0 + $0x10] sm:$0xff]
      %v314 = vld [vmem:[%s0 + $0x18] sm:$0xff]
      %v315 = vld [vmem:[%s0 + $0x20] sm:$0xff]
      %v316 = vld [vmem:[%s0 + $0x28] sm:$0xff]
      %v317 = vld [vmem:[%s0 + $0x30] sm:$0xff]
      %v318 = vld [vmem:[%s0 + $0x38] sm:$0xff]
      %v319 = vld [vmem:[%s286] sm:$0xff]
      %v320 = vld [vmem:[%s286 + $0x8] sm:$0xff]
      %v321 = vld [vmem:[%s286 + $0x10] sm:$0xff]
      %v322 = vld [vmem:[%s286 + $0x18] sm:$0xff]
      %v323 = vld [vmem:[%s286 + $0x20] sm:$0xff]
      %v324 = vld [vmem:[%s286 + $0x28] sm:$0xff]
      %v325 = vld [vmem:[%s286 + $0x30] sm:$0xff]
      %v326 = vld [vmem:[%s286 + $0x38] sm:$0xff]
      %v327 = vld [vmem:[%s286 + $0x40] sm:$0xff]
      %v328 = vld [vmem:[%s286 + $0x48] sm:$0xff]
      %v329 = vld [vmem:[%s286 + $0x50] sm:$0xff]
      %v330 = vld [vmem:[%s286 + $0x58] sm:$0xff]
      %v331 = vld [vmem:[%s286 + $0x60] sm:$0xff]
      %v332 = vld [vmem:[%s286 + $0x68] sm:$0xff]
      %v333 = vld [vmem:[%s286 + $0x70] sm:$0xff]
      %v334 = vld [vmem:[%s286 + $0x78] sm:$0xff]
      %v335 = vld [vmem:[%s292] sm:$0xff]
      %v336 = vld [vmem:[%s292 + $0x8] sm:$0xff]
      %v337 = vld [vmem:[%s292 + $0x10] sm:$0xff]
      %v338 = vld [vmem:[%s292 + $0x18] sm:$0xff]
      %v339 = vld [vmem:[%s292 + $0x20] sm:$0xff]
      %v340 = vld [vmem:[%s292 + $0x28] sm:$0xff]
      %v341 = vld [vmem:[%s292 + $0x30] sm:$0xff]
      %v342 = vld [vmem:[%s292 + $0x38] sm:$0xff]
      %v343 = vld [vmem:[%s292 + $0x40] sm:$0xff]
      %v344 = vld [vmem:[%s292 + $0x48] sm:$0xff]
      %v345 = vld [vmem:[%s292 + $0x50] sm:$0xff]
      %v346 = vld [vmem:[%s292 + $0x58] sm:$0xff]
      %v347 = vld [vmem:[%s292 + $0x60] sm:$0xff]
      %v348 = vld [vmem:[%s292 + $0x68] sm:$0xff]
      %v349 = vld [vmem:[%s292 + $0x70] sm:$0xff]
      %v350 = vld [vmem:[%s292 + $0x78] sm:$0xff]
      %v351 = vld [vmem:[%s296] sm:$0x1]
      %v352 = vlaneseq
      %v353 = vand.u32 %v352, 127
      %354 = vset.pattern.permute.xlu0 0
      %355 = vperm.xlu0 %354, %v319
      %v356 = vpop.permute.xlu0 %355
      %357 = vset.pattern.permute.xlu0 0
      %358 = vperm.xlu0 %357, %v320
      %v359 = vpop.permute.xlu0 %358
      %360 = vset.pattern.permute.xlu0 0
      %361 = vperm.xlu0 %360, %v321
      %v362 = vpop.permute.xlu0 %361
      %363 = vset.pattern.permute.xlu0 0
      %364 = vperm.xlu0 %363, %v322
      %v365 = vpop.permute.xlu0 %364
      %366 = vset.pattern.permute.xlu0 0
      %367 = vperm.xlu0 %366, %v323
      %v368 = vpop.permute.xlu0 %367
      %369 = vset.pattern.permute.xlu0 0
      %370 = vperm.xlu0 %369, %v324
      %v371 = vpop.permute.xlu0 %370
      %372 = vset.pattern.permute.xlu0 0
      %373 = vperm.xlu0 %372, %v325
      %v374 = vpop.permute.xlu0 %373
      %375 = vset.pattern.permute.xlu0 0
      %376 = vperm.xlu0 %375, %v326
      %v377 = vpop.permute.xlu0 %376
      %378 = vset.pattern.permute.xlu0 0
      %379 = vperm.xlu0 %378, %v327
      %v380 = vpop.permute.xlu0 %379
      %381 = vset.pattern.permute.xlu0 0
      %382 = vperm.xlu0 %381, %v328
      %v383 = vpop.permute.xlu0 %382
      %384 = vset.pattern.permute.xlu0 0
      %385 = vperm.xlu0 %384, %v329
      %v386 = vpop.permute.xlu0 %385
      %387 = vset.pattern.permute.xlu0 0
      %388 = vperm.xlu0 %387, %v330
      %v389 = vpop.permute.xlu0 %388
      %390 = vset.pattern.permute.xlu0 0
      %391 = vperm.xlu0 %390, %v331
      %v392 = vpop.permute.xlu0 %391
      %393 = vset.pattern.permute.xlu0 0
      %394 = vperm.xlu0 %393, %v332
      %v395 = vpop.permute.xlu0 %394
      %396 = vset.pattern.permute.xlu0 0
      %397 = vperm.xlu0 %396, %v333
      %v398 = vpop.permute.xlu0 %397
      %399 = vset.pattern.permute.xlu0 0
      %400 = vperm.xlu0 %399, %v334
      %v401 = vpop.permute.xlu0 %400
      %vm402 = vcmp.eq.s32.totalorder %v353, %v356
      %vm403 = vcmp.eq.s32.totalorder %v353, %v359
      %vm404 = vcmp.eq.s32.totalorder %v353, %v362
      %vm405 = vcmp.eq.s32.totalorder %v353, %v365
      %vm406 = vcmp.eq.s32.totalorder %v353, %v368
      %vm407 = vcmp.eq.s32.totalorder %v353, %v371
      %vm408 = vcmp.eq.s32.totalorder %v353, %v374
      %vm409 = vcmp.eq.s32.totalorder %v353, %v377
      %vm410 = vcmp.eq.s32.totalorder %v353, %v380
      %vm411 = vcmp.eq.s32.totalorder %v353, %v383
      %vm412 = vcmp.eq.s32.totalorder %v353, %v386
      %vm413 = vcmp.eq.s32.totalorder %v353, %v389
      %vm414 = vcmp.eq.s32.totalorder %v353, %v392
      %vm415 = vcmp.eq.s32.totalorder %v353, %v395
      %vm416 = vcmp.eq.s32.totalorder %v353, %v398
      %vm417 = vcmp.eq.s32.totalorder %v353, %v401
      %v418 = vsel %vm402, 1, 0
      %v419 = vsel %vm403, 1, 0
      %v420 = vsel %vm404, 1, 0
      %v421 = vsel %vm405, 1, 0
      %v422 = vsel %vm406, 1, 0
      %v423 = vsel %vm407, 1, 0
      %v424 = vsel %vm408, 1, 0
      %v425 = vsel %vm409, 1, 0
      %v426 = vsel %vm410, 1, 0
      %v427 = vsel %vm411, 1, 0
      %v428 = vsel %vm412, 1, 0
      %v429 = vsel %vm413, 1, 0
      %v430 = vsel %vm414, 1, 0
      %v431 = vsel %vm415, 1, 0
      %v432 = vsel %vm416, 1, 0
      %v433 = vsel %vm417, 1, 0
      %v434 = vcvt.s32.f32 %v418
      %v435 = vcvt.s32.f32 %v419
      %v436 = vcvt.s32.f32 %v420
      %v437 = vcvt.s32.f32 %v421
      %v438 = vcvt.s32.f32 %v422
      %v439 = vcvt.s32.f32 %v423
      %v440 = vcvt.s32.f32 %v424
      %v441 = vcvt.s32.f32 %v425
      %v442 = vcvt.s32.f32 %v426
      %v443 = vcvt.s32.f32 %v427
      %v444 = vcvt.s32.f32 %v428
      %v445 = vcvt.s32.f32 %v429
      %v446 = vcvt.s32.f32 %v430
      %v447 = vcvt.s32.f32 %v431
      %v448 = vcvt.s32.f32 %v432
      %v449 = vcvt.s32.f32 %v433
      %vm450 = vcmask 523264
      %v452 = vsel %vm450, %v434, 0
      %v455 = vsel %vm450, %v435, 0
      %v458 = vsel %vm450, %v436, 0
      %v461 = vsel %vm450, %v437, 0
      %v464 = vsel %vm450, %v438, 0
      %v467 = vsel %vm450, %v439, 0
      %v470 = vsel %vm450, %v440, 0
      %v473 = vsel %vm450, %v441, 0
      %v476 = vsel %vm450, %v442, 0
      %v479 = vsel %vm450, %v443, 0
      %v482 = vsel %vm450, %v444, 0
      %v485 = vsel %vm450, %v445, 0
      %v488 = vsel %vm450, %v446, 0
      %v491 = vsel %vm450, %v447, 0
      %v494 = vsel %vm450, %v448, 0
      %v497 = vsel %vm450, %v449, 0
      %499 = vmatprep.subr.mxu0 0.0
      %500 = vmatpush1.msra.mxu0 0.0
      %501 = vmatprep.subr.mxu0 0.0
      %502 = vmatpush1.msra.mxu0 0.0
      %503 = vmatprep.subr.mxu0 0.0
      %504 = vmatpush1.msra.mxu0 0.0
      %505 = vmatprep.subr.mxu0 0.0
      %506 = vmatpush1.msra.mxu0 0.0
      %507 = vmatprep.subr.mxu0 0.0
      %508 = vmatpush1.msra.mxu0 0.0
      %509 = vmatprep.subr.mxu0 0.0
      %510 = vmatpush1.msra.mxu0 0.0
      %511 = vmatprep.subr.mxu0 0.0
      %512 = vmatpush1.msra.mxu0 0.0
      %513 = vmatprep.subr.mxu0 0.0
      %514 = vmatpush1.msra.mxu0 0.0
      %515 = vmatprep.subr.mxu0 0.0
      %v516 = vand.u32 %v318, 4294901760
      %517 = vmatpush1.msra.mxu0 %v516
      %518 = vmatprep.subr.mxu0 0.0
      %v519 = vand.u32 %v317, 4294901760
      %520 = vmatpush1.msra.mxu0 %v519
      %521 = vmatprep.subr.mxu0 0.0
      %v522 = vand.u32 %v316, 4294901760
      %523 = vmatpush1.msra.mxu0 %v522
      %524 = vmatprep.subr.mxu0 0.0
      %v525 = vand.u32 %v315, 4294901760
      %526 = vmatpush1.msra.mxu0 %v525
      %527 = vmatprep.subr.mxu0 0.0
      %v528 = vand.u32 %v314, 4294901760
      %529 = vmatpush1.msra.mxu0 %v528
      %530 = vmatprep.subr.mxu0 0.0
      %v531 = vand.u32 %v313, 4294901760
      %532 = vmatpush1.msra.mxu0 %v531
      %533 = vmatprep.subr.mxu0 0.0
      %v534 = vand.u32 %v312, 4294901760
      %535 = vmatpush1.msra.mxu0 %v534
      %536 = vmatprep.subr.mxu0 0.0
      %v537 = vand.u32 %v311, 4294901760
      %538 = vmatpush1.msra.mxu0 %v537
      %539 = vmatprep.subr.mxu0 0.0
      %540 = vmatpush2.msra.mxu0 0.0
      %541 = vmatprep.subr.mxu0 0.0
      %542 = vmatpush2.msra.mxu0 0.0
      %543 = vmatprep.subr.mxu0 0.0
      %544 = vmatpush2.msra.mxu0 0.0
      %545 = vmatprep.subr.mxu0 0.0
      %546 = vmatpush2.msra.mxu0 0.0
      %547 = vmatprep.subr.mxu0 0.0
      %548 = vmatpush2.msra.mxu0 0.0
      %549 = vmatprep.subr.mxu0 0.0
      %550 = vmatpush2.msra.mxu0 0.0
      %551 = vmatprep.subr.mxu0 0.0
      %552 = vmatpush2.msra.mxu0 0.0
      %553 = vmatprep.subr.mxu0 0.0
      %554 = vmatpush2.msra.mxu0 0.0
      %555 = vmatprep.subr.mxu0 0.0
      %556 = vmatpush2.msra.mxu0 0.0
      %557 = vmatprep.subr.mxu0 0.0
      %558 = vmatpush2.msra.mxu0 0.0
      %559 = vmatprep.subr.mxu0 0.0
      %560 = vmatpush2.msra.mxu0 0.0
      %561 = vmatprep.subr.mxu0 0.0
      %562 = vmatpush2.msra.mxu0 0.0
      %563 = vmatprep.subr.mxu0 0.0
      %564 = vmatpush2.msra.mxu0 0.0
      %565 = vmatprep.subr.mxu0 0.0
      %566 = vmatpush2.msra.mxu0 0.0
      %567 = vmatprep.subr.mxu0 0.0
      %568 = vmatpush2.msra.mxu0 0.0
      %569 = vmatprep.subr.mxu0 0.0
      %570 = vmatpush2.msra.mxu0 0.0
      %571 = vmatprep.mubr.f32.mxu0 0.0
      %v572 = vand.u32 %v452, 4294901760
      %v573 = vsub.f32 %v452, %v572
      %v574 = vand.u32 %v573, 4294901760
      %v575 = vsub.f32 %v573, %v574
      %v576 = vand.u32 %v575, 4294901760
      %577 = vmatmul.mubr.f32.gmra.mxu0 %v576
      %v578 = vpop.f32.mrf.mxu0
      %v579 = vadd.f32 0.0, %v578
      %v580 = vpop.f32.mrf.mxu0
      %581 = vmatprep.mubr.f32.mxu0 0.0
      %v582 = vand.u32 %v455, 4294901760
      %v583 = vsub.f32 %v455, %v582
      %v584 = vand.u32 %v583, 4294901760
      %v585 = vsub.f32 %v583, %v584
      %v586 = vand.u32 %v585, 4294901760
      %587 = vmatmul.mubr.f32.gmra.mxu0 %v586
      %v588 = vpop.f32.mrf.mxu0
      %v589 = vadd.f32 0.0, %v588
      %v590 = vpop.f32.mrf.mxu0
      %591 = vmatprep.mubr.f32.mxu0 0.0
      %v592 = vand.u32 %v458, 4294901760
      %v593 = vsub.f32 %v458, %v592
      %v594 = vand.u32 %v593, 4294901760
      %v595 = vsub.f32 %v593, %v594
      %v596 = vand.u32 %v595, 4294901760
      %597 = vmatmul.mubr.f32.gmra.mxu0 %v596
      %v598 = vpop.f32.mrf.mxu0
      %v599 = vadd.f32 0.0, %v598
      %v600 = vpop.f32.mrf.mxu0
      %601 = vmatprep.mubr.f32.mxu0 0.0
      %v602 = vand.u32 %v461, 4294901760
      %v603 = vsub.f32 %v461, %v602
      %v604 = vand.u32 %v603, 4294901760
      %v605 = vsub.f32 %v603, %v604
      %v606 = vand.u32 %v605, 4294901760
      %607 = vmatmul.mubr.f32.gmra.mxu0 %v606
      %v608 = vpop.f32.mrf.mxu0
      %v609 = vadd.f32 0.0, %v608
      %v610 = vpop.f32.mrf.mxu0
      %611 = vmatprep.mubr.f32.mxu0 0.0
      %v612 = vand.u32 %v464, 4294901760
      %v613 = vsub.f32 %v464, %v612
      %v614 = vand.u32 %v613, 4294901760
      %v615 = vsub.f32 %v613, %v614
      %v616 = vand.u32 %v615, 4294901760
      %617 = vmatmul.mubr.f32.gmra.mxu0 %v616
      %v618 = vpop.f32.mrf.mxu0
      %v619 = vadd.f32 0.0, %v618
      %v620 = vpop.f32.mrf.mxu0
      %621 = vmatprep.mubr.f32.mxu0 0.0
      %v622 = vand.u32 %v467, 4294901760
      %v623 = vsub.f32 %v467, %v622
      %v624 = vand.u32 %v623, 4294901760
      %v625 = vsub.f32 %v623, %v624
      %v626 = vand.u32 %v625, 4294901760
      %627 = vmatmul.mubr.f32.gmra.mxu0 %v626
      %v628 = vpop.f32.mrf.mxu0
      %v629 = vadd.f32 0.0, %v628
      %v630 = vpop.f32.mrf.mxu0
      %631 = vmatprep.mubr.f32.mxu0 0.0
      %v632 = vand.u32 %v470, 4294901760
      %v633 = vsub.f32 %v470, %v632
      %v634 = vand.u32 %v633, 4294901760
      %v635 = vsub.f32 %v633, %v634
      %v636 = vand.u32 %v635, 4294901760
      %637 = vmatmul.mubr.f32.gmra.mxu0 %v636
      %v638 = vpop.f32.mrf.mxu0
      %v639 = vadd.f32 0.0, %v638
      %v640 = vpop.f32.mrf.mxu0
      %641 = vmatprep.mubr.f32.mxu0 0.0
      %v642 = vand.u32 %v473, 4294901760
      %v643 = vsub.f32 %v473, %v642
      %v644 = vand.u32 %v643, 4294901760
      %v645 = vsub.f32 %v643, %v644
      %v646 = vand.u32 %v645, 4294901760
      %647 = vmatmul.mubr.f32.gmra.mxu0 %v646
      %v648 = vpop.f32.mrf.mxu0
      %v649 = vadd.f32 0.0, %v648
      %v650 = vpop.f32.mrf.mxu0
      %651 = vmatprep.mubr.f32.mxu0 0.0
      %v652 = vand.u32 %v476, 4294901760
      %v653 = vsub.f32 %v476, %v652
      %v654 = vand.u32 %v653, 4294901760
      %v655 = vsub.f32 %v653, %v654
      %v656 = vand.u32 %v655, 4294901760
      %657 = vmatmul.mubr.f32.gmra.mxu0 %v656
      %v658 = vpop.f32.mrf.mxu0
      %v659 = vadd.f32 0.0, %v658
      %v660 = vpop.f32.mrf.mxu0
      %661 = vmatprep.mubr.f32.mxu0 0.0
      %v662 = vand.u32 %v479, 4294901760
      %v663 = vsub.f32 %v479, %v662
      %v664 = vand.u32 %v663, 4294901760
      %v665 = vsub.f32 %v663, %v664
      %v666 = vand.u32 %v665, 4294901760
      %667 = vmatmul.mubr.f32.gmra.mxu0 %v666
      %v668 = vpop.f32.mrf.mxu0
      %v669 = vadd.f32 0.0, %v668
      %v670 = vpop.f32.mrf.mxu0
      %671 = vmatprep.mubr.f32.mxu0 0.0
      %v672 = vand.u32 %v482, 4294901760
      %v673 = vsub.f32 %v482, %v672
      %v674 = vand.u32 %v673, 4294901760
      %v675 = vsub.f32 %v673, %v674
      %v676 = vand.u32 %v675, 4294901760
      %677 = vmatmul.mubr.f32.gmra.mxu0 %v676
      %v678 = vpop.f32.mrf.mxu0
      %v679 = vadd.f32 0.0, %v678
      %v680 = vpop.f32.mrf.mxu0
      %681 = vmatprep.mubr.f32.mxu0 0.0
      %v682 = vand.u32 %v485, 4294901760
      %v683 = vsub.f32 %v485, %v682
      %v684 = vand.u32 %v683, 4294901760
      %v685 = vsub.f32 %v683, %v684
      %v686 = vand.u32 %v685, 4294901760
      %687 = vmatmul.mubr.f32.gmra.mxu0 %v686
      %v688 = vpop.f32.mrf.mxu0
      %v689 = vadd.f32 0.0, %v688
      %v690 = vpop.f32.mrf.mxu0
      %691 = vmatprep.mubr.f32.mxu0 0.0
      %v692 = vand.u32 %v488, 4294901760
      %v693 = vsub.f32 %v488, %v692
      %v694 = vand.u32 %v693, 4294901760
      %v695 = vsub.f32 %v693, %v694
      %v696 = vand.u32 %v695, 4294901760
      %697 = vmatmul.mubr.f32.gmra.mxu0 %v696
      %v698 = vpop.f32.mrf.mxu0
      %v699 = vadd.f32 0.0, %v698
      %v700 = vpop.f32.mrf.mxu0
      %701 = vmatprep.mubr.f32.mxu0 0.0
      %v702 = vand.u32 %v491, 4294901760
      %v703 = vsub.f32 %v491, %v702
      %v704 = vand.u32 %v703, 4294901760
      %v705 = vsub.f32 %v703, %v704
      %v706 = vand.u32 %v705, 4294901760
      %707 = vmatmul.mubr.f32.gmra.mxu0 %v706
      %v708 = vpop.f32.mrf.mxu0
      %v709 = vadd.f32 0.0, %v708
      %v710 = vpop.f32.mrf.mxu0
      %711 = vmatprep.mubr.f32.mxu0 0.0
      %v712 = vand.u32 %v494, 4294901760
      %v713 = vsub.f32 %v494, %v712
      %v714 = vand.u32 %v713, 4294901760
      %v715 = vsub.f32 %v713, %v714
      %v716 = vand.u32 %v715, 4294901760
      %717 = vmatmul.mubr.f32.gmra.mxu0 %v716
      %v718 = vpop.f32.mrf.mxu0
      %v719 = vadd.f32 0.0, %v718
      %v720 = vpop.f32.mrf.mxu0
      %721 = vmatprep.mubr.f32.mxu0 0.0
      %v722 = vand.u32 %v497, 4294901760
      %v723 = vsub.f32 %v497, %v722
      %v724 = vand.u32 %v723, 4294901760
      %v725 = vsub.f32 %v723, %v724
      %v726 = vand.u32 %v725, 4294901760
      %727 = vmatmul.mubr.f32.gmra.mxu0 %v726
      %v728 = vpop.f32.mrf.mxu0
      %v729 = vadd.f32 0.0, %v728
      %v730 = vpop.f32.mrf.mxu0
      %731 = vdwg.mxu0
      %732 = vmatprep.subr.mxu0 0.0
      %733 = vmatpush1.msra.mxu0 0.0
      %734 = vmatprep.subr.mxu0 0.0
      %735 = vmatpush1.msra.mxu0 0.0
      %736 = vmatprep.subr.mxu0 0.0
      %737 = vmatpush1.msra.mxu0 0.0
      %738 = vmatprep.subr.mxu0 0.0
      %739 = vmatpush1.msra.mxu0 0.0
      %740 = vmatprep.subr.mxu0 0.0
      %741 = vmatpush1.msra.mxu0 0.0
      %742 = vmatprep.subr.mxu0 0.0
      %743 = vmatpush1.msra.mxu0 0.0
      %744 = vmatprep.subr.mxu0 0.0
      %745 = vmatpush1.msra.mxu0 0.0
      %746 = vmatprep.subr.mxu0 0.0
      %747 = vmatpush1.msra.mxu0 0.0
      %748 = vmatprep.subr.mxu0 0.0
      %v749 = vand.u32 %v318, 4294901760
      %v750 = vsub.f32 %v318, %v749
      %v751 = vand.u32 %v750, 4294901760
      %v752 = vsub.f32 %v750, %v751
      %v753 = vand.u32 %v752, 4294901760
      %754 = vmatpush1.msra.mxu0 %v753
      %755 = vmatprep.subr.mxu0 0.0
      %v756 = vand.u32 %v317, 4294901760
      %v757 = vsub.f32 %v317, %v756
      %v758 = vand.u32 %v757, 4294901760
      %v759 = vsub.f32 %v757, %v758
      %v760 = vand.u32 %v759, 4294901760
      %761 = vmatpush1.msra.mxu0 %v760
      %762 = vmatprep.subr.mxu0 0.0
      %v763 = vand.u32 %v316, 4294901760
      %v764 = vsub.f32 %v316, %v763
      %v765 = vand.u32 %v764, 4294901760
      %v766 = vsub.f32 %v764, %v765
      %v767 = vand.u32 %v766, 4294901760
      %768 = vmatpush1.msra.mxu0 %v767
      %769 = vmatprep.subr.mxu0 0.0
      %v770 = vand.u32 %v315, 4294901760
      %v771 = vsub.f32 %v315, %v770
      %v772 = vand.u32 %v771, 4294901760
      %v773 = vsub.f32 %v771, %v772
      %v774 = vand.u32 %v773, 4294901760
      %775 = vmatpush1.msra.mxu0 %v774
      %776 = vmatprep.subr.mxu0 0.0
      %v777 = vand.u32 %v314, 4294901760
      %v778 = vsub.f32 %v314, %v777
      %v779 = vand.u32 %v778, 4294901760
      %v780 = vsub.f32 %v778, %v779
      %v781 = vand.u32 %v780, 4294901760
      %782 = vmatpush1.msra.mxu0 %v781
      %783 = vmatprep.subr.mxu0 0.0
      %v784 = vand.u32 %v313, 4294901760
      %v785 = vsub.f32 %v313, %v784
      %v786 = vand.u32 %v785, 4294901760
      %v787 = vsub.f32 %v785, %v786
      %v788 = vand.u32 %v787, 4294901760
      %789 = vmatpush1.msra.mxu0 %v788
      %790 = vmatprep.subr.mxu0 0.0
      %v791 = vand.u32 %v312, 4294901760
      %v792 = vsub.f32 %v312, %v791
      %v793 = vand.u32 %v792, 4294901760
      %v794 = vsub.f32 %v792, %v793
      %v795 = vand.u32 %v794, 4294901760
      %796 = vmatpush1.msra.mxu0 %v795
      %797 = vmatprep.subr.mxu0 0.0
      %v798 = vand.u32 %v311, 4294901760
      %v799 = vsub.f32 %v311, %v798
      %v800 = vand.u32 %v799, 4294901760
      %v801 = vsub.f32 %v799, %v800
      %v802 = vand.u32 %v801, 4294901760
      %803 = vmatpush1.msra.mxu0 %v802
      %804 = vmatprep.subr.mxu0 0.0
      %805 = vmatpush2.msra.mxu0 0.0
      %806 = vmatprep.subr.mxu0 0.0
      %807 = vmatpush2.msra.mxu0 0.0
      %808 = vmatprep.subr.mxu0 0.0
      %809 = vmatpush2.msra.mxu0 0.0
      %810 = vmatprep.subr.mxu0 0.0
      %811 = vmatpush2.msra.mxu0 0.0
      %812 = vmatprep.subr.mxu0 0.0
      %813 = vmatpush2.msra.mxu0 0.0
      %814 = vmatprep.subr.mxu0 0.0
      %815 = vmatpush2.msra.mxu0 0.0
      %816 = vmatprep.subr.mxu0 0.0
      %817 = vmatpush2.msra.mxu0 0.0
      %818 = vmatprep.subr.mxu0 0.0
      %819 = vmatpush2.msra.mxu0 0.0
      %820 = vmatprep.subr.mxu0 0.0
      %821 = vmatpush2.msra.mxu0 0.0
      %822 = vmatprep.subr.mxu0 0.0
      %823 = vmatpush2.msra.mxu0 0.0
      %824 = vmatprep.subr.mxu0 0.0
      %825 = vmatpush2.msra.mxu0 0.0
      %826 = vmatprep.subr.mxu0 0.0
      %827 = vmatpush2.msra.mxu0 0.0
      %828 = vmatprep.subr.mxu0 0.0
      %829 = vmatpush2.msra.mxu0 0.0
      %830 = vmatprep.subr.mxu0 0.0
      %831 = vmatpush2.msra.mxu0 0.0
      %832 = vmatprep.subr.mxu0 0.0
      %833 = vmatpush2.msra.mxu0 0.0
      %834 = vmatprep.subr.mxu0 0.0
      %835 = vmatpush2.msra.mxu0 0.0
      %836 = vmatprep.mubr.f32.mxu0 0.0
      %v837 = vand.u32 %v452, 4294901760
      %838 = vmatmul.mubr.f32.gmra.mxu0 %v837
      %v839 = vpop.f32.mrf.mxu0
      %v840 = vadd.f32 %v579, %v839
      %v841 = vpop.f32.mrf.mxu0
      %842 = vmatprep.mubr.f32.mxu0 0.0
      %v843 = vand.u32 %v455, 4294901760
      %844 = vmatmul.mubr.f32.gmra.mxu0 %v843
      %v845 = vpop.f32.mrf.mxu0
      %v846 = vadd.f32 %v589, %v845
      %v847 = vpop.f32.mrf.mxu0
      %848 = vmatprep.mubr.f32.mxu0 0.0
      %v849 = vand.u32 %v458, 4294901760
      %850 = vmatmul.mubr.f32.gmra.mxu0 %v849
      %v851 = vpop.f32.mrf.mxu0
      %v852 = vadd.f32 %v599, %v851
      %v853 = vpop.f32.mrf.mxu0
      %854 = vmatprep.mubr.f32.mxu0 0.0
      %v855 = vand.u32 %v461, 4294901760
      %856 = vmatmul.mubr.f32.gmra.mxu0 %v855
      %v857 = vpop.f32.mrf.mxu0
      %v858 = vadd.f32 %v609, %v857
      %v859 = vpop.f32.mrf.mxu0
      %860 = vmatprep.mubr.f32.mxu0 0.0
      %v861 = vand.u32 %v464, 4294901760
      %862 = vmatmul.mubr.f32.gmra.mxu0 %v861
      %v863 = vpop.f32.mrf.mxu0
      %v864 = vadd.f32 %v619, %v863
      %v865 = vpop.f32.mrf.mxu0
      %866 = vmatprep.mubr.f32.mxu0 0.0
      %v867 = vand.u32 %v467, 4294901760
      %868 = vmatmul.mubr.f32.gmra.mxu0 %v867
      %v869 = vpop.f32.mrf.mxu0
      %v870 = vadd.f32 %v629, %v869
      %v871 = vpop.f32.mrf.mxu0
      %872 = vmatprep.mubr.f32.mxu0 0.0
      %v873 = vand.u32 %v470, 4294901760
      %874 = vmatmul.mubr.f32.gmra.mxu0 %v873
      %v875 = vpop.f32.mrf.mxu0
      %v876 = vadd.f32 %v639, %v875
      %v877 = vpop.f32.mrf.mxu0
      %878 = vmatprep.mubr.f32.mxu0 0.0
      %v879 = vand.u32 %v473, 4294901760
      %880 = vmatmul.mubr.f32.gmra.mxu0 %v879
      %v881 = vpop.f32.mrf.mxu0
      %v882 = vadd.f32 %v649, %v881
      %v883 = vpop.f32.mrf.mxu0
      %884 = vmatprep.mubr.f32.mxu0 0.0
      %v885 = vand.u32 %v476, 4294901760
      %886 = vmatmul.mubr.f32.gmra.mxu0 %v885
      %v887 = vpop.f32.mrf.mxu0
      %v888 = vadd.f32 %v659, %v887
      %v889 = vpop.f32.mrf.mxu0
      %890 = vmatprep.mubr.f32.mxu0 0.0
      %v891 = vand.u32 %v479, 4294901760
      %892 = vmatmul.mubr.f32.gmra.mxu0 %v891
      %v893 = vpop.f32.mrf.mxu0
      %v894 = vadd.f32 %v669, %v893
      %v895 = vpop.f32.mrf.mxu0
      %896 = vmatprep.mubr.f32.mxu0 0.0
      %v897 = vand.u32 %v482, 4294901760
      %898 = vmatmul.mubr.f32.gmra.mxu0 %v897
      %v899 = vpop.f32.mrf.mxu0
      %v900 = vadd.f32 %v679, %v899
      %v901 = vpop.f32.mrf.mxu0
      %902 = vmatprep.mubr.f32.mxu0 0.0
      %v903 = vand.u32 %v485, 4294901760
      %904 = vmatmul.mubr.f32.gmra.mxu0 %v903
      %v905 = vpop.f32.mrf.mxu0
      %v906 = vadd.f32 %v689, %v905
      %v907 = vpop.f32.mrf.mxu0
      %908 = vmatprep.mubr.f32.mxu0 0.0
      %v909 = vand.u32 %v488, 4294901760
      %910 = vmatmul.mubr.f32.gmra.mxu0 %v909
      %v911 = vpop.f32.mrf.mxu0
      %v912 = vadd.f32 %v699, %v911
      %v913 = vpop.f32.mrf.mxu0
      %914 = vmatprep.mubr.f32.mxu0 0.0
      %v915 = vand.u32 %v491, 4294901760
      %916 = vmatmul.mubr.f32.gmra.mxu0 %v915
      %v917 = vpop.f32.mrf.mxu0
      %v918 = vadd.f32 %v709, %v917
      %v919 = vpop.f32.mrf.mxu0
      %920 = vmatprep.mubr.f32.mxu0 0.0
      %v921 = vand.u32 %v494, 4294901760
      %922 = vmatmul.mubr.f32.gmra.mxu0 %v921
      %v923 = vpop.f32.mrf.mxu0
      %v924 = vadd.f32 %v719, %v923
      %v925 = vpop.f32.mrf.mxu0
      %926 = vmatprep.mubr.f32.mxu0 0.0
      %v927 = vand.u32 %v497, 4294901760
      %928 = vmatmul.mubr.f32.gmra.mxu0 %v927
      %v929 = vpop.f32.mrf.mxu0
      %v930 = vadd.f32 %v729, %v929
      %v931 = vpop.f32.mrf.mxu0
      %932 = vdwg.mxu0
      %933 = vmatprep.subr.mxu0 0.0
      %934 = vmatpush1.msra.mxu0 0.0
      %935 = vmatprep.subr.mxu0 0.0
      %936 = vmatpush1.msra.mxu0 0.0
      %937 = vmatprep.subr.mxu0 0.0
      %938 = vmatpush1.msra.mxu0 0.0
      %939 = vmatprep.subr.mxu0 0.0
      %940 = vmatpush1.msra.mxu0 0.0
      %941 = vmatprep.subr.mxu0 0.0
      %942 = vmatpush1.msra.mxu0 0.0
      %943 = vmatprep.subr.mxu0 0.0
      %944 = vmatpush1.msra.mxu0 0.0
      %945 = vmatprep.subr.mxu0 0.0
      %946 = vmatpush1.msra.mxu0 0.0
      %947 = vmatprep.subr.mxu0 0.0
      %948 = vmatpush1.msra.mxu0 0.0
      %949 = vmatprep.subr.mxu0 0.0
      %v950 = vand.u32 %v318, 4294901760
      %v951 = vsub.f32 %v318, %v950
      %952 = vmatpush1.msra.mxu0 %v951
      %953 = vmatprep.subr.mxu0 0.0
      %v954 = vand.u32 %v317, 4294901760
      %v955 = vsub.f32 %v317, %v954
      %956 = vmatpush1.msra.mxu0 %v955
      %957 = vmatprep.subr.mxu0 0.0
      %v958 = vand.u32 %v316, 4294901760
      %v959 = vsub.f32 %v316, %v958
      %960 = vmatpush1.msra.mxu0 %v959
      %961 = vmatprep.subr.mxu0 0.0
      %v962 = vand.u32 %v315, 4294901760
      %v963 = vsub.f32 %v315, %v962
      %964 = vmatpush1.msra.mxu0 %v963
      %965 = vmatprep.subr.mxu0 0.0
      %v966 = vand.u32 %v314, 4294901760
      %v967 = vsub.f32 %v314, %v966
      %968 = vmatpush1.msra.mxu0 %v967
      %969 = vmatprep.subr.mxu0 0.0
      %v970 = vand.u32 %v313, 4294901760
      %v971 = vsub.f32 %v313, %v970
      %972 = vmatpush1.msra.mxu0 %v971
      %973 = vmatprep.subr.mxu0 0.0
      %v974 = vand.u32 %v312, 4294901760
      %v975 = vsub.f32 %v312, %v974
      %976 = vmatpush1.msra.mxu0 %v975
      %977 = vmatprep.subr.mxu0 0.0
      %v978 = vand.u32 %v311, 4294901760
      %v979 = vsub.f32 %v311, %v978
      %980 = vmatpush1.msra.mxu0 %v979
      %981 = vmatprep.subr.mxu0 0.0
      %982 = vmatpush2.msra.mxu0 0.0
      %983 = vmatprep.subr.mxu0 0.0
      %984 = vmatpush2.msra.mxu0 0.0
      %985 = vmatprep.subr.mxu0 0.0
      %986 = vmatpush2.msra.mxu0 0.0
      %987 = vmatprep.subr.mxu0 0.0
      %988 = vmatpush2.msra.mxu0 0.0
      %989 = vmatprep.subr.mxu0 0.0
      %990 = vmatpush2.msra.mxu0 0.0
      %991 = vmatprep.subr.mxu0 0.0
      %992 = vmatpush2.msra.mxu0 0.0
      %993 = vmatprep.subr.mxu0 0.0
      %994 = vmatpush2.msra.mxu0 0.0
      %995 = vmatprep.subr.mxu0 0.0
      %996 = vmatpush2.msra.mxu0 0.0
      %997 = vmatprep.subr.mxu0 0.0
      %998 = vmatpush2.msra.mxu0 0.0
      %999 = vmatprep.subr.mxu0 0.0
      %1000 = vmatpush2.msra.mxu0 0.0
      %1001 = vmatprep.subr.mxu0 0.0
      %1002 = vmatpush2.msra.mxu0 0.0
      %1003 = vmatprep.subr.mxu0 0.0
      %1004 = vmatpush2.msra.mxu0 0.0
      %1005 = vmatprep.subr.mxu0 0.0
      %1006 = vmatpush2.msra.mxu0 0.0
      %1007 = vmatprep.subr.mxu0 0.0
      %1008 = vmatpush2.msra.mxu0 0.0
      %1009 = vmatprep.subr.mxu0 0.0
      %1010 = vmatpush2.msra.mxu0 0.0
      %1011 = vmatprep.subr.mxu0 0.0
      %1012 = vmatpush2.msra.mxu0 0.0
      %1013 = vmatprep.mubr.f32.mxu0 0.0
      %v1014 = vand.u32 %v452, 4294901760
      %v1015 = vsub.f32 %v452, %v1014
      %1016 = vmatmul.mubr.f32.gmra.mxu0 %v1015
      %v1017 = vpop.f32.mrf.mxu0
      %v1018 = vadd.f32 %v840, %v1017
      %v1019 = vpop.f32.mrf.mxu0
      %1020 = vmatprep.mubr.f32.mxu0 0.0
      %v1021 = vand.u32 %v455, 4294901760
      %v1022 = vsub.f32 %v455, %v1021
      %1023 = vmatmul.mubr.f32.gmra.mxu0 %v1022
      %v1024 = vpop.f32.mrf.mxu0
      %v1025 = vadd.f32 %v846, %v1024
      %v1026 = vpop.f32.mrf.mxu0
      %1027 = vmatprep.mubr.f32.mxu0 0.0
      %v1028 = vand.u32 %v458, 4294901760
      %v1029 = vsub.f32 %v458, %v1028
      %1030 = vmatmul.mubr.f32.gmra.mxu0 %v1029
      %v1031 = vpop.f32.mrf.mxu0
      %v1032 = vadd.f32 %v852, %v1031
      %v1033 = vpop.f32.mrf.mxu0
      %1034 = vmatprep.mubr.f32.mxu0 0.0
      %v1035 = vand.u32 %v461, 4294901760
      %v1036 = vsub.f32 %v461, %v1035
      %1037 = vmatmul.mubr.f32.gmra.mxu0 %v1036
      %v1038 = vpop.f32.mrf.mxu0
      %v1039 = vadd.f32 %v858, %v1038
      %v1040 = vpop.f32.mrf.mxu0
      %1041 = vmatprep.mubr.f32.mxu0 0.0
      %v1042 = vand.u32 %v464, 4294901760
      %v1043 = vsub.f32 %v464, %v1042
      %1044 = vmatmul.mubr.f32.gmra.mxu0 %v1043
      %v1045 = vpop.f32.mrf.mxu0
      %v1046 = vadd.f32 %v864, %v1045
      %v1047 = vpop.f32.mrf.mxu0
      %1048 = vmatprep.mubr.f32.mxu0 0.0
      %v1049 = vand.u32 %v467, 4294901760
      %v1050 = vsub.f32 %v467, %v1049
      %1051 = vmatmul.mubr.f32.gmra.mxu0 %v1050
      %v1052 = vpop.f32.mrf.mxu0
      %v1053 = vadd.f32 %v870, %v1052
      %v1054 = vpop.f32.mrf.mxu0
      %1055 = vmatprep.mubr.f32.mxu0 0.0
      %v1056 = vand.u32 %v470, 4294901760
      %v1057 = vsub.f32 %v470, %v1056
      %1058 = vmatmul.mubr.f32.gmra.mxu0 %v1057
      %v1059 = vpop.f32.mrf.mxu0
      %v1060 = vadd.f32 %v876, %v1059
      %v1061 = vpop.f32.mrf.mxu0
      %1062 = vmatprep.mubr.f32.mxu0 0.0
      %v1063 = vand.u32 %v473, 4294901760
      %v1064 = vsub.f32 %v473, %v1063
      %1065 = vmatmul.mubr.f32.gmra.mxu0 %v1064
      %v1066 = vpop.f32.mrf.mxu0
      %v1067 = vadd.f32 %v882, %v1066
      %v1068 = vpop.f32.mrf.mxu0
      %1069 = vmatprep.mubr.f32.mxu0 0.0
      %v1070 = vand.u32 %v476, 4294901760
      %v1071 = vsub.f32 %v476, %v1070
      %1072 = vmatmul.mubr.f32.gmra.mxu0 %v1071
      %v1073 = vpop.f32.mrf.mxu0
      %v1074 = vadd.f32 %v888, %v1073
      %v1075 = vpop.f32.mrf.mxu0
      %1076 = vmatprep.mubr.f32.mxu0 0.0
      %v1077 = vand.u32 %v479, 4294901760
      %v1078 = vsub.f32 %v479, %v1077
      %1079 = vmatmul.mubr.f32.gmra.mxu0 %v1078
      %v1080 = vpop.f32.mrf.mxu0
      %v1081 = vadd.f32 %v894, %v1080
      %v1082 = vpop.f32.mrf.mxu0
      %1083 = vmatprep.mubr.f32.mxu0 0.0
      %v1084 = vand.u32 %v482, 4294901760
      %v1085 = vsub.f32 %v482, %v1084
      %1086 = vmatmul.mubr.f32.gmra.mxu0 %v1085
      %v1087 = vpop.f32.mrf.mxu0
      %v1088 = vadd.f32 %v900, %v1087
      %v1089 = vpop.f32.mrf.mxu0
      %1090 = vmatprep.mubr.f32.mxu0 0.0
      %v1091 = vand.u32 %v485, 4294901760
      %v1092 = vsub.f32 %v485, %v1091
      %1093 = vmatmul.mubr.f32.gmra.mxu0 %v1092
      %v1094 = vpop.f32.mrf.mxu0
      %v1095 = vadd.f32 %v906, %v1094
      %v1096 = vpop.f32.mrf.mxu0
      %1097 = vmatprep.mubr.f32.mxu0 0.0
      %v1098 = vand.u32 %v488, 4294901760
      %v1099 = vsub.f32 %v488, %v1098
      %1100 = vmatmul.mubr.f32.gmra.mxu0 %v1099
      %v1101 = vpop.f32.mrf.mxu0
      %v1102 = vadd.f32 %v912, %v1101
      %v1103 = vpop.f32.mrf.mxu0
      %1104 = vmatprep.mubr.f32.mxu0 0.0
      %v1105 = vand.u32 %v491, 4294901760
      %v1106 = vsub.f32 %v491, %v1105
      %1107 = vmatmul.mubr.f32.gmra.mxu0 %v1106
      %v1108 = vpop.f32.mrf.mxu0
      %v1109 = vadd.f32 %v918, %v1108
      %v1110 = vpop.f32.mrf.mxu0
      %1111 = vmatprep.mubr.f32.mxu0 0.0
      %v1112 = vand.u32 %v494, 4294901760
      %v1113 = vsub.f32 %v494, %v1112
      %1114 = vmatmul.mubr.f32.gmra.mxu0 %v1113
      %v1115 = vpop.f32.mrf.mxu0
      %v1116 = vadd.f32 %v924, %v1115
      %v1117 = vpop.f32.mrf.mxu0
      %1118 = vmatprep.mubr.f32.mxu0 0.0
      %v1119 = vand.u32 %v497, 4294901760
      %v1120 = vsub.f32 %v497, %v1119
      %1121 = vmatmul.mubr.f32.gmra.mxu0 %v1120
      %v1122 = vpop.f32.mrf.mxu0
      %v1123 = vadd.f32 %v930, %v1122
      %v1124 = vpop.f32.mrf.mxu0
      %1125 = vdwg.mxu0
      %1126 = vmatprep.subr.mxu0 0.0
      %1127 = vmatpush1.msra.mxu0 0.0
      %1128 = vmatprep.subr.mxu0 0.0
      %1129 = vmatpush1.msra.mxu0 0.0
      %1130 = vmatprep.subr.mxu0 0.0
      %1131 = vmatpush1.msra.mxu0 0.0
      %1132 = vmatprep.subr.mxu0 0.0
      %1133 = vmatpush1.msra.mxu0 0.0
      %1134 = vmatprep.subr.mxu0 0.0
      %1135 = vmatpush1.msra.mxu0 0.0
      %1136 = vmatprep.subr.mxu0 0.0
      %1137 = vmatpush1.msra.mxu0 0.0
      %1138 = vmatprep.subr.mxu0 0.0
      %1139 = vmatpush1.msra.mxu0 0.0
      %1140 = vmatprep.subr.mxu0 0.0
      %1141 = vmatpush1.msra.mxu0 0.0
      %1142 = vmatprep.subr.mxu0 0.0
      %v1143 = vand.u32 %v318, 4294901760
      %1144 = vmatpush1.msra.mxu0 %v1143
      %1145 = vmatprep.subr.mxu0 0.0
      %v1146 = vand.u32 %v317, 4294901760
      %1147 = vmatpush1.msra.mxu0 %v1146
      %1148 = vmatprep.subr.mxu0 0.0
      %v1149 = vand.u32 %v316, 4294901760
      %1150 = vmatpush1.msra.mxu0 %v1149
      %1151 = vmatprep.subr.mxu0 0.0
      %v1152 = vand.u32 %v315, 4294901760
      %1153 = vmatpush1.msra.mxu0 %v1152
      %1154 = vmatprep.subr.mxu0 0.0
      %v1155 = vand.u32 %v314, 4294901760
      %1156 = vmatpush1.msra.mxu0 %v1155
      %1157 = vmatprep.subr.mxu0 0.0
      %v1158 = vand.u32 %v313, 4294901760
      %1159 = vmatpush1.msra.mxu0 %v1158
      %1160 = vmatprep.subr.mxu0 0.0
      %v1161 = vand.u32 %v312, 4294901760
      %1162 = vmatpush1.msra.mxu0 %v1161
      %1163 = vmatprep.subr.mxu0 0.0
      %v1164 = vand.u32 %v311, 4294901760
      %1165 = vmatpush1.msra.mxu0 %v1164
      %1166 = vmatprep.subr.mxu0 0.0
      %1167 = vmatpush2.msra.mxu0 0.0
      %1168 = vmatprep.subr.mxu0 0.0
      %1169 = vmatpush2.msra.mxu0 0.0
      %1170 = vmatprep.subr.mxu0 0.0
      %1171 = vmatpush2.msra.mxu0 0.0
      %1172 = vmatprep.subr.mxu0 0.0
      %1173 = vmatpush2.msra.mxu0 0.0
      %1174 = vmatprep.subr.mxu0 0.0
      %1175 = vmatpush2.msra.mxu0 0.0
      %1176 = vmatprep.subr.mxu0 0.0
      %1177 = vmatpush2.msra.mxu0 0.0
      %1178 = vmatprep.subr.mxu0 0.0
      %1179 = vmatpush2.msra.mxu0 0.0
      %1180 = vmatprep.subr.mxu0 0.0
      %1181 = vmatpush2.msra.mxu0 0.0
      %1182 = vmatprep.subr.mxu0 0.0
      %1183 = vmatpush2.msra.mxu0 0.0
      %1184 = vmatprep.subr.mxu0 0.0
      %1185 = vmatpush2.msra.mxu0 0.0
      %1186 = vmatprep.subr.mxu0 0.0
      %1187 = vmatpush2.msra.mxu0 0.0
      %1188 = vmatprep.subr.mxu0 0.0
      %1189 = vmatpush2.msra.mxu0 0.0
      %1190 = vmatprep.subr.mxu0 0.0
      %1191 = vmatpush2.msra.mxu0 0.0
      %1192 = vmatprep.subr.mxu0 0.0
      %1193 = vmatpush2.msra.mxu0 0.0
      %1194 = vmatprep.subr.mxu0 0.0
      %1195 = vmatpush2.msra.mxu0 0.0
      %1196 = vmatprep.subr.mxu0 0.0
      %1197 = vmatpush2.msra.mxu0 0.0
      %1198 = vmatprep.mubr.f32.mxu0 0.0
      %v1199 = vand.u32 %v452, 4294901760
      %v1200 = vsub.f32 %v452, %v1199
      %v1201 = vand.u32 %v1200, 4294901760
      %1202 = vmatmul.mubr.f32.gmra.mxu0 %v1201
      %v1203 = vpop.f32.mrf.mxu0
      %v1204 = vadd.f32 %v1018, %v1203
      %v1205 = vpop.f32.mrf.mxu0
      %1206 = vmatprep.mubr.f32.mxu0 0.0
      %v1207 = vand.u32 %v455, 4294901760
      %v1208 = vsub.f32 %v455, %v1207
      %v1209 = vand.u32 %v1208, 4294901760
      %1210 = vmatmul.mubr.f32.gmra.mxu0 %v1209
      %v1211 = vpop.f32.mrf.mxu0
      %v1212 = vadd.f32 %v1025, %v1211
      %v1213 = vpop.f32.mrf.mxu0
      %1214 = vmatprep.mubr.f32.mxu0 0.0
      %v1215 = vand.u32 %v458, 4294901760
      %v1216 = vsub.f32 %v458, %v1215
      %v1217 = vand.u32 %v1216, 4294901760
      %1218 = vmatmul.mubr.f32.gmra.mxu0 %v1217
      %v1219 = vpop.f32.mrf.mxu0
      %v1220 = vadd.f32 %v1032, %v1219
      %v1221 = vpop.f32.mrf.mxu0
      %1222 = vmatprep.mubr.f32.mxu0 0.0
      %v1223 = vand.u32 %v461, 4294901760
      %v1224 = vsub.f32 %v461, %v1223
      %v1225 = vand.u32 %v1224, 4294901760
      %1226 = vmatmul.mubr.f32.gmra.mxu0 %v1225
      %v1227 = vpop.f32.mrf.mxu0
      %v1228 = vadd.f32 %v1039, %v1227
      %v1229 = vpop.f32.mrf.mxu0
      %1230 = vmatprep.mubr.f32.mxu0 0.0
      %v1231 = vand.u32 %v464, 4294901760
      %v1232 = vsub.f32 %v464, %v1231
      %v1233 = vand.u32 %v1232, 4294901760
      %1234 = vmatmul.mubr.f32.gmra.mxu0 %v1233
      %v1235 = vpop.f32.mrf.mxu0
      %v1236 = vadd.f32 %v1046, %v1235
      %v1237 = vpop.f32.mrf.mxu0
      %1238 = vmatprep.mubr.f32.mxu0 0.0
      %v1239 = vand.u32 %v467, 4294901760
      %v1240 = vsub.f32 %v467, %v1239
      %v1241 = vand.u32 %v1240, 4294901760
      %1242 = vmatmul.mubr.f32.gmra.mxu0 %v1241
      %v1243 = vpop.f32.mrf.mxu0
      %v1244 = vadd.f32 %v1053, %v1243
      %v1245 = vpop.f32.mrf.mxu0
      %1246 = vmatprep.mubr.f32.mxu0 0.0
      %v1247 = vand.u32 %v470, 4294901760
      %v1248 = vsub.f32 %v470, %v1247
      %v1249 = vand.u32 %v1248, 4294901760
      %1250 = vmatmul.mubr.f32.gmra.mxu0 %v1249
      %v1251 = vpop.f32.mrf.mxu0
      %v1252 = vadd.f32 %v1060, %v1251
      %v1253 = vpop.f32.mrf.mxu0
      %1254 = vmatprep.mubr.f32.mxu0 0.0
      %v1255 = vand.u32 %v473, 4294901760
      %v1256 = vsub.f32 %v473, %v1255
      %v1257 = vand.u32 %v1256, 4294901760
      %1258 = vmatmul.mubr.f32.gmra.mxu0 %v1257
      %v1259 = vpop.f32.mrf.mxu0
      %v1260 = vadd.f32 %v1067, %v1259
      %v1261 = vpop.f32.mrf.mxu0
      %1262 = vmatprep.mubr.f32.mxu0 0.0
      %v1263 = vand.u32 %v476, 4294901760
      %v1264 = vsub.f32 %v476, %v1263
      %v1265 = vand.u32 %v1264, 4294901760
      %1266 = vmatmul.mubr.f32.gmra.mxu0 %v1265
      %v1267 = vpop.f32.mrf.mxu0
      %v1268 = vadd.f32 %v1074, %v1267
      %v1269 = vpop.f32.mrf.mxu0
      %1270 = vmatprep.mubr.f32.mxu0 0.0
      %v1271 = vand.u32 %v479, 4294901760
      %v1272 = vsub.f32 %v479, %v1271
      %v1273 = vand.u32 %v1272, 4294901760
      %1274 = vmatmul.mubr.f32.gmra.mxu0 %v1273
      %v1275 = vpop.f32.mrf.mxu0
      %v1276 = vadd.f32 %v1081, %v1275
      %v1277 = vpop.f32.mrf.mxu0
      %1278 = vmatprep.mubr.f32.mxu0 0.0
      %v1279 = vand.u32 %v482, 4294901760
      %v1280 = vsub.f32 %v482, %v1279
      %v1281 = vand.u32 %v1280, 4294901760
      %1282 = vmatmul.mubr.f32.gmra.mxu0 %v1281
      %v1283 = vpop.f32.mrf.mxu0
      %v1284 = vadd.f32 %v1088, %v1283
      %v1285 = vpop.f32.mrf.mxu0
      %1286 = vmatprep.mubr.f32.mxu0 0.0
      %v1287 = vand.u32 %v485, 4294901760
      %v1288 = vsub.f32 %v485, %v1287
      %v1289 = vand.u32 %v1288, 4294901760
      %1290 = vmatmul.mubr.f32.gmra.mxu0 %v1289
      %v1291 = vpop.f32.mrf.mxu0
      %v1292 = vadd.f32 %v1095, %v1291
      %v1293 = vpop.f32.mrf.mxu0
      %1294 = vmatprep.mubr.f32.mxu0 0.0
      %v1295 = vand.u32 %v488, 4294901760
      %v1296 = vsub.f32 %v488, %v1295
      %v1297 = vand.u32 %v1296, 4294901760
      %1298 = vmatmul.mubr.f32.gmra.mxu0 %v1297
      %v1299 = vpop.f32.mrf.mxu0
      %v1300 = vadd.f32 %v1102, %v1299
      %v1301 = vpop.f32.mrf.mxu0
      %1302 = vmatprep.mubr.f32.mxu0 0.0
      %v1303 = vand.u32 %v491, 4294901760
      %v1304 = vsub.f32 %v491, %v1303
      %v1305 = vand.u32 %v1304, 4294901760
      %1306 = vmatmul.mubr.f32.gmra.mxu0 %v1305
      %v1307 = vpop.f32.mrf.mxu0
      %v1308 = vadd.f32 %v1109, %v1307
      %v1309 = vpop.f32.mrf.mxu0
      %1310 = vmatprep.mubr.f32.mxu0 0.0
      %v1311 = vand.u32 %v494, 4294901760
      %v1312 = vsub.f32 %v494, %v1311
      %v1313 = vand.u32 %v1312, 4294901760
      %1314 = vmatmul.mubr.f32.gmra.mxu0 %v1313
      %v1315 = vpop.f32.mrf.mxu0
      %v1316 = vadd.f32 %v1116, %v1315
      %v1317 = vpop.f32.mrf.mxu0
      %1318 = vmatprep.mubr.f32.mxu0 0.0
      %v1319 = vand.u32 %v497, 4294901760
      %v1320 = vsub.f32 %v497, %v1319
      %v1321 = vand.u32 %v1320, 4294901760
      %1322 = vmatmul.mubr.f32.gmra.mxu0 %v1321
      %v1323 = vpop.f32.mrf.mxu0
      %v1324 = vadd.f32 %v1123, %v1323
      %v1325 = vpop.f32.mrf.mxu0
      %1326 = vdwg.mxu0
      %1327 = vmatprep.subr.mxu0 0.0
      %1328 = vmatpush1.msra.mxu0 0.0
      %1329 = vmatprep.subr.mxu0 0.0
      %1330 = vmatpush1.msra.mxu0 0.0
      %1331 = vmatprep.subr.mxu0 0.0
      %1332 = vmatpush1.msra.mxu0 0.0
      %1333 = vmatprep.subr.mxu0 0.0
      %1334 = vmatpush1.msra.mxu0 0.0
      %1335 = vmatprep.subr.mxu0 0.0
      %1336 = vmatpush1.msra.mxu0 0.0
      %1337 = vmatprep.subr.mxu0 0.0
      %1338 = vmatpush1.msra.mxu0 0.0
      %1339 = vmatprep.subr.mxu0 0.0
      %1340 = vmatpush1.msra.mxu0 0.0
      %1341 = vmatprep.subr.mxu0 0.0
      %1342 = vmatpush1.msra.mxu0 0.0
      %1343 = vmatprep.subr.mxu0 0.0
      %v1344 = vand.u32 %v318, 4294901760
      %v1345 = vsub.f32 %v318, %v1344
      %v1346 = vand.u32 %v1345, 4294901760
      %1347 = vmatpush1.msra.mxu0 %v1346
      %1348 = vmatprep.subr.mxu0 0.0
      %v1349 = vand.u32 %v317, 4294901760
      %v1350 = vsub.f32 %v317, %v1349
      %v1351 = vand.u32 %v1350, 4294901760
      %1352 = vmatpush1.msra.mxu0 %v1351
      %1353 = vmatprep.subr.mxu0 0.0
      %v1354 = vand.u32 %v316, 4294901760
      %v1355 = vsub.f32 %v316, %v1354
      %v1356 = vand.u32 %v1355, 4294901760
      %1357 = vmatpush1.msra.mxu0 %v1356
      %1358 = vmatprep.subr.mxu0 0.0
      %v1359 = vand.u32 %v315, 4294901760
      %v1360 = vsub.f32 %v315, %v1359
      %v1361 = vand.u32 %v1360, 4294901760
      %1362 = vmatpush1.msra.mxu0 %v1361
      %1363 = vmatprep.subr.mxu0 0.0
      %v1364 = vand.u32 %v314, 4294901760
      %v1365 = vsub.f32 %v314, %v1364
      %v1366 = vand.u32 %v1365, 4294901760
      %1367 = vmatpush1.msra.mxu0 %v1366
      %1368 = vmatprep.subr.mxu0 0.0
      %v1369 = vand.u32 %v313, 4294901760
      %v1370 = vsub.f32 %v313, %v1369
      %v1371 = vand.u32 %v1370, 4294901760
      %1372 = vmatpush1.msra.mxu0 %v1371
      %1373 = vmatprep.subr.mxu0 0.0
      %v1374 = vand.u32 %v312, 4294901760
      %v1375 = vsub.f32 %v312, %v1374
      %v1376 = vand.u32 %v1375, 4294901760
      %1377 = vmatpush1.msra.mxu0 %v1376
      %1378 = vmatprep.subr.mxu0 0.0
      %v1379 = vand.u32 %v311, 4294901760
      %v1380 = vsub.f32 %v311, %v1379
      %v1381 = vand.u32 %v1380, 4294901760
      %1382 = vmatpush1.msra.mxu0 %v1381
      %1383 = vmatprep.subr.mxu0 0.0
      %1384 = vmatpush2.msra.mxu0 0.0
      %1385 = vmatprep.subr.mxu0 0.0
      %1386 = vmatpush2.msra.mxu0 0.0
      %1387 = vmatprep.subr.mxu0 0.0
      %1388 = vmatpush2.msra.mxu0 0.0
      %1389 = vmatprep.subr.mxu0 0.0
      %1390 = vmatpush2.msra.mxu0 0.0
      %1391 = vmatprep.subr.mxu0 0.0
      %1392 = vmatpush2.msra.mxu0 0.0
      %1393 = vmatprep.subr.mxu0 0.0
      %1394 = vmatpush2.msra.mxu0 0.0
      %1395 = vmatprep.subr.mxu0 0.0
      %1396 = vmatpush2.msra.mxu0 0.0
      %1397 = vmatprep.subr.mxu0 0.0
      %1398 = vmatpush2.msra.mxu0 0.0
      %1399 = vmatprep.subr.mxu0 0.0
      %1400 = vmatpush2.msra.mxu0 0.0
      %1401 = vmatprep.subr.mxu0 0.0
      %1402 = vmatpush2.msra.mxu0 0.0
      %1403 = vmatprep.subr.mxu0 0.0
      %1404 = vmatpush2.msra.mxu0 0.0
      %1405 = vmatprep.subr.mxu0 0.0
      %1406 = vmatpush2.msra.mxu0 0.0
      %1407 = vmatprep.subr.mxu0 0.0
      %1408 = vmatpush2.msra.mxu0 0.0
      %1409 = vmatprep.subr.mxu0 0.0
      %1410 = vmatpush2.msra.mxu0 0.0
      %1411 = vmatprep.subr.mxu0 0.0
      %1412 = vmatpush2.msra.mxu0 0.0
      %1413 = vmatprep.subr.mxu0 0.0
      %1414 = vmatpush2.msra.mxu0 0.0
      %1415 = vmatprep.mubr.f32.mxu0 0.0
      %v1416 = vand.u32 %v452, 4294901760
      %1417 = vmatmul.mubr.f32.gmra.mxu0 %v1416
      %v1418 = vpop.f32.mrf.mxu0
      %v1419 = vadd.f32 %v1204, %v1418
      %v1420 = vpop.f32.mrf.mxu0
      %1421 = vmatprep.mubr.f32.mxu0 0.0
      %v1422 = vand.u32 %v455, 4294901760
      %1423 = vmatmul.mubr.f32.gmra.mxu0 %v1422
      %v1424 = vpop.f32.mrf.mxu0
      %v1425 = vadd.f32 %v1212, %v1424
      %v1426 = vpop.f32.mrf.mxu0
      %1427 = vmatprep.mubr.f32.mxu0 0.0
      %v1428 = vand.u32 %v458, 4294901760
      %1429 = vmatmul.mubr.f32.gmra.mxu0 %v1428
      %v1430 = vpop.f32.mrf.mxu0
      %v1431 = vadd.f32 %v1220, %v1430
      %v1432 = vpop.f32.mrf.mxu0
      %1433 = vmatprep.mubr.f32.mxu0 0.0
      %v1434 = vand.u32 %v461, 4294901760
      %1435 = vmatmul.mubr.f32.gmra.mxu0 %v1434
      %v1436 = vpop.f32.mrf.mxu0
      %v1437 = vadd.f32 %v1228, %v1436
      %v1438 = vpop.f32.mrf.mxu0
      %1439 = vmatprep.mubr.f32.mxu0 0.0
      %v1440 = vand.u32 %v464, 4294901760
      %1441 = vmatmul.mubr.f32.gmra.mxu0 %v1440
      %v1442 = vpop.f32.mrf.mxu0
      %v1443 = vadd.f32 %v1236, %v1442
      %v1444 = vpop.f32.mrf.mxu0
      %1445 = vmatprep.mubr.f32.mxu0 0.0
      %v1446 = vand.u32 %v467, 4294901760
      %1447 = vmatmul.mubr.f32.gmra.mxu0 %v1446
      %v1448 = vpop.f32.mrf.mxu0
      %v1449 = vadd.f32 %v1244, %v1448
      %v1450 = vpop.f32.mrf.mxu0
      %1451 = vmatprep.mubr.f32.mxu0 0.0
      %v1452 = vand.u32 %v470, 4294901760
      %1453 = vmatmul.mubr.f32.gmra.mxu0 %v1452
      %v1454 = vpop.f32.mrf.mxu0
      %v1455 = vadd.f32 %v1252, %v1454
      %v1456 = vpop.f32.mrf.mxu0
      %1457 = vmatprep.mubr.f32.mxu0 0.0
      %v1458 = vand.u32 %v473, 4294901760
      %1459 = vmatmul.mubr.f32.gmra.mxu0 %v1458
      %v1460 = vpop.f32.mrf.mxu0
      %v1461 = vadd.f32 %v1260, %v1460
      %v1462 = vpop.f32.mrf.mxu0
      %1463 = vmatprep.mubr.f32.mxu0 0.0
      %v1464 = vand.u32 %v476, 4294901760
      %1465 = vmatmul.mubr.f32.gmra.mxu0 %v1464
      %v1466 = vpop.f32.mrf.mxu0
      %v1467 = vadd.f32 %v1268, %v1466
      %v1468 = vpop.f32.mrf.mxu0
      %1469 = vmatprep.mubr.f32.mxu0 0.0
      %v1470 = vand.u32 %v479, 4294901760
      %1471 = vmatmul.mubr.f32.gmra.mxu0 %v1470
      %v1472 = vpop.f32.mrf.mxu0
      %v1473 = vadd.f32 %v1276, %v1472
      %v1474 = vpop.f32.mrf.mxu0
      %1475 = vmatprep.mubr.f32.mxu0 0.0
      %v1476 = vand.u32 %v482, 4294901760
      %1477 = vmatmul.mubr.f32.gmra.mxu0 %v1476
      %v1478 = vpop.f32.mrf.mxu0
      %v1479 = vadd.f32 %v1284, %v1478
      %v1480 = vpop.f32.mrf.mxu0
      %1481 = vmatprep.mubr.f32.mxu0 0.0
      %v1482 = vand.u32 %v485, 4294901760
      %1483 = vmatmul.mubr.f32.gmra.mxu0 %v1482
      %v1484 = vpop.f32.mrf.mxu0
      %v1485 = vadd.f32 %v1292, %v1484
      %v1486 = vpop.f32.mrf.mxu0
      %1487 = vmatprep.mubr.f32.mxu0 0.0
      %v1488 = vand.u32 %v488, 4294901760
      %1489 = vmatmul.mubr.f32.gmra.mxu0 %v1488
      %v1490 = vpop.f32.mrf.mxu0
      %v1491 = vadd.f32 %v1300, %v1490
      %v1492 = vpop.f32.mrf.mxu0
      %1493 = vmatprep.mubr.f32.mxu0 0.0
      %v1494 = vand.u32 %v491, 4294901760
      %1495 = vmatmul.mubr.f32.gmra.mxu0 %v1494
      %v1496 = vpop.f32.mrf.mxu0
      %v1497 = vadd.f32 %v1308, %v1496
      %v1498 = vpop.f32.mrf.mxu0
      %1499 = vmatprep.mubr.f32.mxu0 0.0
      %v1500 = vand.u32 %v494, 4294901760
      %1501 = vmatmul.mubr.f32.gmra.mxu0 %v1500
      %v1502 = vpop.f32.mrf.mxu0
      %v1503 = vadd.f32 %v1316, %v1502
      %v1504 = vpop.f32.mrf.mxu0
      %1505 = vmatprep.mubr.f32.mxu0 0.0
      %v1506 = vand.u32 %v497, 4294901760
      %1507 = vmatmul.mubr.f32.gmra.mxu0 %v1506
      %v1508 = vpop.f32.mrf.mxu0
      %v1509 = vadd.f32 %v1324, %v1508
      %v1510 = vpop.f32.mrf.mxu0
      %1511 = vdwg.mxu0
      %1512 = vmatprep.subr.mxu0 0.0
      %1513 = vmatpush1.msra.mxu0 0.0
      %1514 = vmatprep.subr.mxu0 0.0
      %1515 = vmatpush1.msra.mxu0 0.0
      %1516 = vmatprep.subr.mxu0 0.0
      %1517 = vmatpush1.msra.mxu0 0.0
      %1518 = vmatprep.subr.mxu0 0.0
      %1519 = vmatpush1.msra.mxu0 0.0
      %1520 = vmatprep.subr.mxu0 0.0
      %1521 = vmatpush1.msra.mxu0 0.0
      %1522 = vmatprep.subr.mxu0 0.0
      %1523 = vmatpush1.msra.mxu0 0.0
      %1524 = vmatprep.subr.mxu0 0.0
      %1525 = vmatpush1.msra.mxu0 0.0
      %1526 = vmatprep.subr.mxu0 0.0
      %1527 = vmatpush1.msra.mxu0 0.0
      %1528 = vmatprep.subr.mxu0 0.0
      %v1529 = vand.u32 %v318, 4294901760
      %1530 = vmatpush1.msra.mxu0 %v1529
      %1531 = vmatprep.subr.mxu0 0.0
      %v1532 = vand.u32 %v317, 4294901760
      %1533 = vmatpush1.msra.mxu0 %v1532
      %1534 = vmatprep.subr.mxu0 0.0
      %v1535 = vand.u32 %v316, 4294901760
      %1536 = vmatpush1.msra.mxu0 %v1535
      %1537 = vmatprep.subr.mxu0 0.0
      %v1538 = vand.u32 %v315, 4294901760
      %1539 = vmatpush1.msra.mxu0 %v1538
      %1540 = vmatprep.subr.mxu0 0.0
      %v1541 = vand.u32 %v314, 4294901760
      %1542 = vmatpush1.msra.mxu0 %v1541
      %1543 = vmatprep.subr.mxu0 0.0
      %v1544 = vand.u32 %v313, 4294901760
      %1545 = vmatpush1.msra.mxu0 %v1544
      %1546 = vmatprep.subr.mxu0 0.0
      %v1547 = vand.u32 %v312, 4294901760
      %1548 = vmatpush1.msra.mxu0 %v1547
      %1549 = vmatprep.subr.mxu0 0.0
      %v1550 = vand.u32 %v311, 4294901760
      %1551 = vmatpush1.msra.mxu0 %v1550
      %1552 = vmatprep.subr.mxu0 0.0
      %1553 = vmatpush2.msra.mxu0 0.0
      %1554 = vmatprep.subr.mxu0 0.0
      %1555 = vmatpush2.msra.mxu0 0.0
      %1556 = vmatprep.subr.mxu0 0.0
      %1557 = vmatpush2.msra.mxu0 0.0
      %1558 = vmatprep.subr.mxu0 0.0
      %1559 = vmatpush2.msra.mxu0 0.0
      %1560 = vmatprep.subr.mxu0 0.0
      %1561 = vmatpush2.msra.mxu0 0.0
      %1562 = vmatprep.subr.mxu0 0.0
      %1563 = vmatpush2.msra.mxu0 0.0
      %1564 = vmatprep.subr.mxu0 0.0
      %1565 = vmatpush2.msra.mxu0 0.0
      %1566 = vmatprep.subr.mxu0 0.0
      %1567 = vmatpush2.msra.mxu0 0.0
      %1568 = vmatprep.subr.mxu0 0.0
      %1569 = vmatpush2.msra.mxu0 0.0
      %1570 = vmatprep.subr.mxu0 0.0
      %1571 = vmatpush2.msra.mxu0 0.0
      %1572 = vmatprep.subr.mxu0 0.0
      %1573 = vmatpush2.msra.mxu0 0.0
      %1574 = vmatprep.subr.mxu0 0.0
      %1575 = vmatpush2.msra.mxu0 0.0
      %1576 = vmatprep.subr.mxu0 0.0
      %1577 = vmatpush2.msra.mxu0 0.0
      %1578 = vmatprep.subr.mxu0 0.0
      %1579 = vmatpush2.msra.mxu0 0.0
      %1580 = vmatprep.subr.mxu0 0.0
      %1581 = vmatpush2.msra.mxu0 0.0
      %1582 = vmatprep.subr.mxu0 0.0
      %1583 = vmatpush2.msra.mxu0 0.0
      %1584 = vmatprep.mubr.f32.mxu0 0.0
      %v1585 = vand.u32 %v452, 4294901760
      %1586 = vmatmul.mubr.f32.gmra.mxu0 %v1585
      %v1587 = vpop.f32.mrf.mxu0
      %v1588 = vadd.f32 %v1419, %v1587
      %v1589 = vpop.f32.mrf.mxu0
      %1590 = vmatprep.mubr.f32.mxu0 0.0
      %v1591 = vand.u32 %v455, 4294901760
      %1592 = vmatmul.mubr.f32.gmra.mxu0 %v1591
      %v1593 = vpop.f32.mrf.mxu0
      %v1594 = vadd.f32 %v1425, %v1593
      %v1595 = vpop.f32.mrf.mxu0
      %1596 = vmatprep.mubr.f32.mxu0 0.0
      %v1597 = vand.u32 %v458, 4294901760
      %1598 = vmatmul.mubr.f32.gmra.mxu0 %v1597
      %v1599 = vpop.f32.mrf.mxu0
      %v1600 = vadd.f32 %v1431, %v1599
      %v1601 = vpop.f32.mrf.mxu0
      %1602 = vmatprep.mubr.f32.mxu0 0.0
      %v1603 = vand.u32 %v461, 4294901760
      %1604 = vmatmul.mubr.f32.gmra.mxu0 %v1603
      %v1605 = vpop.f32.mrf.mxu0
      %v1606 = vadd.f32 %v1437, %v1605
      %v1607 = vpop.f32.mrf.mxu0
      %1608 = vmatprep.mubr.f32.mxu0 0.0
      %v1609 = vand.u32 %v464, 4294901760
      %1610 = vmatmul.mubr.f32.gmra.mxu0 %v1609
      %v1611 = vpop.f32.mrf.mxu0
      %v1612 = vadd.f32 %v1443, %v1611
      %v1613 = vpop.f32.mrf.mxu0
      %1614 = vmatprep.mubr.f32.mxu0 0.0
      %v1615 = vand.u32 %v467, 4294901760
      %1616 = vmatmul.mubr.f32.gmra.mxu0 %v1615
      %v1617 = vpop.f32.mrf.mxu0
      %v1618 = vadd.f32 %v1449, %v1617
      %v1619 = vpop.f32.mrf.mxu0
      %1620 = vmatprep.mubr.f32.mxu0 0.0
      %v1621 = vand.u32 %v470, 4294901760
      %1622 = vmatmul.mubr.f32.gmra.mxu0 %v1621
      %v1623 = vpop.f32.mrf.mxu0
      %v1624 = vadd.f32 %v1455, %v1623
      %v1625 = vpop.f32.mrf.mxu0
      %1626 = vmatprep.mubr.f32.mxu0 0.0
      %v1627 = vand.u32 %v473, 4294901760
      %1628 = vmatmul.mubr.f32.gmra.mxu0 %v1627
      %v1629 = vpop.f32.mrf.mxu0
      %v1630 = vadd.f32 %v1461, %v1629
      %v1631 = vpop.f32.mrf.mxu0
      %1632 = vmatprep.mubr.f32.mxu0 0.0
      %v1633 = vand.u32 %v476, 4294901760
      %1634 = vmatmul.mubr.f32.gmra.mxu0 %v1633
      %v1635 = vpop.f32.mrf.mxu0
      %v1636 = vadd.f32 %v1467, %v1635
      %v1637 = vpop.f32.mrf.mxu0
      %1638 = vmatprep.mubr.f32.mxu0 0.0
      %v1639 = vand.u32 %v479, 4294901760
      %1640 = vmatmul.mubr.f32.gmra.mxu0 %v1639
      %v1641 = vpop.f32.mrf.mxu0
      %v1642 = vadd.f32 %v1473, %v1641
      %v1643 = vpop.f32.mrf.mxu0
      %1644 = vmatprep.mubr.f32.mxu0 0.0
      %v1645 = vand.u32 %v482, 4294901760
      %1646 = vmatmul.mubr.f32.gmra.mxu0 %v1645
      %v1647 = vpop.f32.mrf.mxu0
      %v1648 = vadd.f32 %v1479, %v1647
      %v1649 = vpop.f32.mrf.mxu0
      %1650 = vmatprep.mubr.f32.mxu0 0.0
      %v1651 = vand.u32 %v485, 4294901760
      %1652 = vmatmul.mubr.f32.gmra.mxu0 %v1651
      %v1653 = vpop.f32.mrf.mxu0
      %v1654 = vadd.f32 %v1485, %v1653
      %v1655 = vpop.f32.mrf.mxu0
      %1656 = vmatprep.mubr.f32.mxu0 0.0
      %v1657 = vand.u32 %v488, 4294901760
      %1658 = vmatmul.mubr.f32.gmra.mxu0 %v1657
      %v1659 = vpop.f32.mrf.mxu0
      %v1660 = vadd.f32 %v1491, %v1659
      %v1661 = vpop.f32.mrf.mxu0
      %1662 = vmatprep.mubr.f32.mxu0 0.0
      %v1663 = vand.u32 %v491, 4294901760
      %1664 = vmatmul.mubr.f32.gmra.mxu0 %v1663
      %v1665 = vpop.f32.mrf.mxu0
      %v1666 = vadd.f32 %v1497, %v1665
      %v1667 = vpop.f32.mrf.mxu0
      %1668 = vmatprep.mubr.f32.mxu0 0.0
      %v1669 = vand.u32 %v494, 4294901760
      %1670 = vmatmul.mubr.f32.gmra.mxu0 %v1669
      %v1671 = vpop.f32.mrf.mxu0
      %v1672 = vadd.f32 %v1503, %v1671
      %v1673 = vpop.f32.mrf.mxu0
      %1674 = vmatprep.mubr.f32.mxu0 0.0
      %v1675 = vand.u32 %v497, 4294901760
      %1676 = vmatmul.mubr.f32.gmra.mxu0 %v1675
      %v1677 = vpop.f32.mrf.mxu0
      %v1678 = vadd.f32 %v1509, %v1677
      %v1679 = vpop.f32.mrf.mxu0
      %1680 = vdwg.mxu0
      %v1681 = vsub.f32 1.0, %v335
      %v1682 = vsub.f32 1.0, %v336
      %v1683 = vsub.f32 1.0, %v337
      %v1684 = vsub.f32 1.0, %v338
      %v1685 = vsub.f32 1.0, %v339
      %v1686 = vsub.f32 1.0, %v340
      %v1687 = vsub.f32 1.0, %v341
      %v1688 = vsub.f32 1.0, %v342
      %v1689 = vsub.f32 1.0, %v343
      %v1690 = vsub.f32 1.0, %v344
      %v1691 = vsub.f32 1.0, %v345
      %v1692 = vsub.f32 1.0, %v346
      %v1693 = vsub.f32 1.0, %v347
      %v1694 = vsub.f32 1.0, %v348
      %v1695 = vsub.f32 1.0, %v349
      %v1696 = vsub.f32 1.0, %v350
      %1698 = vset.pattern.permute.xlu0 0
      %1699 = vperm.xlu0 %1698, %v1681
      %v1700 = vpop.permute.xlu0 %1699
      %1703 = vset.pattern.permute.xlu0 0
      %1704 = vperm.xlu0 %1703, %v1682
      %v1705 = vpop.permute.xlu0 %1704
      %1708 = vset.pattern.permute.xlu0 0
      %1709 = vperm.xlu0 %1708, %v1683
      %v1710 = vpop.permute.xlu0 %1709
      %1713 = vset.pattern.permute.xlu0 0
      %1714 = vperm.xlu0 %1713, %v1684
      %v1715 = vpop.permute.xlu0 %1714
      %1718 = vset.pattern.permute.xlu0 0
      %1719 = vperm.xlu0 %1718, %v1685
      %v1720 = vpop.permute.xlu0 %1719
      %1723 = vset.pattern.permute.xlu0 0
      %1724 = vperm.xlu0 %1723, %v1686
      %v1725 = vpop.permute.xlu0 %1724
      %1728 = vset.pattern.permute.xlu0 0
      %1729 = vperm.xlu0 %1728, %v1687
      %v1730 = vpop.permute.xlu0 %1729
      %1733 = vset.pattern.permute.xlu0 0
      %1734 = vperm.xlu0 %1733, %v1688
      %v1735 = vpop.permute.xlu0 %1734
      %1738 = vset.pattern.permute.xlu0 0
      %1739 = vperm.xlu0 %1738, %v1689
      %v1740 = vpop.permute.xlu0 %1739
      %1743 = vset.pattern.permute.xlu0 0
      %1744 = vperm.xlu0 %1743, %v1690
      %v1745 = vpop.permute.xlu0 %1744
      %1748 = vset.pattern.permute.xlu0 0
      %1749 = vperm.xlu0 %1748, %v1691
      %v1750 = vpop.permute.xlu0 %1749
      %1753 = vset.pattern.permute.xlu0 0
      %1754 = vperm.xlu0 %1753, %v1692
      %v1755 = vpop.permute.xlu0 %1754
      %1758 = vset.pattern.permute.xlu0 0
      %1759 = vperm.xlu0 %1758, %v1693
      %v1760 = vpop.permute.xlu0 %1759
      %1763 = vset.pattern.permute.xlu0 0
      %1764 = vperm.xlu0 %1763, %v1694
      %v1765 = vpop.permute.xlu0 %1764
      %1768 = vset.pattern.permute.xlu0 0
      %1769 = vperm.xlu0 %1768, %v1695
      %v1770 = vpop.permute.xlu0 %1769
      %1773 = vset.pattern.permute.xlu0 0
      %1774 = vperm.xlu0 %1773, %v1696
      %v1775 = vpop.permute.xlu0 %1774
      %v1777 = vmul.f32 %v1700, %v1588
      %v1778 = vmul.f32 %v1705, %v1594
      %v1779 = vmul.f32 %v1710, %v1600
      %v1780 = vmul.f32 %v1715, %v1606
      %v1781 = vmul.f32 %v1720, %v1612
      %v1782 = vmul.f32 %v1725, %v1618
      %v1783 = vmul.f32 %v1730, %v1624
      %v1784 = vmul.f32 %v1735, %v1630
      %v1785 = vmul.f32 %v1740, %v1636
      %v1786 = vmul.f32 %v1745, %v1642
      %v1787 = vmul.f32 %v1750, %v1648
      %v1788 = vmul.f32 %v1755, %v1654
      %v1789 = vmul.f32 %v1760, %v1660
      %v1790 = vmul.f32 %v1765, %v1666
      %v1791 = vmul.f32 %v1770, %v1672
      %v1792 = vmul.f32 %v1775, %v1678
      %1794 = vset.pattern.permute.xlu0 0
      %1795 = vperm.xlu0 %1794, %v335
      %v1796 = vpop.permute.xlu0 %1795
      %1799 = vset.pattern.permute.xlu0 0
      %1800 = vperm.xlu0 %1799, %v336
      %v1801 = vpop.permute.xlu0 %1800
      %1804 = vset.pattern.permute.xlu0 0
      %1805 = vperm.xlu0 %1804, %v337
      %v1806 = vpop.permute.xlu0 %1805
      %1809 = vset.pattern.permute.xlu0 0
      %1810 = vperm.xlu0 %1809, %v338
      %v1811 = vpop.permute.xlu0 %1810
      %1814 = vset.pattern.permute.xlu0 0
      %1815 = vperm.xlu0 %1814, %v339
      %v1816 = vpop.permute.xlu0 %1815
      %1819 = vset.pattern.permute.xlu0 0
      %1820 = vperm.xlu0 %1819, %v340
      %v1821 = vpop.permute.xlu0 %1820
      %1824 = vset.pattern.permute.xlu0 0
      %1825 = vperm.xlu0 %1824, %v341
      %v1826 = vpop.permute.xlu0 %1825
      %1829 = vset.pattern.permute.xlu0 0
      %1830 = vperm.xlu0 %1829, %v342
      %v1831 = vpop.permute.xlu0 %1830
      %1834 = vset.pattern.permute.xlu0 0
      %1835 = vperm.xlu0 %1834, %v343
      %v1836 = vpop.permute.xlu0 %1835
      %1839 = vset.pattern.permute.xlu0 0
      %1840 = vperm.xlu0 %1839, %v344
      %v1841 = vpop.permute.xlu0 %1840
      %1844 = vset.pattern.permute.xlu0 0
      %1845 = vperm.xlu0 %1844, %v345
      %v1846 = vpop.permute.xlu0 %1845
      %1849 = vset.pattern.permute.xlu0 0
      %1850 = vperm.xlu0 %1849, %v346
      %v1851 = vpop.permute.xlu0 %1850
      %1854 = vset.pattern.permute.xlu0 0
      %1855 = vperm.xlu0 %1854, %v347
      %v1856 = vpop.permute.xlu0 %1855
      %1859 = vset.pattern.permute.xlu0 0
      %1860 = vperm.xlu0 %1859, %v348
      %v1861 = vpop.permute.xlu0 %1860
      %1864 = vset.pattern.permute.xlu0 0
      %1865 = vperm.xlu0 %1864, %v349
      %v1866 = vpop.permute.xlu0 %1865
      %1869 = vset.pattern.permute.xlu0 0
      %1870 = vperm.xlu0 %1869, %v350
      %v1871 = vpop.permute.xlu0 %1870
      %v1873 = vmul.f32 %v1796, %v1588
      %v1874 = vmul.f32 %v1801, %v1594
      %v1875 = vmul.f32 %v1806, %v1600
      %v1876 = vmul.f32 %v1811, %v1606
      %v1877 = vmul.f32 %v1816, %v1612
      %v1878 = vmul.f32 %v1821, %v1618
      %v1879 = vmul.f32 %v1826, %v1624
      %v1880 = vmul.f32 %v1831, %v1630
      %v1881 = vmul.f32 %v1836, %v1636
      %v1882 = vmul.f32 %v1841, %v1642
      %v1883 = vmul.f32 %v1846, %v1648
      %v1884 = vmul.f32 %v1851, %v1654
      %v1885 = vmul.f32 %v1856, %v1660
      %v1886 = vmul.f32 %v1861, %v1666
      %v1887 = vmul.f32 %v1866, %v1672
      %v1888 = vmul.f32 %v1871, %v1678
      %1905 = vrot.lane.b32.xlu0 %v1873, 16
      %v1906 = vpop.permute.xlu0 %1905
      %1907 = vrot.lane.b32.xlu0 %v1874, 16
      %v1908 = vpop.permute.xlu0 %1907
      %1909 = vrot.lane.b32.xlu0 %v1875, 16
      %v1910 = vpop.permute.xlu0 %1909
      %1911 = vrot.lane.b32.xlu0 %v1876, 16
      %v1912 = vpop.permute.xlu0 %1911
      %1913 = vrot.lane.b32.xlu0 %v1877, 16
      %v1914 = vpop.permute.xlu0 %1913
      %1915 = vrot.lane.b32.xlu0 %v1878, 16
      %v1916 = vpop.permute.xlu0 %1915
      %1917 = vrot.lane.b32.xlu0 %v1879, 16
      %v1918 = vpop.permute.xlu0 %1917
      %1919 = vrot.lane.b32.xlu0 %v1880, 16
      %v1920 = vpop.permute.xlu0 %1919
      %1921 = vrot.lane.b32.xlu0 %v1881, 16
      %v1922 = vpop.permute.xlu0 %1921
      %1923 = vrot.lane.b32.xlu0 %v1882, 16
      %v1924 = vpop.permute.xlu0 %1923
      %1925 = vrot.lane.b32.xlu0 %v1883, 16
      %v1926 = vpop.permute.xlu0 %1925
      %1927 = vrot.lane.b32.xlu0 %v1884, 16
      %v1928 = vpop.permute.xlu0 %1927
      %1929 = vrot.lane.b32.xlu0 %v1885, 16
      %v1930 = vpop.permute.xlu0 %1929
      %1931 = vrot.lane.b32.xlu0 %v1886, 16
      %v1932 = vpop.permute.xlu0 %1931
      %1933 = vrot.lane.b32.xlu0 %v1887, 16
      %v1934 = vpop.permute.xlu0 %1933
      %1935 = vrot.lane.b32.xlu0 %v1888, 16
      %v1936 = vpop.permute.xlu0 %1935
      %vm1953 = vcmask 130048
      %v1954 = vsel %vm1953, %v1777, %v1906
      %v1955 = vsel %vm1953, %v1778, %v1908
      %v1956 = vsel %vm1953, %v1779, %v1910
      %v1957 = vsel %vm1953, %v1780, %v1912
      %v1958 = vsel %vm1953, %v1781, %v1914
      %v1959 = vsel %vm1953, %v1782, %v1916
      %v1960 = vsel %vm1953, %v1783, %v1918
      %v1961 = vsel %vm1953, %v1784, %v1920
      %v1962 = vsel %vm1953, %v1785, %v1922
      %v1963 = vsel %vm1953, %v1786, %v1924
      %v1964 = vsel %vm1953, %v1787, %v1926
      %v1965 = vsel %vm1953, %v1788, %v1928
      %v1966 = vsel %vm1953, %v1789, %v1930
      %v1967 = vsel %vm1953, %v1790, %v1932
      %v1968 = vsel %vm1953, %v1791, %v1934
      %v1969 = vsel %vm1953, %v1792, %v1936
      %v1970 = vld [vmem:[%s4] sm:$0xff]
      %v1971 = vld [vmem:[%s4 + $0x8] sm:$0xff]
      %v1972 = vld [vmem:[%s4 + $0x10] sm:$0xff]
      %v1973 = vld [vmem:[%s4 + $0x18] sm:$0xff]
      %vm1974 = vcmp.eq.s32.totalorder %v353, 32
      %v1975 = vsel %vm1974, 1, 0
      %v1976 = vcvt.s32.f32 %v1975
      %vm1977 = vcmask 261120
      %v1979 = vsel %vm1977, %v1954, 0
      %v1982 = vsel %vm1977, %v1955, 0
      %v1985 = vsel %vm1977, %v1956, 0
      %v1988 = vsel %vm1977, %v1957, 0
      %v1991 = vsel %vm1977, %v1958, 0
      %v1994 = vsel %vm1977, %v1959, 0
      %v1997 = vsel %vm1977, %v1960, 0
      %v2000 = vsel %vm1977, %v1961, 0
      %v2003 = vsel %vm1977, %v1962, 0
      %v2006 = vsel %vm1977, %v1963, 0
      %v2009 = vsel %vm1977, %v1964, 0
      %v2012 = vsel %vm1977, %v1965, 0
      %v2015 = vsel %vm1977, %v1966, 0
      %v2018 = vsel %vm1977, %v1967, 0
      %v2021 = vsel %vm1977, %v1968, 0
      %v2024 = vsel %vm1977, %v1969, 0
      %2026 = vmatprep.subr.mxu0 0.0
      %2027 = vmatpush1.msra.mxu0 0.0
      %2028 = vmatprep.subr.mxu0 0.0
      %2029 = vmatpush1.msra.mxu0 0.0
      %2030 = vmatprep.subr.mxu0 0.0
      %2031 = vmatpush1.msra.mxu0 0.0
      %2032 = vmatprep.subr.mxu0 0.0
      %2033 = vmatpush1.msra.mxu0 0.0
      %2034 = vmatprep.subr.mxu0 0.0
      %2035 = vmatpush1.msra.mxu0 0.0
      %2036 = vmatprep.subr.mxu0 0.0
      %2037 = vmatpush1.msra.mxu0 0.0
      %2038 = vmatprep.subr.mxu0 0.0
      %2039 = vmatpush1.msra.mxu0 0.0
      %2040 = vmatprep.subr.mxu0 0.0
      %2041 = vmatpush1.msra.mxu0 0.0
      %2042 = vmatprep.subr.mxu0 0.0
      %2043 = vmatpush1.msra.mxu0 0.0
      %2044 = vmatprep.subr.mxu0 0.0
      %2045 = vmatpush1.msra.mxu0 0.0
      %2046 = vmatprep.subr.mxu0 0.0
      %2047 = vmatpush1.msra.mxu0 0.0
      %2048 = vmatprep.subr.mxu0 0.0
      %2049 = vmatpush1.msra.mxu0 0.0
      %2050 = vmatprep.subr.mxu0 0.0
      %v2051 = vand.u32 %v1973, 4294901760
      %2052 = vmatpush1.msra.mxu0 %v2051
      %2053 = vmatprep.subr.mxu0 0.0
      %v2054 = vand.u32 %v1972, 4294901760
      %2055 = vmatpush1.msra.mxu0 %v2054
      %2056 = vmatprep.subr.mxu0 0.0
      %v2057 = vand.u32 %v1971, 4294901760
      %2058 = vmatpush1.msra.mxu0 %v2057
      %2059 = vmatprep.subr.mxu0 0.0
      %v2060 = vand.u32 %v1970, 4294901760
      %2061 = vmatpush1.msra.mxu0 %v2060
      %2062 = vmatprep.subr.mxu0 0.0
      %2063 = vmatpush2.msra.mxu0 0.0
      %2064 = vmatprep.subr.mxu0 0.0
      %2065 = vmatpush2.msra.mxu0 0.0
      %2066 = vmatprep.subr.mxu0 0.0
      %2067 = vmatpush2.msra.mxu0 0.0
      %2068 = vmatprep.subr.mxu0 0.0
      %2069 = vmatpush2.msra.mxu0 0.0
      %2070 = vmatprep.subr.mxu0 0.0
      %2071 = vmatpush2.msra.mxu0 0.0
      %2072 = vmatprep.subr.mxu0 0.0
      %2073 = vmatpush2.msra.mxu0 0.0
      %2074 = vmatprep.subr.mxu0 0.0
      %2075 = vmatpush2.msra.mxu0 0.0
      %2076 = vmatprep.subr.mxu0 0.0
      %2077 = vmatpush2.msra.mxu0 0.0
      %2078 = vmatprep.subr.mxu0 0.0
      %2079 = vmatpush2.msra.mxu0 0.0
      %2080 = vmatprep.subr.mxu0 0.0
      %2081 = vmatpush2.msra.mxu0 0.0
      %2082 = vmatprep.subr.mxu0 0.0
      %2083 = vmatpush2.msra.mxu0 0.0
      %2084 = vmatprep.subr.mxu0 0.0
      %2085 = vmatpush2.msra.mxu0 0.0
      %2086 = vmatprep.subr.mxu0 0.0
      %2087 = vmatpush2.msra.mxu0 0.0
      %2088 = vmatprep.subr.mxu0 0.0
      %2089 = vmatpush2.msra.mxu0 0.0
      %2090 = vmatprep.subr.mxu0 0.0
      %2091 = vmatpush2.msra.mxu0 0.0
      %2092 = vmatprep.subr.mxu0 0.0
      %2093 = vmatpush2.msra.mxu0 0.0
      %2094 = vmatprep.mubr.f32.mxu0 0.0
      %v2095 = vand.u32 %v1979, 4294901760
      %v2096 = vsub.f32 %v1979, %v2095
      %v2097 = vand.u32 %v2096, 4294901760
      %v2098 = vsub.f32 %v2096, %v2097
      %v2099 = vand.u32 %v2098, 4294901760
      %2100 = vmatmul.mubr.f32.gmra.mxu0 %v2099
      %v2101 = vpop.f32.mrf.mxu0
      %v2102 = vadd.f32 %v1976, %v2101
      %v2103 = vpop.f32.mrf.mxu0
      %2104 = vmatprep.mubr.f32.mxu0 0.0
      %v2105 = vand.u32 %v1982, 4294901760
      %v2106 = vsub.f32 %v1982, %v2105
      %v2107 = vand.u32 %v2106, 4294901760
      %v2108 = vsub.f32 %v2106, %v2107
      %v2109 = vand.u32 %v2108, 4294901760
      %2110 = vmatmul.mubr.f32.gmra.mxu0 %v2109
      %v2111 = vpop.f32.mrf.mxu0
      %v2112 = vadd.f32 %v1976, %v2111
      %v2113 = vpop.f32.mrf.mxu0
      %2114 = vmatprep.mubr.f32.mxu0 0.0
      %v2115 = vand.u32 %v1985, 4294901760
      %v2116 = vsub.f32 %v1985, %v2115
      %v2117 = vand.u32 %v2116, 4294901760
      %v2118 = vsub.f32 %v2116, %v2117
      %v2119 = vand.u32 %v2118, 4294901760
      %2120 = vmatmul.mubr.f32.gmra.mxu0 %v2119
      %v2121 = vpop.f32.mrf.mxu0
      %v2122 = vadd.f32 %v1976, %v2121
      %v2123 = vpop.f32.mrf.mxu0
      %2124 = vmatprep.mubr.f32.mxu0 0.0
      %v2125 = vand.u32 %v1988, 4294901760
      %v2126 = vsub.f32 %v1988, %v2125
      %v2127 = vand.u32 %v2126, 4294901760
      %v2128 = vsub.f32 %v2126, %v2127
      %v2129 = vand.u32 %v2128, 4294901760
      %2130 = vmatmul.mubr.f32.gmra.mxu0 %v2129
      %v2131 = vpop.f32.mrf.mxu0
      %v2132 = vadd.f32 %v1976, %v2131
      %v2133 = vpop.f32.mrf.mxu0
      %2134 = vmatprep.mubr.f32.mxu0 0.0
      %v2135 = vand.u32 %v1991, 4294901760
      %v2136 = vsub.f32 %v1991, %v2135
      %v2137 = vand.u32 %v2136, 4294901760
      %v2138 = vsub.f32 %v2136, %v2137
      %v2139 = vand.u32 %v2138, 4294901760
      %2140 = vmatmul.mubr.f32.gmra.mxu0 %v2139
      %v2141 = vpop.f32.mrf.mxu0
      %v2142 = vadd.f32 %v1976, %v2141
      %v2143 = vpop.f32.mrf.mxu0
      %2144 = vmatprep.mubr.f32.mxu0 0.0
      %v2145 = vand.u32 %v1994, 4294901760
      %v2146 = vsub.f32 %v1994, %v2145
      %v2147 = vand.u32 %v2146, 4294901760
      %v2148 = vsub.f32 %v2146, %v2147
      %v2149 = vand.u32 %v2148, 4294901760
      %2150 = vmatmul.mubr.f32.gmra.mxu0 %v2149
      %v2151 = vpop.f32.mrf.mxu0
      %v2152 = vadd.f32 %v1976, %v2151
      %v2153 = vpop.f32.mrf.mxu0
      %2154 = vmatprep.mubr.f32.mxu0 0.0
      %v2155 = vand.u32 %v1997, 4294901760
      %v2156 = vsub.f32 %v1997, %v2155
      %v2157 = vand.u32 %v2156, 4294901760
      %v2158 = vsub.f32 %v2156, %v2157
      %v2159 = vand.u32 %v2158, 4294901760
      %2160 = vmatmul.mubr.f32.gmra.mxu0 %v2159
      %v2161 = vpop.f32.mrf.mxu0
      %v2162 = vadd.f32 %v1976, %v2161
      %v2163 = vpop.f32.mrf.mxu0
      %2164 = vmatprep.mubr.f32.mxu0 0.0
      %v2165 = vand.u32 %v2000, 4294901760
      %v2166 = vsub.f32 %v2000, %v2165
      %v2167 = vand.u32 %v2166, 4294901760
      %v2168 = vsub.f32 %v2166, %v2167
      %v2169 = vand.u32 %v2168, 4294901760
      %2170 = vmatmul.mubr.f32.gmra.mxu0 %v2169
      %v2171 = vpop.f32.mrf.mxu0
      %v2172 = vadd.f32 %v1976, %v2171
      %v2173 = vpop.f32.mrf.mxu0
      %2174 = vmatprep.mubr.f32.mxu0 0.0
      %v2175 = vand.u32 %v2003, 4294901760
      %v2176 = vsub.f32 %v2003, %v2175
      %v2177 = vand.u32 %v2176, 4294901760
      %v2178 = vsub.f32 %v2176, %v2177
      %v2179 = vand.u32 %v2178, 4294901760
      %2180 = vmatmul.mubr.f32.gmra.mxu0 %v2179
      %v2181 = vpop.f32.mrf.mxu0
      %v2182 = vadd.f32 %v1976, %v2181
      %v2183 = vpop.f32.mrf.mxu0
      %2184 = vmatprep.mubr.f32.mxu0 0.0
      %v2185 = vand.u32 %v2006, 4294901760
      %v2186 = vsub.f32 %v2006, %v2185
      %v2187 = vand.u32 %v2186, 4294901760
      %v2188 = vsub.f32 %v2186, %v2187
      %v2189 = vand.u32 %v2188, 4294901760
      %2190 = vmatmul.mubr.f32.gmra.mxu0 %v2189
      %v2191 = vpop.f32.mrf.mxu0
      %v2192 = vadd.f32 %v1976, %v2191
      %v2193 = vpop.f32.mrf.mxu0
      %2194 = vmatprep.mubr.f32.mxu0 0.0
      %v2195 = vand.u32 %v2009, 4294901760
      %v2196 = vsub.f32 %v2009, %v2195
      %v2197 = vand.u32 %v2196, 4294901760
      %v2198 = vsub.f32 %v2196, %v2197
      %v2199 = vand.u32 %v2198, 4294901760
      %2200 = vmatmul.mubr.f32.gmra.mxu0 %v2199
      %v2201 = vpop.f32.mrf.mxu0
      %v2202 = vadd.f32 %v1976, %v2201
      %v2203 = vpop.f32.mrf.mxu0
      %2204 = vmatprep.mubr.f32.mxu0 0.0
      %v2205 = vand.u32 %v2012, 4294901760
      %v2206 = vsub.f32 %v2012, %v2205
      %v2207 = vand.u32 %v2206, 4294901760
      %v2208 = vsub.f32 %v2206, %v2207
      %v2209 = vand.u32 %v2208, 4294901760
      %2210 = vmatmul.mubr.f32.gmra.mxu0 %v2209
      %v2211 = vpop.f32.mrf.mxu0
      %v2212 = vadd.f32 %v1976, %v2211
      %v2213 = vpop.f32.mrf.mxu0
      %2214 = vmatprep.mubr.f32.mxu0 0.0
      %v2215 = vand.u32 %v2015, 4294901760
      %v2216 = vsub.f32 %v2015, %v2215
      %v2217 = vand.u32 %v2216, 4294901760
      %v2218 = vsub.f32 %v2216, %v2217
      %v2219 = vand.u32 %v2218, 4294901760
      %2220 = vmatmul.mubr.f32.gmra.mxu0 %v2219
      %v2221 = vpop.f32.mrf.mxu0
      %v2222 = vadd.f32 %v1976, %v2221
      %v2223 = vpop.f32.mrf.mxu0
      %2224 = vmatprep.mubr.f32.mxu0 0.0
      %v2225 = vand.u32 %v2018, 4294901760
      %v2226 = vsub.f32 %v2018, %v2225
      %v2227 = vand.u32 %v2226, 4294901760
      %v2228 = vsub.f32 %v2226, %v2227
      %v2229 = vand.u32 %v2228, 4294901760
      %2230 = vmatmul.mubr.f32.gmra.mxu0 %v2229
      %v2231 = vpop.f32.mrf.mxu0
      %v2232 = vadd.f32 %v1976, %v2231
      %v2233 = vpop.f32.mrf.mxu0
      %2234 = vmatprep.mubr.f32.mxu0 0.0
      %v2235 = vand.u32 %v2021, 4294901760
      %v2236 = vsub.f32 %v2021, %v2235
      %v2237 = vand.u32 %v2236, 4294901760
      %v2238 = vsub.f32 %v2236, %v2237
      %v2239 = vand.u32 %v2238, 4294901760
      %2240 = vmatmul.mubr.f32.gmra.mxu0 %v2239
      %v2241 = vpop.f32.mrf.mxu0
      %v2242 = vadd.f32 %v1976, %v2241
      %v2243 = vpop.f32.mrf.mxu0
      %2244 = vmatprep.mubr.f32.mxu0 0.0
      %v2245 = vand.u32 %v2024, 4294901760
      %v2246 = vsub.f32 %v2024, %v2245
      %v2247 = vand.u32 %v2246, 4294901760
      %v2248 = vsub.f32 %v2246, %v2247
      %v2249 = vand.u32 %v2248, 4294901760
      %2250 = vmatmul.mubr.f32.gmra.mxu0 %v2249
      %v2251 = vpop.f32.mrf.mxu0
      %v2252 = vadd.f32 %v1976, %v2251
      %v2253 = vpop.f32.mrf.mxu0
      %2254 = vdwg.mxu0
      %2255 = vmatprep.subr.mxu0 0.0
      %2256 = vmatpush1.msra.mxu0 0.0
      %2257 = vmatprep.subr.mxu0 0.0
      %2258 = vmatpush1.msra.mxu0 0.0
      %2259 = vmatprep.subr.mxu0 0.0
      %2260 = vmatpush1.msra.mxu0 0.0
      %2261 = vmatprep.subr.mxu0 0.0
      %2262 = vmatpush1.msra.mxu0 0.0
      %2263 = vmatprep.subr.mxu0 0.0
      %2264 = vmatpush1.msra.mxu0 0.0
      %2265 = vmatprep.subr.mxu0 0.0
      %2266 = vmatpush1.msra.mxu0 0.0
      %2267 = vmatprep.subr.mxu0 0.0
      %2268 = vmatpush1.msra.mxu0 0.0
      %2269 = vmatprep.subr.mxu0 0.0
      %2270 = vmatpush1.msra.mxu0 0.0
      %2271 = vmatprep.subr.mxu0 0.0
      %2272 = vmatpush1.msra.mxu0 0.0
      %2273 = vmatprep.subr.mxu0 0.0
      %2274 = vmatpush1.msra.mxu0 0.0
      %2275 = vmatprep.subr.mxu0 0.0
      %2276 = vmatpush1.msra.mxu0 0.0
      %2277 = vmatprep.subr.mxu0 0.0
      %2278 = vmatpush1.msra.mxu0 0.0
      %2279 = vmatprep.subr.mxu0 0.0
      %v2280 = vand.u32 %v1973, 4294901760
      %v2281 = vsub.f32 %v1973, %v2280
      %v2282 = vand.u32 %v2281, 4294901760
      %v2283 = vsub.f32 %v2281, %v2282
      %v2284 = vand.u32 %v2283, 4294901760
      %2285 = vmatpush1.msra.mxu0 %v2284
      %2286 = vmatprep.subr.mxu0 0.0
      %v2287 = vand.u32 %v1972, 4294901760
      %v2288 = vsub.f32 %v1972, %v2287
      %v2289 = vand.u32 %v2288, 4294901760
      %v2290 = vsub.f32 %v2288, %v2289
      %v2291 = vand.u32 %v2290, 4294901760
      %2292 = vmatpush1.msra.mxu0 %v2291
      %2293 = vmatprep.subr.mxu0 0.0
      %v2294 = vand.u32 %v1971, 4294901760
      %v2295 = vsub.f32 %v1971, %v2294
      %v2296 = vand.u32 %v2295, 4294901760
      %v2297 = vsub.f32 %v2295, %v2296
      %v2298 = vand.u32 %v2297, 4294901760
      %2299 = vmatpush1.msra.mxu0 %v2298
      %2300 = vmatprep.subr.mxu0 0.0
      %v2301 = vand.u32 %v1970, 4294901760
      %v2302 = vsub.f32 %v1970, %v2301
      %v2303 = vand.u32 %v2302, 4294901760
      %v2304 = vsub.f32 %v2302, %v2303
      %v2305 = vand.u32 %v2304, 4294901760
      %2306 = vmatpush1.msra.mxu0 %v2305
      %2307 = vmatprep.subr.mxu0 0.0
      %2308 = vmatpush2.msra.mxu0 0.0
      %2309 = vmatprep.subr.mxu0 0.0
      %2310 = vmatpush2.msra.mxu0 0.0
      %2311 = vmatprep.subr.mxu0 0.0
      %2312 = vmatpush2.msra.mxu0 0.0
      %2313 = vmatprep.subr.mxu0 0.0
      %2314 = vmatpush2.msra.mxu0 0.0
      %2315 = vmatprep.subr.mxu0 0.0
      %2316 = vmatpush2.msra.mxu0 0.0
      %2317 = vmatprep.subr.mxu0 0.0
      %2318 = vmatpush2.msra.mxu0 0.0
      %2319 = vmatprep.subr.mxu0 0.0
      %2320 = vmatpush2.msra.mxu0 0.0
      %2321 = vmatprep.subr.mxu0 0.0
      %2322 = vmatpush2.msra.mxu0 0.0
      %2323 = vmatprep.subr.mxu0 0.0
      %2324 = vmatpush2.msra.mxu0 0.0
      %2325 = vmatprep.subr.mxu0 0.0
      %2326 = vmatpush2.msra.mxu0 0.0
      %2327 = vmatprep.subr.mxu0 0.0
      %2328 = vmatpush2.msra.mxu0 0.0
      %2329 = vmatprep.subr.mxu0 0.0
      %2330 = vmatpush2.msra.mxu0 0.0
      %2331 = vmatprep.subr.mxu0 0.0
      %2332 = vmatpush2.msra.mxu0 0.0
      %2333 = vmatprep.subr.mxu0 0.0
      %2334 = vmatpush2.msra.mxu0 0.0
      %2335 = vmatprep.subr.mxu0 0.0
      %2336 = vmatpush2.msra.mxu0 0.0
      %2337 = vmatprep.subr.mxu0 0.0
      %2338 = vmatpush2.msra.mxu0 0.0
      %2339 = vmatprep.mubr.f32.mxu0 0.0
      %v2340 = vand.u32 %v1979, 4294901760
      %2341 = vmatmul.mubr.f32.gmra.mxu0 %v2340
      %v2342 = vpop.f32.mrf.mxu0
      %v2343 = vadd.f32 %v2102, %v2342
      %v2344 = vpop.f32.mrf.mxu0
      %2345 = vmatprep.mubr.f32.mxu0 0.0
      %v2346 = vand.u32 %v1982, 4294901760
      %2347 = vmatmul.mubr.f32.gmra.mxu0 %v2346
      %v2348 = vpop.f32.mrf.mxu0
      %v2349 = vadd.f32 %v2112, %v2348
      %v2350 = vpop.f32.mrf.mxu0
      %2351 = vmatprep.mubr.f32.mxu0 0.0
      %v2352 = vand.u32 %v1985, 4294901760
      %2353 = vmatmul.mubr.f32.gmra.mxu0 %v2352
      %v2354 = vpop.f32.mrf.mxu0
      %v2355 = vadd.f32 %v2122, %v2354
      %v2356 = vpop.f32.mrf.mxu0
      %2357 = vmatprep.mubr.f32.mxu0 0.0
      %v2358 = vand.u32 %v1988, 4294901760
      %2359 = vmatmul.mubr.f32.gmra.mxu0 %v2358
      %v2360 = vpop.f32.mrf.mxu0
      %v2361 = vadd.f32 %v2132, %v2360
      %v2362 = vpop.f32.mrf.mxu0
      %2363 = vmatprep.mubr.f32.mxu0 0.0
      %v2364 = vand.u32 %v1991, 4294901760
      %2365 = vmatmul.mubr.f32.gmra.mxu0 %v2364
      %v2366 = vpop.f32.mrf.mxu0
      %v2367 = vadd.f32 %v2142, %v2366
      %v2368 = vpop.f32.mrf.mxu0
      %2369 = vmatprep.mubr.f32.mxu0 0.0
      %v2370 = vand.u32 %v1994, 4294901760
      %2371 = vmatmul.mubr.f32.gmra.mxu0 %v2370
      %v2372 = vpop.f32.mrf.mxu0
      %v2373 = vadd.f32 %v2152, %v2372
      %v2374 = vpop.f32.mrf.mxu0
      %2375 = vmatprep.mubr.f32.mxu0 0.0
      %v2376 = vand.u32 %v1997, 4294901760
      %2377 = vmatmul.mubr.f32.gmra.mxu0 %v2376
      %v2378 = vpop.f32.mrf.mxu0
      %v2379 = vadd.f32 %v2162, %v2378
      %v2380 = vpop.f32.mrf.mxu0
      %2381 = vmatprep.mubr.f32.mxu0 0.0
      %v2382 = vand.u32 %v2000, 4294901760
      %2383 = vmatmul.mubr.f32.gmra.mxu0 %v2382
      %v2384 = vpop.f32.mrf.mxu0
      %v2385 = vadd.f32 %v2172, %v2384
      %v2386 = vpop.f32.mrf.mxu0
      %2387 = vmatprep.mubr.f32.mxu0 0.0
      %v2388 = vand.u32 %v2003, 4294901760
      %2389 = vmatmul.mubr.f32.gmra.mxu0 %v2388
      %v2390 = vpop.f32.mrf.mxu0
      %v2391 = vadd.f32 %v2182, %v2390
      %v2392 = vpop.f32.mrf.mxu0
      %2393 = vmatprep.mubr.f32.mxu0 0.0
      %v2394 = vand.u32 %v2006, 4294901760
      %2395 = vmatmul.mubr.f32.gmra.mxu0 %v2394
      %v2396 = vpop.f32.mrf.mxu0
      %v2397 = vadd.f32 %v2192, %v2396
      %v2398 = vpop.f32.mrf.mxu0
      %2399 = vmatprep.mubr.f32.mxu0 0.0
      %v2400 = vand.u32 %v2009, 4294901760
      %2401 = vmatmul.mubr.f32.gmra.mxu0 %v2400
      %v2402 = vpop.f32.mrf.mxu0
      %v2403 = vadd.f32 %v2202, %v2402
      %v2404 = vpop.f32.mrf.mxu0
      %2405 = vmatprep.mubr.f32.mxu0 0.0
      %v2406 = vand.u32 %v2012, 4294901760
      %2407 = vmatmul.mubr.f32.gmra.mxu0 %v2406
      %v2408 = vpop.f32.mrf.mxu0
      %v2409 = vadd.f32 %v2212, %v2408
      %v2410 = vpop.f32.mrf.mxu0
      %2411 = vmatprep.mubr.f32.mxu0 0.0
      %v2412 = vand.u32 %v2015, 4294901760
      %2413 = vmatmul.mubr.f32.gmra.mxu0 %v2412
      %v2414 = vpop.f32.mrf.mxu0
      %v2415 = vadd.f32 %v2222, %v2414
      %v2416 = vpop.f32.mrf.mxu0
      %2417 = vmatprep.mubr.f32.mxu0 0.0
      %v2418 = vand.u32 %v2018, 4294901760
      %2419 = vmatmul.mubr.f32.gmra.mxu0 %v2418
      %v2420 = vpop.f32.mrf.mxu0
      %v2421 = vadd.f32 %v2232, %v2420
      %v2422 = vpop.f32.mrf.mxu0
      %2423 = vmatprep.mubr.f32.mxu0 0.0
      %v2424 = vand.u32 %v2021, 4294901760
      %2425 = vmatmul.mubr.f32.gmra.mxu0 %v2424
      %v2426 = vpop.f32.mrf.mxu0
      %v2427 = vadd.f32 %v2242, %v2426
      %v2428 = vpop.f32.mrf.mxu0
      %2429 = vmatprep.mubr.f32.mxu0 0.0
      %v2430 = vand.u32 %v2024, 4294901760
      %2431 = vmatmul.mubr.f32.gmra.mxu0 %v2430
      %v2432 = vpop.f32.mrf.mxu0
      %v2433 = vadd.f32 %v2252, %v2432
      %v2434 = vpop.f32.mrf.mxu0
      %2435 = vdwg.mxu0
      %2436 = vmatprep.subr.mxu0 0.0
      %2437 = vmatpush1.msra.mxu0 0.0
      %2438 = vmatprep.subr.mxu0 0.0
      %2439 = vmatpush1.msra.mxu0 0.0
      %2440 = vmatprep.subr.mxu0 0.0
      %2441 = vmatpush1.msra.mxu0 0.0
      %2442 = vmatprep.subr.mxu0 0.0
      %2443 = vmatpush1.msra.mxu0 0.0
      %2444 = vmatprep.subr.mxu0 0.0
      %2445 = vmatpush1.msra.mxu0 0.0
      %2446 = vmatprep.subr.mxu0 0.0
      %2447 = vmatpush1.msra.mxu0 0.0
      %2448 = vmatprep.subr.mxu0 0.0
      %2449 = vmatpush1.msra.mxu0 0.0
      %2450 = vmatprep.subr.mxu0 0.0
      %2451 = vmatpush1.msra.mxu0 0.0
      %2452 = vmatprep.subr.mxu0 0.0
      %2453 = vmatpush1.msra.mxu0 0.0
      %2454 = vmatprep.subr.mxu0 0.0
      %2455 = vmatpush1.msra.mxu0 0.0
      %2456 = vmatprep.subr.mxu0 0.0
      %2457 = vmatpush1.msra.mxu0 0.0
      %2458 = vmatprep.subr.mxu0 0.0
      %2459 = vmatpush1.msra.mxu0 0.0
      %2460 = vmatprep.subr.mxu0 0.0
      %v2461 = vand.u32 %v1973, 4294901760
      %v2462 = vsub.f32 %v1973, %v2461
      %2463 = vmatpush1.msra.mxu0 %v2462
      %2464 = vmatprep.subr.mxu0 0.0
      %v2465 = vand.u32 %v1972, 4294901760
      %v2466 = vsub.f32 %v1972, %v2465
      %2467 = vmatpush1.msra.mxu0 %v2466
      %2468 = vmatprep.subr.mxu0 0.0
      %v2469 = vand.u32 %v1971, 4294901760
      %v2470 = vsub.f32 %v1971, %v2469
      %2471 = vmatpush1.msra.mxu0 %v2470
      %2472 = vmatprep.subr.mxu0 0.0
      %v2473 = vand.u32 %v1970, 4294901760
      %v2474 = vsub.f32 %v1970, %v2473
      %2475 = vmatpush1.msra.mxu0 %v2474
      %2476 = vmatprep.subr.mxu0 0.0
      %2477 = vmatpush2.msra.mxu0 0.0
      %2478 = vmatprep.subr.mxu0 0.0
      %2479 = vmatpush2.msra.mxu0 0.0
      %2480 = vmatprep.subr.mxu0 0.0
      %2481 = vmatpush2.msra.mxu0 0.0
      %2482 = vmatprep.subr.mxu0 0.0
      %2483 = vmatpush2.msra.mxu0 0.0
      %2484 = vmatprep.subr.mxu0 0.0
      %2485 = vmatpush2.msra.mxu0 0.0
      %2486 = vmatprep.subr.mxu0 0.0
      %2487 = vmatpush2.msra.mxu0 0.0
      %2488 = vmatprep.subr.mxu0 0.0
      %2489 = vmatpush2.msra.mxu0 0.0
      %2490 = vmatprep.subr.mxu0 0.0
      %2491 = vmatpush2.msra.mxu0 0.0
      %2492 = vmatprep.subr.mxu0 0.0
      %2493 = vmatpush2.msra.mxu0 0.0
      %2494 = vmatprep.subr.mxu0 0.0
      %2495 = vmatpush2.msra.mxu0 0.0
      %2496 = vmatprep.subr.mxu0 0.0
      %2497 = vmatpush2.msra.mxu0 0.0
      %2498 = vmatprep.subr.mxu0 0.0
      %2499 = vmatpush2.msra.mxu0 0.0
      %2500 = vmatprep.subr.mxu0 0.0
      %2501 = vmatpush2.msra.mxu0 0.0
      %2502 = vmatprep.subr.mxu0 0.0
      %2503 = vmatpush2.msra.mxu0 0.0
      %2504 = vmatprep.subr.mxu0 0.0
      %2505 = vmatpush2.msra.mxu0 0.0
      %2506 = vmatprep.subr.mxu0 0.0
      %2507 = vmatpush2.msra.mxu0 0.0
      %2508 = vmatprep.mubr.f32.mxu0 0.0
      %v2509 = vand.u32 %v1979, 4294901760
      %v2510 = vsub.f32 %v1979, %v2509
      %2511 = vmatmul.mubr.f32.gmra.mxu0 %v2510
      %v2512 = vpop.f32.mrf.mxu0
      %v2513 = vadd.f32 %v2343, %v2512
      %v2514 = vpop.f32.mrf.mxu0
      %2515 = vmatprep.mubr.f32.mxu0 0.0
      %v2516 = vand.u32 %v1982, 4294901760
      %v2517 = vsub.f32 %v1982, %v2516
      %2518 = vmatmul.mubr.f32.gmra.mxu0 %v2517
      %v2519 = vpop.f32.mrf.mxu0
      %v2520 = vadd.f32 %v2349, %v2519
      %v2521 = vpop.f32.mrf.mxu0
      %2522 = vmatprep.mubr.f32.mxu0 0.0
      %v2523 = vand.u32 %v1985, 4294901760
      %v2524 = vsub.f32 %v1985, %v2523
      %2525 = vmatmul.mubr.f32.gmra.mxu0 %v2524
      %v2526 = vpop.f32.mrf.mxu0
      %v2527 = vadd.f32 %v2355, %v2526
      %v2528 = vpop.f32.mrf.mxu0
      %2529 = vmatprep.mubr.f32.mxu0 0.0
      %v2530 = vand.u32 %v1988, 4294901760
      %v2531 = vsub.f32 %v1988, %v2530
      %2532 = vmatmul.mubr.f32.gmra.mxu0 %v2531
      %v2533 = vpop.f32.mrf.mxu0
      %v2534 = vadd.f32 %v2361, %v2533
      %v2535 = vpop.f32.mrf.mxu0
      %2536 = vmatprep.mubr.f32.mxu0 0.0
      %v2537 = vand.u32 %v1991, 4294901760
      %v2538 = vsub.f32 %v1991, %v2537
      %2539 = vmatmul.mubr.f32.gmra.mxu0 %v2538
      %v2540 = vpop.f32.mrf.mxu0
      %v2541 = vadd.f32 %v2367, %v2540
      %v2542 = vpop.f32.mrf.mxu0
      %2543 = vmatprep.mubr.f32.mxu0 0.0
      %v2544 = vand.u32 %v1994, 4294901760
      %v2545 = vsub.f32 %v1994, %v2544
      %2546 = vmatmul.mubr.f32.gmra.mxu0 %v2545
      %v2547 = vpop.f32.mrf.mxu0
      %v2548 = vadd.f32 %v2373, %v2547
      %v2549 = vpop.f32.mrf.mxu0
      %2550 = vmatprep.mubr.f32.mxu0 0.0
      %v2551 = vand.u32 %v1997, 4294901760
      %v2552 = vsub.f32 %v1997, %v2551
      %2553 = vmatmul.mubr.f32.gmra.mxu0 %v2552
      %v2554 = vpop.f32.mrf.mxu0
      %v2555 = vadd.f32 %v2379, %v2554
      %v2556 = vpop.f32.mrf.mxu0
      %2557 = vmatprep.mubr.f32.mxu0 0.0
      %v2558 = vand.u32 %v2000, 4294901760
      %v2559 = vsub.f32 %v2000, %v2558
      %2560 = vmatmul.mubr.f32.gmra.mxu0 %v2559
      %v2561 = vpop.f32.mrf.mxu0
      %v2562 = vadd.f32 %v2385, %v2561
      %v2563 = vpop.f32.mrf.mxu0
      %2564 = vmatprep.mubr.f32.mxu0 0.0
      %v2565 = vand.u32 %v2003, 4294901760
      %v2566 = vsub.f32 %v2003, %v2565
      %2567 = vmatmul.mubr.f32.gmra.mxu0 %v2566
      %v2568 = vpop.f32.mrf.mxu0
      %v2569 = vadd.f32 %v2391, %v2568
      %v2570 = vpop.f32.mrf.mxu0
      %2571 = vmatprep.mubr.f32.mxu0 0.0
      %v2572 = vand.u32 %v2006, 4294901760
      %v2573 = vsub.f32 %v2006, %v2572
      %2574 = vmatmul.mubr.f32.gmra.mxu0 %v2573
      %v2575 = vpop.f32.mrf.mxu0
      %v2576 = vadd.f32 %v2397, %v2575
      %v2577 = vpop.f32.mrf.mxu0
      %2578 = vmatprep.mubr.f32.mxu0 0.0
      %v2579 = vand.u32 %v2009, 4294901760
      %v2580 = vsub.f32 %v2009, %v2579
      %2581 = vmatmul.mubr.f32.gmra.mxu0 %v2580
      %v2582 = vpop.f32.mrf.mxu0
      %v2583 = vadd.f32 %v2403, %v2582
      %v2584 = vpop.f32.mrf.mxu0
      %2585 = vmatprep.mubr.f32.mxu0 0.0
      %v2586 = vand.u32 %v2012, 4294901760
      %v2587 = vsub.f32 %v2012, %v2586
      %2588 = vmatmul.mubr.f32.gmra.mxu0 %v2587
      %v2589 = vpop.f32.mrf.mxu0
      %v2590 = vadd.f32 %v2409, %v2589
      %v2591 = vpop.f32.mrf.mxu0
      %2592 = vmatprep.mubr.f32.mxu0 0.0
      %v2593 = vand.u32 %v2015, 4294901760
      %v2594 = vsub.f32 %v2015, %v2593
      %2595 = vmatmul.mubr.f32.gmra.mxu0 %v2594
      %v2596 = vpop.f32.mrf.mxu0
      %v2597 = vadd.f32 %v2415, %v2596
      %v2598 = vpop.f32.mrf.mxu0
      %2599 = vmatprep.mubr.f32.mxu0 0.0
      %v2600 = vand.u32 %v2018, 4294901760
      %v2601 = vsub.f32 %v2018, %v2600
      %2602 = vmatmul.mubr.f32.gmra.mxu0 %v2601
      %v2603 = vpop.f32.mrf.mxu0
      %v2604 = vadd.f32 %v2421, %v2603
      %v2605 = vpop.f32.mrf.mxu0
      %2606 = vmatprep.mubr.f32.mxu0 0.0
      %v2607 = vand.u32 %v2021, 4294901760
      %v2608 = vsub.f32 %v2021, %v2607
      %2609 = vmatmul.mubr.f32.gmra.mxu0 %v2608
      %v2610 = vpop.f32.mrf.mxu0
      %v2611 = vadd.f32 %v2427, %v2610
      %v2612 = vpop.f32.mrf.mxu0
      %2613 = vmatprep.mubr.f32.mxu0 0.0
      %v2614 = vand.u32 %v2024, 4294901760
      %v2615 = vsub.f32 %v2024, %v2614
      %2616 = vmatmul.mubr.f32.gmra.mxu0 %v2615
      %v2617 = vpop.f32.mrf.mxu0
      %v2618 = vadd.f32 %v2433, %v2617
      %v2619 = vpop.f32.mrf.mxu0
      %2620 = vdwg.mxu0
      %2621 = vmatprep.subr.mxu0 0.0
      %2622 = vmatpush1.msra.mxu0 0.0
      %2623 = vmatprep.subr.mxu0 0.0
      %2624 = vmatpush1.msra.mxu0 0.0
      %2625 = vmatprep.subr.mxu0 0.0
      %2626 = vmatpush1.msra.mxu0 0.0
      %2627 = vmatprep.subr.mxu0 0.0
      %2628 = vmatpush1.msra.mxu0 0.0
      %2629 = vmatprep.subr.mxu0 0.0
      %2630 = vmatpush1.msra.mxu0 0.0
      %2631 = vmatprep.subr.mxu0 0.0
      %2632 = vmatpush1.msra.mxu0 0.0
      %2633 = vmatprep.subr.mxu0 0.0
      %2634 = vmatpush1.msra.mxu0 0.0
      %2635 = vmatprep.subr.mxu0 0.0
      %2636 = vmatpush1.msra.mxu0 0.0
      %2637 = vmatprep.subr.mxu0 0.0
      %2638 = vmatpush1.msra.mxu0 0.0
      %2639 = vmatprep.subr.mxu0 0.0
      %2640 = vmatpush1.msra.mxu0 0.0
      %2641 = vmatprep.subr.mxu0 0.0
      %2642 = vmatpush1.msra.mxu0 0.0
      %2643 = vmatprep.subr.mxu0 0.0
      %2644 = vmatpush1.msra.mxu0 0.0
      %2645 = vmatprep.subr.mxu0 0.0
      %v2646 = vand.u32 %v1973, 4294901760
      %2647 = vmatpush1.msra.mxu0 %v2646
      %2648 = vmatprep.subr.mxu0 0.0
      %v2649 = vand.u32 %v1972, 4294901760
      %2650 = vmatpush1.msra.mxu0 %v2649
      %2651 = vmatprep.subr.mxu0 0.0
      %v2652 = vand.u32 %v1971, 4294901760
      %2653 = vmatpush1.msra.mxu0 %v2652
      %2654 = vmatprep.subr.mxu0 0.0
      %v2655 = vand.u32 %v1970, 4294901760
      %2656 = vmatpush1.msra.mxu0 %v2655
      %2657 = vmatprep.subr.mxu0 0.0
      %2658 = vmatpush2.msra.mxu0 0.0
      %2659 = vmatprep.subr.mxu0 0.0
      %2660 = vmatpush2.msra.mxu0 0.0
      %2661 = vmatprep.subr.mxu0 0.0
      %2662 = vmatpush2.msra.mxu0 0.0
      %2663 = vmatprep.subr.mxu0 0.0
      %2664 = vmatpush2.msra.mxu0 0.0
      %2665 = vmatprep.subr.mxu0 0.0
      %2666 = vmatpush2.msra.mxu0 0.0
      %2667 = vmatprep.subr.mxu0 0.0
      %2668 = vmatpush2.msra.mxu0 0.0
      %2669 = vmatprep.subr.mxu0 0.0
      %2670 = vmatpush2.msra.mxu0 0.0
      %2671 = vmatprep.subr.mxu0 0.0
      %2672 = vmatpush2.msra.mxu0 0.0
      %2673 = vmatprep.subr.mxu0 0.0
      %2674 = vmatpush2.msra.mxu0 0.0
      %2675 = vmatprep.subr.mxu0 0.0
      %2676 = vmatpush2.msra.mxu0 0.0
      %2677 = vmatprep.subr.mxu0 0.0
      %2678 = vmatpush2.msra.mxu0 0.0
      %2679 = vmatprep.subr.mxu0 0.0
      %2680 = vmatpush2.msra.mxu0 0.0
      %2681 = vmatprep.subr.mxu0 0.0
      %2682 = vmatpush2.msra.mxu0 0.0
      %2683 = vmatprep.subr.mxu0 0.0
      %2684 = vmatpush2.msra.mxu0 0.0
      %2685 = vmatprep.subr.mxu0 0.0
      %2686 = vmatpush2.msra.mxu0 0.0
      %2687 = vmatprep.subr.mxu0 0.0
      %2688 = vmatpush2.msra.mxu0 0.0
      %2689 = vmatprep.mubr.f32.mxu0 0.0
      %v2690 = vand.u32 %v1979, 4294901760
      %v2691 = vsub.f32 %v1979, %v2690
      %v2692 = vand.u32 %v2691, 4294901760
      %2693 = vmatmul.mubr.f32.gmra.mxu0 %v2692
      %v2694 = vpop.f32.mrf.mxu0
      %v2695 = vadd.f32 %v2513, %v2694
      %v2696 = vpop.f32.mrf.mxu0
      %2697 = vmatprep.mubr.f32.mxu0 0.0
      %v2698 = vand.u32 %v1982, 4294901760
      %v2699 = vsub.f32 %v1982, %v2698
      %v2700 = vand.u32 %v2699, 4294901760
      %2701 = vmatmul.mubr.f32.gmra.mxu0 %v2700
      %v2702 = vpop.f32.mrf.mxu0
      %v2703 = vadd.f32 %v2520, %v2702
      %v2704 = vpop.f32.mrf.mxu0
      %2705 = vmatprep.mubr.f32.mxu0 0.0
      %v2706 = vand.u32 %v1985, 4294901760
      %v2707 = vsub.f32 %v1985, %v2706
      %v2708 = vand.u32 %v2707, 4294901760
      %2709 = vmatmul.mubr.f32.gmra.mxu0 %v2708
      %v2710 = vpop.f32.mrf.mxu0
      %v2711 = vadd.f32 %v2527, %v2710
      %v2712 = vpop.f32.mrf.mxu0
      %2713 = vmatprep.mubr.f32.mxu0 0.0
      %v2714 = vand.u32 %v1988, 4294901760
      %v2715 = vsub.f32 %v1988, %v2714
      %v2716 = vand.u32 %v2715, 4294901760
      %2717 = vmatmul.mubr.f32.gmra.mxu0 %v2716
      %v2718 = vpop.f32.mrf.mxu0
      %v2719 = vadd.f32 %v2534, %v2718
      %v2720 = vpop.f32.mrf.mxu0
      %2721 = vmatprep.mubr.f32.mxu0 0.0
      %v2722 = vand.u32 %v1991, 4294901760
      %v2723 = vsub.f32 %v1991, %v2722
      %v2724 = vand.u32 %v2723, 4294901760
      %2725 = vmatmul.mubr.f32.gmra.mxu0 %v2724
      %v2726 = vpop.f32.mrf.mxu0
      %v2727 = vadd.f32 %v2541, %v2726
      %v2728 = vpop.f32.mrf.mxu0
      %2729 = vmatprep.mubr.f32.mxu0 0.0
      %v2730 = vand.u32 %v1994, 4294901760
      %v2731 = vsub.f32 %v1994, %v2730
      %v2732 = vand.u32 %v2731, 4294901760
      %2733 = vmatmul.mubr.f32.gmra.mxu0 %v2732
      %v2734 = vpop.f32.mrf.mxu0
      %v2735 = vadd.f32 %v2548, %v2734
      %v2736 = vpop.f32.mrf.mxu0
      %2737 = vmatprep.mubr.f32.mxu0 0.0
      %v2738 = vand.u32 %v1997, 4294901760
      %v2739 = vsub.f32 %v1997, %v2738
      %v2740 = vand.u32 %v2739, 4294901760
      %2741 = vmatmul.mubr.f32.gmra.mxu0 %v2740
      %v2742 = vpop.f32.mrf.mxu0
      %v2743 = vadd.f32 %v2555, %v2742
      %v2744 = vpop.f32.mrf.mxu0
      %2745 = vmatprep.mubr.f32.mxu0 0.0
      %v2746 = vand.u32 %v2000, 4294901760
      %v2747 = vsub.f32 %v2000, %v2746
      %v2748 = vand.u32 %v2747, 4294901760
      %2749 = vmatmul.mubr.f32.gmra.mxu0 %v2748
      %v2750 = vpop.f32.mrf.mxu0
      %v2751 = vadd.f32 %v2562, %v2750
      %v2752 = vpop.f32.mrf.mxu0
      %2753 = vmatprep.mubr.f32.mxu0 0.0
      %v2754 = vand.u32 %v2003, 4294901760
      %v2755 = vsub.f32 %v2003, %v2754
      %v2756 = vand.u32 %v2755, 4294901760
      %2757 = vmatmul.mubr.f32.gmra.mxu0 %v2756
      %v2758 = vpop.f32.mrf.mxu0
      %v2759 = vadd.f32 %v2569, %v2758
      %v2760 = vpop.f32.mrf.mxu0
      %2761 = vmatprep.mubr.f32.mxu0 0.0
      %v2762 = vand.u32 %v2006, 4294901760
      %v2763 = vsub.f32 %v2006, %v2762
      %v2764 = vand.u32 %v2763, 4294901760
      %2765 = vmatmul.mubr.f32.gmra.mxu0 %v2764
      %v2766 = vpop.f32.mrf.mxu0
      %v2767 = vadd.f32 %v2576, %v2766
      %v2768 = vpop.f32.mrf.mxu0
      %2769 = vmatprep.mubr.f32.mxu0 0.0
      %v2770 = vand.u32 %v2009, 4294901760
      %v2771 = vsub.f32 %v2009, %v2770
      %v2772 = vand.u32 %v2771, 4294901760
      %2773 = vmatmul.mubr.f32.gmra.mxu0 %v2772
      %v2774 = vpop.f32.mrf.mxu0
      %v2775 = vadd.f32 %v2583, %v2774
      %v2776 = vpop.f32.mrf.mxu0
      %2777 = vmatprep.mubr.f32.mxu0 0.0
      %v2778 = vand.u32 %v2012, 4294901760
      %v2779 = vsub.f32 %v2012, %v2778
      %v2780 = vand.u32 %v2779, 4294901760
      %2781 = vmatmul.mubr.f32.gmra.mxu0 %v2780
      %v2782 = vpop.f32.mrf.mxu0
      %v2783 = vadd.f32 %v2590, %v2782
      %v2784 = vpop.f32.mrf.mxu0
      %2785 = vmatprep.mubr.f32.mxu0 0.0
      %v2786 = vand.u32 %v2015, 4294901760
      %v2787 = vsub.f32 %v2015, %v2786
      %v2788 = vand.u32 %v2787, 4294901760
      %2789 = vmatmul.mubr.f32.gmra.mxu0 %v2788
      %v2790 = vpop.f32.mrf.mxu0
      %v2791 = vadd.f32 %v2597, %v2790
      %v2792 = vpop.f32.mrf.mxu0
      %2793 = vmatprep.mubr.f32.mxu0 0.0
      %v2794 = vand.u32 %v2018, 4294901760
      %v2795 = vsub.f32 %v2018, %v2794
      %v2796 = vand.u32 %v2795, 4294901760
      %2797 = vmatmul.mubr.f32.gmra.mxu0 %v2796
      %v2798 = vpop.f32.mrf.mxu0
      %v2799 = vadd.f32 %v2604, %v2798
      %v2800 = vpop.f32.mrf.mxu0
      %2801 = vmatprep.mubr.f32.mxu0 0.0
      %v2802 = vand.u32 %v2021, 4294901760
      %v2803 = vsub.f32 %v2021, %v2802
      %v2804 = vand.u32 %v2803, 4294901760
      %2805 = vmatmul.mubr.f32.gmra.mxu0 %v2804
      %v2806 = vpop.f32.mrf.mxu0
      %v2807 = vadd.f32 %v2611, %v2806
      %v2808 = vpop.f32.mrf.mxu0
      %2809 = vmatprep.mubr.f32.mxu0 0.0
      %v2810 = vand.u32 %v2024, 4294901760
      %v2811 = vsub.f32 %v2024, %v2810
      %v2812 = vand.u32 %v2811, 4294901760
      %2813 = vmatmul.mubr.f32.gmra.mxu0 %v2812
      %v2814 = vpop.f32.mrf.mxu0
      %v2815 = vadd.f32 %v2618, %v2814
      %v2816 = vpop.f32.mrf.mxu0
      %2817 = vdwg.mxu0
      %2818 = vmatprep.subr.mxu0 0.0
      %2819 = vmatpush1.msra.mxu0 0.0
      %2820 = vmatprep.subr.mxu0 0.0
      %2821 = vmatpush1.msra.mxu0 0.0
      %2822 = vmatprep.subr.mxu0 0.0
      %2823 = vmatpush1.msra.mxu0 0.0
      %2824 = vmatprep.subr.mxu0 0.0
      %2825 = vmatpush1.msra.mxu0 0.0
      %2826 = vmatprep.subr.mxu0 0.0
      %2827 = vmatpush1.msra.mxu0 0.0
      %2828 = vmatprep.subr.mxu0 0.0
      %2829 = vmatpush1.msra.mxu0 0.0
      %2830 = vmatprep.subr.mxu0 0.0
      %2831 = vmatpush1.msra.mxu0 0.0
      %2832 = vmatprep.subr.mxu0 0.0
      %2833 = vmatpush1.msra.mxu0 0.0
      %2834 = vmatprep.subr.mxu0 0.0
      %2835 = vmatpush1.msra.mxu0 0.0
      %2836 = vmatprep.subr.mxu0 0.0
      %2837 = vmatpush1.msra.mxu0 0.0
      %2838 = vmatprep.subr.mxu0 0.0
      %2839 = vmatpush1.msra.mxu0 0.0
      %2840 = vmatprep.subr.mxu0 0.0
      %2841 = vmatpush1.msra.mxu0 0.0
      %2842 = vmatprep.subr.mxu0 0.0
      %v2843 = vand.u32 %v1973, 4294901760
      %v2844 = vsub.f32 %v1973, %v2843
      %v2845 = vand.u32 %v2844, 4294901760
      %2846 = vmatpush1.msra.mxu0 %v2845
      %2847 = vmatprep.subr.mxu0 0.0
      %v2848 = vand.u32 %v1972, 4294901760
      %v2849 = vsub.f32 %v1972, %v2848
      %v2850 = vand.u32 %v2849, 4294901760
      %2851 = vmatpush1.msra.mxu0 %v2850
      %2852 = vmatprep.subr.mxu0 0.0
      %v2853 = vand.u32 %v1971, 4294901760
      %v2854 = vsub.f32 %v1971, %v2853
      %v2855 = vand.u32 %v2854, 4294901760
      %2856 = vmatpush1.msra.mxu0 %v2855
      %2857 = vmatprep.subr.mxu0 0.0
      %v2858 = vand.u32 %v1970, 4294901760
      %v2859 = vsub.f32 %v1970, %v2858
      %v2860 = vand.u32 %v2859, 4294901760
      %2861 = vmatpush1.msra.mxu0 %v2860
      %2862 = vmatprep.subr.mxu0 0.0
      %2863 = vmatpush2.msra.mxu0 0.0
      %2864 = vmatprep.subr.mxu0 0.0
      %2865 = vmatpush2.msra.mxu0 0.0
      %2866 = vmatprep.subr.mxu0 0.0
      %2867 = vmatpush2.msra.mxu0 0.0
      %2868 = vmatprep.subr.mxu0 0.0
      %2869 = vmatpush2.msra.mxu0 0.0
      %2870 = vmatprep.subr.mxu0 0.0
      %2871 = vmatpush2.msra.mxu0 0.0
      %2872 = vmatprep.subr.mxu0 0.0
      %2873 = vmatpush2.msra.mxu0 0.0
      %2874 = vmatprep.subr.mxu0 0.0
      %2875 = vmatpush2.msra.mxu0 0.0
      %2876 = vmatprep.subr.mxu0 0.0
      %2877 = vmatpush2.msra.mxu0 0.0
      %2878 = vmatprep.subr.mxu0 0.0
      %2879 = vmatpush2.msra.mxu0 0.0
      %2880 = vmatprep.subr.mxu0 0.0
      %2881 = vmatpush2.msra.mxu0 0.0
      %2882 = vmatprep.subr.mxu0 0.0
      %2883 = vmatpush2.msra.mxu0 0.0
      %2884 = vmatprep.subr.mxu0 0.0
      %2885 = vmatpush2.msra.mxu0 0.0
      %2886 = vmatprep.subr.mxu0 0.0
      %2887 = vmatpush2.msra.mxu0 0.0
      %2888 = vmatprep.subr.mxu0 0.0
      %2889 = vmatpush2.msra.mxu0 0.0
      %2890 = vmatprep.subr.mxu0 0.0
      %2891 = vmatpush2.msra.mxu0 0.0
      %2892 = vmatprep.subr.mxu0 0.0
      %2893 = vmatpush2.msra.mxu0 0.0
      %2894 = vmatprep.mubr.f32.mxu0 0.0
      %v2895 = vand.u32 %v1979, 4294901760
      %2896 = vmatmul.mubr.f32.gmra.mxu0 %v2895
      %v2897 = vpop.f32.mrf.mxu0
      %v2898 = vadd.f32 %v2695, %v2897
      %v2899 = vpop.f32.mrf.mxu0
      %2900 = vmatprep.mubr.f32.mxu0 0.0
      %v2901 = vand.u32 %v1982, 4294901760
      %2902 = vmatmul.mubr.f32.gmra.mxu0 %v2901
      %v2903 = vpop.f32.mrf.mxu0
      %v2904 = vadd.f32 %v2703, %v2903
      %v2905 = vpop.f32.mrf.mxu0
      %2906 = vmatprep.mubr.f32.mxu0 0.0
      %v2907 = vand.u32 %v1985, 4294901760
      %2908 = vmatmul.mubr.f32.gmra.mxu0 %v2907
      %v2909 = vpop.f32.mrf.mxu0
      %v2910 = vadd.f32 %v2711, %v2909
      %v2911 = vpop.f32.mrf.mxu0
      %2912 = vmatprep.mubr.f32.mxu0 0.0
      %v2913 = vand.u32 %v1988, 4294901760
      %2914 = vmatmul.mubr.f32.gmra.mxu0 %v2913
      %v2915 = vpop.f32.mrf.mxu0
      %v2916 = vadd.f32 %v2719, %v2915
      %v2917 = vpop.f32.mrf.mxu0
      %2918 = vmatprep.mubr.f32.mxu0 0.0
      %v2919 = vand.u32 %v1991, 4294901760
      %2920 = vmatmul.mubr.f32.gmra.mxu0 %v2919
      %v2921 = vpop.f32.mrf.mxu0
      %v2922 = vadd.f32 %v2727, %v2921
      %v2923 = vpop.f32.mrf.mxu0
      %2924 = vmatprep.mubr.f32.mxu0 0.0
      %v2925 = vand.u32 %v1994, 4294901760
      %2926 = vmatmul.mubr.f32.gmra.mxu0 %v2925
      %v2927 = vpop.f32.mrf.mxu0
      %v2928 = vadd.f32 %v2735, %v2927
      %v2929 = vpop.f32.mrf.mxu0
      %2930 = vmatprep.mubr.f32.mxu0 0.0
      %v2931 = vand.u32 %v1997, 4294901760
      %2932 = vmatmul.mubr.f32.gmra.mxu0 %v2931
      %v2933 = vpop.f32.mrf.mxu0
      %v2934 = vadd.f32 %v2743, %v2933
      %v2935 = vpop.f32.mrf.mxu0
      %2936 = vmatprep.mubr.f32.mxu0 0.0
      %v2937 = vand.u32 %v2000, 4294901760
      %2938 = vmatmul.mubr.f32.gmra.mxu0 %v2937
      %v2939 = vpop.f32.mrf.mxu0
      %v2940 = vadd.f32 %v2751, %v2939
      %v2941 = vpop.f32.mrf.mxu0
      %2942 = vmatprep.mubr.f32.mxu0 0.0
      %v2943 = vand.u32 %v2003, 4294901760
      %2944 = vmatmul.mubr.f32.gmra.mxu0 %v2943
      %v2945 = vpop.f32.mrf.mxu0
      %v2946 = vadd.f32 %v2759, %v2945
      %v2947 = vpop.f32.mrf.mxu0
      %2948 = vmatprep.mubr.f32.mxu0 0.0
      %v2949 = vand.u32 %v2006, 4294901760
      %2950 = vmatmul.mubr.f32.gmra.mxu0 %v2949
      %v2951 = vpop.f32.mrf.mxu0
      %v2952 = vadd.f32 %v2767, %v2951
      %v2953 = vpop.f32.mrf.mxu0
      %2954 = vmatprep.mubr.f32.mxu0 0.0
      %v2955 = vand.u32 %v2009, 4294901760
      %2956 = vmatmul.mubr.f32.gmra.mxu0 %v2955
      %v2957 = vpop.f32.mrf.mxu0
      %v2958 = vadd.f32 %v2775, %v2957
      %v2959 = vpop.f32.mrf.mxu0
      %2960 = vmatprep.mubr.f32.mxu0 0.0
      %v2961 = vand.u32 %v2012, 4294901760
      %2962 = vmatmul.mubr.f32.gmra.mxu0 %v2961
      %v2963 = vpop.f32.mrf.mxu0
      %v2964 = vadd.f32 %v2783, %v2963
      %v2965 = vpop.f32.mrf.mxu0
      %2966 = vmatprep.mubr.f32.mxu0 0.0
      %v2967 = vand.u32 %v2015, 4294901760
      %2968 = vmatmul.mubr.f32.gmra.mxu0 %v2967
      %v2969 = vpop.f32.mrf.mxu0
      %v2970 = vadd.f32 %v2791, %v2969
      %v2971 = vpop.f32.mrf.mxu0
      %2972 = vmatprep.mubr.f32.mxu0 0.0
      %v2973 = vand.u32 %v2018, 4294901760
      %2974 = vmatmul.mubr.f32.gmra.mxu0 %v2973
      %v2975 = vpop.f32.mrf.mxu0
      %v2976 = vadd.f32 %v2799, %v2975
      %v2977 = vpop.f32.mrf.mxu0
      %2978 = vmatprep.mubr.f32.mxu0 0.0
      %v2979 = vand.u32 %v2021, 4294901760
      %2980 = vmatmul.mubr.f32.gmra.mxu0 %v2979
      %v2981 = vpop.f32.mrf.mxu0
      %v2982 = vadd.f32 %v2807, %v2981
      %v2983 = vpop.f32.mrf.mxu0
      %2984 = vmatprep.mubr.f32.mxu0 0.0
      %v2985 = vand.u32 %v2024, 4294901760
      %2986 = vmatmul.mubr.f32.gmra.mxu0 %v2985
      %v2987 = vpop.f32.mrf.mxu0
      %v2988 = vadd.f32 %v2815, %v2987
      %v2989 = vpop.f32.mrf.mxu0
      %2990 = vdwg.mxu0
      %2991 = vmatprep.subr.mxu0 0.0
      %2992 = vmatpush1.msra.mxu0 0.0
      %2993 = vmatprep.subr.mxu0 0.0
      %2994 = vmatpush1.msra.mxu0 0.0
      %2995 = vmatprep.subr.mxu0 0.0
      %2996 = vmatpush1.msra.mxu0 0.0
      %2997 = vmatprep.subr.mxu0 0.0
      %2998 = vmatpush1.msra.mxu0 0.0
      %2999 = vmatprep.subr.mxu0 0.0
      %3000 = vmatpush1.msra.mxu0 0.0
      %3001 = vmatprep.subr.mxu0 0.0
      %3002 = vmatpush1.msra.mxu0 0.0
      %3003 = vmatprep.subr.mxu0 0.0
      %3004 = vmatpush1.msra.mxu0 0.0
      %3005 = vmatprep.subr.mxu0 0.0
      %3006 = vmatpush1.msra.mxu0 0.0
      %3007 = vmatprep.subr.mxu0 0.0
      %3008 = vmatpush1.msra.mxu0 0.0
      %3009 = vmatprep.subr.mxu0 0.0
      %3010 = vmatpush1.msra.mxu0 0.0
      %3011 = vmatprep.subr.mxu0 0.0
      %3012 = vmatpush1.msra.mxu0 0.0
      %3013 = vmatprep.subr.mxu0 0.0
      %3014 = vmatpush1.msra.mxu0 0.0
      %3015 = vmatprep.subr.mxu0 0.0
      %v3016 = vand.u32 %v1973, 4294901760
      %3017 = vmatpush1.msra.mxu0 %v3016
      %3018 = vmatprep.subr.mxu0 0.0
      %v3019 = vand.u32 %v1972, 4294901760
      %3020 = vmatpush1.msra.mxu0 %v3019
      %3021 = vmatprep.subr.mxu0 0.0
      %v3022 = vand.u32 %v1971, 4294901760
      %3023 = vmatpush1.msra.mxu0 %v3022
      %3024 = vmatprep.subr.mxu0 0.0
      %v3025 = vand.u32 %v1970, 4294901760
      %3026 = vmatpush1.msra.mxu0 %v3025
      %3027 = vmatprep.subr.mxu0 0.0
      %3028 = vmatpush2.msra.mxu0 0.0
      %3029 = vmatprep.subr.mxu0 0.0
      %3030 = vmatpush2.msra.mxu0 0.0
      %3031 = vmatprep.subr.mxu0 0.0
      %3032 = vmatpush2.msra.mxu0 0.0
      %3033 = vmatprep.subr.mxu0 0.0
      %3034 = vmatpush2.msra.mxu0 0.0
      %3035 = vmatprep.subr.mxu0 0.0
      %3036 = vmatpush2.msra.mxu0 0.0
      %3037 = vmatprep.subr.mxu0 0.0
      %3038 = vmatpush2.msra.mxu0 0.0
      %3039 = vmatprep.subr.mxu0 0.0
      %3040 = vmatpush2.msra.mxu0 0.0
      %3041 = vmatprep.subr.mxu0 0.0
      %3042 = vmatpush2.msra.mxu0 0.0
      %3043 = vmatprep.subr.mxu0 0.0
      %3044 = vmatpush2.msra.mxu0 0.0
      %3045 = vmatprep.subr.mxu0 0.0
      %3046 = vmatpush2.msra.mxu0 0.0
      %3047 = vmatprep.subr.mxu0 0.0
      %3048 = vmatpush2.msra.mxu0 0.0
      %3049 = vmatprep.subr.mxu0 0.0
      %3050 = vmatpush2.msra.mxu0 0.0
      %3051 = vmatprep.subr.mxu0 0.0
      %3052 = vmatpush2.msra.mxu0 0.0
      %3053 = vmatprep.subr.mxu0 0.0
      %3054 = vmatpush2.msra.mxu0 0.0
      %3055 = vmatprep.subr.mxu0 0.0
      %3056 = vmatpush2.msra.mxu0 0.0
      %3057 = vmatprep.subr.mxu0 0.0
      %3058 = vmatpush2.msra.mxu0 0.0
      %3059 = vmatprep.mubr.f32.mxu0 0.0
      %v3060 = vand.u32 %v1979, 4294901760
      %3061 = vmatmul.mubr.f32.gmra.mxu0 %v3060
      %v3062 = vpop.f32.mrf.mxu0
      %v3063 = vadd.f32 %v2898, %v3062
      %v3064 = vpop.f32.mrf.mxu0
      %3065 = vmatprep.mubr.f32.mxu0 0.0
      %v3066 = vand.u32 %v1982, 4294901760
      %3067 = vmatmul.mubr.f32.gmra.mxu0 %v3066
      %v3068 = vpop.f32.mrf.mxu0
      %v3069 = vadd.f32 %v2904, %v3068
      %v3070 = vpop.f32.mrf.mxu0
      %3071 = vmatprep.mubr.f32.mxu0 0.0
      %v3072 = vand.u32 %v1985, 4294901760
      %3073 = vmatmul.mubr.f32.gmra.mxu0 %v3072
      %v3074 = vpop.f32.mrf.mxu0
      %v3075 = vadd.f32 %v2910, %v3074
      %v3076 = vpop.f32.mrf.mxu0
      %3077 = vmatprep.mubr.f32.mxu0 0.0
      %v3078 = vand.u32 %v1988, 4294901760
      %3079 = vmatmul.mubr.f32.gmra.mxu0 %v3078
      %v3080 = vpop.f32.mrf.mxu0
      %v3081 = vadd.f32 %v2916, %v3080
      %v3082 = vpop.f32.mrf.mxu0
      %3083 = vmatprep.mubr.f32.mxu0 0.0
      %v3084 = vand.u32 %v1991, 4294901760
      %3085 = vmatmul.mubr.f32.gmra.mxu0 %v3084
      %v3086 = vpop.f32.mrf.mxu0
      %v3087 = vadd.f32 %v2922, %v3086
      %v3088 = vpop.f32.mrf.mxu0
      %3089 = vmatprep.mubr.f32.mxu0 0.0
      %v3090 = vand.u32 %v1994, 4294901760
      %3091 = vmatmul.mubr.f32.gmra.mxu0 %v3090
      %v3092 = vpop.f32.mrf.mxu0
      %v3093 = vadd.f32 %v2928, %v3092
      %v3094 = vpop.f32.mrf.mxu0
      %3095 = vmatprep.mubr.f32.mxu0 0.0
      %v3096 = vand.u32 %v1997, 4294901760
      %3097 = vmatmul.mubr.f32.gmra.mxu0 %v3096
      %v3098 = vpop.f32.mrf.mxu0
      %v3099 = vadd.f32 %v2934, %v3098
      %v3100 = vpop.f32.mrf.mxu0
      %3101 = vmatprep.mubr.f32.mxu0 0.0
      %v3102 = vand.u32 %v2000, 4294901760
      %3103 = vmatmul.mubr.f32.gmra.mxu0 %v3102
      %v3104 = vpop.f32.mrf.mxu0
      %v3105 = vadd.f32 %v2940, %v3104
      %v3106 = vpop.f32.mrf.mxu0
      %3107 = vmatprep.mubr.f32.mxu0 0.0
      %v3108 = vand.u32 %v2003, 4294901760
      %3109 = vmatmul.mubr.f32.gmra.mxu0 %v3108
      %v3110 = vpop.f32.mrf.mxu0
      %v3111 = vadd.f32 %v2946, %v3110
      %v3112 = vpop.f32.mrf.mxu0
      %3113 = vmatprep.mubr.f32.mxu0 0.0
      %v3114 = vand.u32 %v2006, 4294901760
      %3115 = vmatmul.mubr.f32.gmra.mxu0 %v3114
      %v3116 = vpop.f32.mrf.mxu0
      %v3117 = vadd.f32 %v2952, %v3116
      %v3118 = vpop.f32.mrf.mxu0
      %3119 = vmatprep.mubr.f32.mxu0 0.0
      %v3120 = vand.u32 %v2009, 4294901760
      %3121 = vmatmul.mubr.f32.gmra.mxu0 %v3120
      %v3122 = vpop.f32.mrf.mxu0
      %v3123 = vadd.f32 %v2958, %v3122
      %v3124 = vpop.f32.mrf.mxu0
      %3125 = vmatprep.mubr.f32.mxu0 0.0
      %v3126 = vand.u32 %v2012, 4294901760
      %3127 = vmatmul.mubr.f32.gmra.mxu0 %v3126
      %v3128 = vpop.f32.mrf.mxu0
      %v3129 = vadd.f32 %v2964, %v3128
      %v3130 = vpop.f32.mrf.mxu0
      %3131 = vmatprep.mubr.f32.mxu0 0.0
      %v3132 = vand.u32 %v2015, 4294901760
      %3133 = vmatmul.mubr.f32.gmra.mxu0 %v3132
      %v3134 = vpop.f32.mrf.mxu0
      %v3135 = vadd.f32 %v2970, %v3134
      %v3136 = vpop.f32.mrf.mxu0
      %3137 = vmatprep.mubr.f32.mxu0 0.0
      %v3138 = vand.u32 %v2018, 4294901760
      %3139 = vmatmul.mubr.f32.gmra.mxu0 %v3138
      %v3140 = vpop.f32.mrf.mxu0
      %v3141 = vadd.f32 %v2976, %v3140
      %v3142 = vpop.f32.mrf.mxu0
      %3143 = vmatprep.mubr.f32.mxu0 0.0
      %v3144 = vand.u32 %v2021, 4294901760
      %3145 = vmatmul.mubr.f32.gmra.mxu0 %v3144
      %v3146 = vpop.f32.mrf.mxu0
      %v3147 = vadd.f32 %v2982, %v3146
      %v3148 = vpop.f32.mrf.mxu0
      %3149 = vmatprep.mubr.f32.mxu0 0.0
      %v3150 = vand.u32 %v2024, 4294901760
      %3151 = vmatmul.mubr.f32.gmra.mxu0 %v3150
      %v3152 = vpop.f32.mrf.mxu0
      %v3153 = vadd.f32 %v2988, %v3152
      %v3154 = vpop.f32.mrf.mxu0
      %3155 = vdwg.mxu0
      %v3156 = vlaneseq
      %v3157 = vshrl.u32 %v3156, 7
      %v3158 = vadd.s32 %v3157, 8
      %v3159 = vadd.s32 %v3157, 16
      %v3160 = vadd.s32 %v3157, 24
      %s3161 = smul.u32 %s21, 32
      %v3162 = vstv %s3161
      %v3163 = vadd.s32 %v3157, %v3162
      %v3164 = vadd.s32 %v3158, %v3162
      %v3165 = vadd.s32 %v3159, %v3162
      %v3166 = vadd.s32 %v3160, %v3162
      %v3167 = vlaneseq
      %v3168 = vshrl.u32 %v3167, 7
      %v3169 = vsub.s32 0, %v3168
      %v3170 = vrot.slane %v351, %v3169
      %vm3171 = vcmp.eq.s32.totalorder %v3163, %v3170
      %vm3172 = vcmp.eq.s32.totalorder %v3164, %v3170
      %vm3173 = vcmp.eq.s32.totalorder %v3165, %v3170
      %vm3174 = vcmp.eq.s32.totalorder %v3166, %v3170
      %v3175 = vsel %vm3171, 1, 0
      %v3176 = vsel %vm3172, 1, 0
      %v3177 = vsel %vm3173, 1, 0
      %v3178 = vsel %vm3174, 1, 0
      %v3179 = vcvt.s32.f32 %v3175
      %v3180 = vcvt.s32.f32 %v3176
      %v3181 = vcvt.s32.f32 %v3177
      %v3182 = vcvt.s32.f32 %v3178
      %v3183 = vld [vmem:[#allocation2] sm:$0xff]
      %v3184 = vld [vmem:[#allocation2 + $0x8] sm:$0xff]
      %v3185 = vld [vmem:[#allocation2 + $0x10] sm:$0xff]
      %v3186 = vld [vmem:[#allocation2 + $0x18] sm:$0xff]
      %3187 = vmatprep.subr.mxu0 0.0
      %v3188 = vand.u32 %v3153, 4294901760
      %3189 = vmatpush1.msra.mxu0 %v3188
      %3190 = vmatprep.subr.mxu0 0.0
      %v3191 = vand.u32 %v3147, 4294901760
      %3192 = vmatpush1.msra.mxu0 %v3191
      %3193 = vmatprep.subr.mxu0 0.0
      %v3194 = vand.u32 %v3141, 4294901760
      %3195 = vmatpush1.msra.mxu0 %v3194
      %3196 = vmatprep.subr.mxu0 0.0
      %v3197 = vand.u32 %v3135, 4294901760
      %3198 = vmatpush1.msra.mxu0 %v3197
      %3199 = vmatprep.subr.mxu0 0.0
      %v3200 = vand.u32 %v3129, 4294901760
      %3201 = vmatpush1.msra.mxu0 %v3200
      %3202 = vmatprep.subr.mxu0 0.0
      %v3203 = vand.u32 %v3123, 4294901760
      %3204 = vmatpush1.msra.mxu0 %v3203
      %3205 = vmatprep.subr.mxu0 0.0
      %v3206 = vand.u32 %v3117, 4294901760
      %3207 = vmatpush1.msra.mxu0 %v3206
      %3208 = vmatprep.subr.mxu0 0.0
      %v3209 = vand.u32 %v3111, 4294901760
      %3210 = vmatpush1.msra.mxu0 %v3209
      %3211 = vmatprep.subr.mxu0 0.0
      %v3212 = vand.u32 %v3105, 4294901760
      %3213 = vmatpush1.msra.mxu0 %v3212
      %3214 = vmatprep.subr.mxu0 0.0
      %v3215 = vand.u32 %v3099, 4294901760
      %3216 = vmatpush1.msra.mxu0 %v3215
      %3217 = vmatprep.subr.mxu0 0.0
      %v3218 = vand.u32 %v3093, 4294901760
      %3219 = vmatpush1.msra.mxu0 %v3218
      %3220 = vmatprep.subr.mxu0 0.0
      %v3221 = vand.u32 %v3087, 4294901760
      %3222 = vmatpush1.msra.mxu0 %v3221
      %3223 = vmatprep.subr.mxu0 0.0
      %v3224 = vand.u32 %v3081, 4294901760
      %3225 = vmatpush1.msra.mxu0 %v3224
      %3226 = vmatprep.subr.mxu0 0.0
      %v3227 = vand.u32 %v3075, 4294901760
      %3228 = vmatpush1.msra.mxu0 %v3227
      %3229 = vmatprep.subr.mxu0 0.0
      %v3230 = vand.u32 %v3069, 4294901760
      %3231 = vmatpush1.msra.mxu0 %v3230
      %3232 = vmatprep.subr.mxu0 0.0
      %v3233 = vand.u32 %v3063, 4294901760
      %3234 = vmatpush1.msra.mxu0 %v3233
      %3235 = vmatprep.subr.mxu0 0.0
      %3236 = vmatpush2.msra.mxu0 0.0
      %3237 = vmatprep.subr.mxu0 0.0
      %3238 = vmatpush2.msra.mxu0 0.0
      %3239 = vmatprep.subr.mxu0 0.0
      %3240 = vmatpush2.msra.mxu0 0.0
      %3241 = vmatprep.subr.mxu0 0.0
      %3242 = vmatpush2.msra.mxu0 0.0
      %3243 = vmatprep.subr.mxu0 0.0
      %3244 = vmatpush2.msra.mxu0 0.0
      %3245 = vmatprep.subr.mxu0 0.0
      %3246 = vmatpush2.msra.mxu0 0.0
      %3247 = vmatprep.subr.mxu0 0.0
      %3248 = vmatpush2.msra.mxu0 0.0
      %3249 = vmatprep.subr.mxu0 0.0
      %3250 = vmatpush2.msra.mxu0 0.0
      %3251 = vmatprep.subr.mxu0 0.0
      %3252 = vmatpush2.msra.mxu0 0.0
      %3253 = vmatprep.subr.mxu0 0.0
      %3254 = vmatpush2.msra.mxu0 0.0
      %3255 = vmatprep.subr.mxu0 0.0
      %3256 = vmatpush2.msra.mxu0 0.0
      %3257 = vmatprep.subr.mxu0 0.0
      %3258 = vmatpush2.msra.mxu0 0.0
      %3259 = vmatprep.subr.mxu0 0.0
      %3260 = vmatpush2.msra.mxu0 0.0
      %3261 = vmatprep.subr.mxu0 0.0
      %3262 = vmatpush2.msra.mxu0 0.0
      %3263 = vmatprep.subr.mxu0 0.0
      %3264 = vmatpush2.msra.mxu0 0.0
      %3265 = vmatprep.subr.mxu0 0.0
      %3266 = vmatpush2.msra.mxu0 0.0
      %3267 = vmatprep.mubr.f32.mxu0 0.0
      %v3268 = vand.u32 %v3179, 4294901760
      %v3269 = vsub.f32 %v3179, %v3268
      %v3270 = vand.u32 %v3269, 4294901760
      %v3271 = vsub.f32 %v3269, %v3270
      %v3272 = vand.u32 %v3271, 4294901760
      %3273 = vmatmul.mubr.f32.gmra.mxu0 %v3272
      %v3274 = vpop.f32.mrf.mxu0
      %v3275 = vadd.f32 0.0, %v3274
      %v3276 = vpop.f32.mrf.mxu0
      %3277 = vmatprep.mubr.f32.mxu0 0.0
      %v3278 = vand.u32 %v3180, 4294901760
      %v3279 = vsub.f32 %v3180, %v3278
      %v3280 = vand.u32 %v3279, 4294901760
      %v3281 = vsub.f32 %v3279, %v3280
      %v3282 = vand.u32 %v3281, 4294901760
      %3283 = vmatmul.mubr.f32.gmra.mxu0 %v3282
      %v3284 = vpop.f32.mrf.mxu0
      %v3285 = vadd.f32 0.0, %v3284
      %v3286 = vpop.f32.mrf.mxu0
      %3287 = vmatprep.mubr.f32.mxu0 0.0
      %v3288 = vand.u32 %v3181, 4294901760
      %v3289 = vsub.f32 %v3181, %v3288
      %v3290 = vand.u32 %v3289, 4294901760
      %v3291 = vsub.f32 %v3289, %v3290
      %v3292 = vand.u32 %v3291, 4294901760
      %3293 = vmatmul.mubr.f32.gmra.mxu0 %v3292
      %v3294 = vpop.f32.mrf.mxu0
      %v3295 = vadd.f32 0.0, %v3294
      %v3296 = vpop.f32.mrf.mxu0
      %3297 = vmatprep.mubr.f32.mxu0 0.0
      %v3298 = vand.u32 %v3182, 4294901760
      %v3299 = vsub.f32 %v3182, %v3298
      %v3300 = vand.u32 %v3299, 4294901760
      %v3301 = vsub.f32 %v3299, %v3300
      %v3302 = vand.u32 %v3301, 4294901760
      %3303 = vmatmul.mubr.f32.gmra.mxu0 %v3302
      %v3304 = vpop.f32.mrf.mxu0
      %v3305 = vadd.f32 0.0, %v3304
      %v3306 = vpop.f32.mrf.mxu0
      %3307 = vdwg.mxu0
      %3308 = vmatprep.subr.mxu0 0.0
      %v3309 = vand.u32 %v3153, 4294901760
      %v3310 = vsub.f32 %v3153, %v3309
      %v3311 = vand.u32 %v3310, 4294901760
      %v3312 = vsub.f32 %v3310, %v3311
      %v3313 = vand.u32 %v3312, 4294901760
      %3314 = vmatpush1.msra.mxu0 %v3313
      %3315 = vmatprep.subr.mxu0 0.0
      %v3316 = vand.u32 %v3147, 4294901760
      %v3317 = vsub.f32 %v3147, %v3316
      %v3318 = vand.u32 %v3317, 4294901760
      %v3319 = vsub.f32 %v3317, %v3318
      %v3320 = vand.u32 %v3319, 4294901760
      %3321 = vmatpush1.msra.mxu0 %v3320
      %3322 = vmatprep.subr.mxu0 0.0
      %v3323 = vand.u32 %v3141, 4294901760
      %v3324 = vsub.f32 %v3141, %v3323
      %v3325 = vand.u32 %v3324, 4294901760
      %v3326 = vsub.f32 %v3324, %v3325
      %v3327 = vand.u32 %v3326, 4294901760
      %3328 = vmatpush1.msra.mxu0 %v3327
      %3329 = vmatprep.subr.mxu0 0.0
      %v3330 = vand.u32 %v3135, 4294901760
      %v3331 = vsub.f32 %v3135, %v3330
      %v3332 = vand.u32 %v3331, 4294901760
      %v3333 = vsub.f32 %v3331, %v3332
      %v3334 = vand.u32 %v3333, 4294901760
      %3335 = vmatpush1.msra.mxu0 %v3334
      %3336 = vmatprep.subr.mxu0 0.0
      %v3337 = vand.u32 %v3129, 4294901760
      %v3338 = vsub.f32 %v3129, %v3337
      %v3339 = vand.u32 %v3338, 4294901760
      %v3340 = vsub.f32 %v3338, %v3339
      %v3341 = vand.u32 %v3340, 4294901760
      %3342 = vmatpush1.msra.mxu0 %v3341
      %3343 = vmatprep.subr.mxu0 0.0
      %v3344 = vand.u32 %v3123, 4294901760
      %v3345 = vsub.f32 %v3123, %v3344
      %v3346 = vand.u32 %v3345, 4294901760
      %v3347 = vsub.f32 %v3345, %v3346
      %v3348 = vand.u32 %v3347, 4294901760
      %3349 = vmatpush1.msra.mxu0 %v3348
      %3350 = vmatprep.subr.mxu0 0.0
      %v3351 = vand.u32 %v3117, 4294901760
      %v3352 = vsub.f32 %v3117, %v3351
      %v3353 = vand.u32 %v3352, 4294901760
      %v3354 = vsub.f32 %v3352, %v3353
      %v3355 = vand.u32 %v3354, 4294901760
      %3356 = vmatpush1.msra.mxu0 %v3355
      %3357 = vmatprep.subr.mxu0 0.0
      %v3358 = vand.u32 %v3111, 4294901760
      %v3359 = vsub.f32 %v3111, %v3358
      %v3360 = vand.u32 %v3359, 4294901760
      %v3361 = vsub.f32 %v3359, %v3360
      %v3362 = vand.u32 %v3361, 4294901760
      %3363 = vmatpush1.msra.mxu0 %v3362
      %3364 = vmatprep.subr.mxu0 0.0
      %v3365 = vand.u32 %v3105, 4294901760
      %v3366 = vsub.f32 %v3105, %v3365
      %v3367 = vand.u32 %v3366, 4294901760
      %v3368 = vsub.f32 %v3366, %v3367
      %v3369 = vand.u32 %v3368, 4294901760
      %3370 = vmatpush1.msra.mxu0 %v3369
      %3371 = vmatprep.subr.mxu0 0.0
      %v3372 = vand.u32 %v3099, 4294901760
      %v3373 = vsub.f32 %v3099, %v3372
      %v3374 = vand.u32 %v3373, 4294901760
      %v3375 = vsub.f32 %v3373, %v3374
      %v3376 = vand.u32 %v3375, 4294901760
      %3377 = vmatpush1.msra.mxu0 %v3376
      %3378 = vmatprep.subr.mxu0 0.0
      %v3379 = vand.u32 %v3093, 4294901760
      %v3380 = vsub.f32 %v3093, %v3379
      %v3381 = vand.u32 %v3380, 4294901760
      %v3382 = vsub.f32 %v3380, %v3381
      %v3383 = vand.u32 %v3382, 4294901760
      %3384 = vmatpush1.msra.mxu0 %v3383
      %3385 = vmatprep.subr.mxu0 0.0
      %v3386 = vand.u32 %v3087, 4294901760
      %v3387 = vsub.f32 %v3087, %v3386
      %v3388 = vand.u32 %v3387, 4294901760
      %v3389 = vsub.f32 %v3387, %v3388
      %v3390 = vand.u32 %v3389, 4294901760
      %3391 = vmatpush1.msra.mxu0 %v3390
      %3392 = vmatprep.subr.mxu0 0.0
      %v3393 = vand.u32 %v3081, 4294901760
      %v3394 = vsub.f32 %v3081, %v3393
      %v3395 = vand.u32 %v3394, 4294901760
      %v3396 = vsub.f32 %v3394, %v3395
      %v3397 = vand.u32 %v3396, 4294901760
      %3398 = vmatpush1.msra.mxu0 %v3397
      %3399 = vmatprep.subr.mxu0 0.0
      %v3400 = vand.u32 %v3075, 4294901760
      %v3401 = vsub.f32 %v3075, %v3400
      %v3402 = vand.u32 %v3401, 4294901760
      %v3403 = vsub.f32 %v3401, %v3402
      %v3404 = vand.u32 %v3403, 4294901760
      %3405 = vmatpush1.msra.mxu0 %v3404
      %3406 = vmatprep.subr.mxu0 0.0
      %v3407 = vand.u32 %v3069, 4294901760
      %v3408 = vsub.f32 %v3069, %v3407
      %v3409 = vand.u32 %v3408, 4294901760
      %v3410 = vsub.f32 %v3408, %v3409
      %v3411 = vand.u32 %v3410, 4294901760
      %3412 = vmatpush1.msra.mxu0 %v3411
      %3413 = vmatprep.subr.mxu0 0.0
      %v3414 = vand.u32 %v3063, 4294901760
      %v3415 = vsub.f32 %v3063, %v3414
      %v3416 = vand.u32 %v3415, 4294901760
      %v3417 = vsub.f32 %v3415, %v3416
      %v3418 = vand.u32 %v3417, 4294901760
      %3419 = vmatpush1.msra.mxu0 %v3418
      %3420 = vmatprep.subr.mxu0 0.0
      %3421 = vmatpush2.msra.mxu0 0.0
      %3422 = vmatprep.subr.mxu0 0.0
      %3423 = vmatpush2.msra.mxu0 0.0
      %3424 = vmatprep.subr.mxu0 0.0
      %3425 = vmatpush2.msra.mxu0 0.0
      %3426 = vmatprep.subr.mxu0 0.0
      %3427 = vmatpush2.msra.mxu0 0.0
      %3428 = vmatprep.subr.mxu0 0.0
      %3429 = vmatpush2.msra.mxu0 0.0
      %3430 = vmatprep.subr.mxu0 0.0
      %3431 = vmatpush2.msra.mxu0 0.0
      %3432 = vmatprep.subr.mxu0 0.0
      %3433 = vmatpush2.msra.mxu0 0.0
      %3434 = vmatprep.subr.mxu0 0.0
      %3435 = vmatpush2.msra.mxu0 0.0
      %3436 = vmatprep.subr.mxu0 0.0
      %3437 = vmatpush2.msra.mxu0 0.0
      %3438 = vmatprep.subr.mxu0 0.0
      %3439 = vmatpush2.msra.mxu0 0.0
      %3440 = vmatprep.subr.mxu0 0.0
      %3441 = vmatpush2.msra.mxu0 0.0
      %3442 = vmatprep.subr.mxu0 0.0
      %3443 = vmatpush2.msra.mxu0 0.0
      %3444 = vmatprep.subr.mxu0 0.0
      %3445 = vmatpush2.msra.mxu0 0.0
      %3446 = vmatprep.subr.mxu0 0.0
      %3447 = vmatpush2.msra.mxu0 0.0
      %3448 = vmatprep.subr.mxu0 0.0
      %3449 = vmatpush2.msra.mxu0 0.0
      %3450 = vmatprep.subr.mxu0 0.0
      %3451 = vmatpush2.msra.mxu0 0.0
      %3452 = vmatprep.mubr.f32.mxu0 0.0
      %v3453 = vand.u32 %v3179, 4294901760
      %3454 = vmatmul.mubr.f32.gmra.mxu0 %v3453
      %v3455 = vpop.f32.mrf.mxu0
      %v3456 = vadd.f32 %v3275, %v3455
      %v3457 = vpop.f32.mrf.mxu0
      %3458 = vmatprep.mubr.f32.mxu0 0.0
      %v3459 = vand.u32 %v3180, 4294901760
      %3460 = vmatmul.mubr.f32.gmra.mxu0 %v3459
      %v3461 = vpop.f32.mrf.mxu0
      %v3462 = vadd.f32 %v3285, %v3461
      %v3463 = vpop.f32.mrf.mxu0
      %3464 = vmatprep.mubr.f32.mxu0 0.0
      %v3465 = vand.u32 %v3181, 4294901760
      %3466 = vmatmul.mubr.f32.gmra.mxu0 %v3465
      %v3467 = vpop.f32.mrf.mxu0
      %v3468 = vadd.f32 %v3295, %v3467
      %v3469 = vpop.f32.mrf.mxu0
      %3470 = vmatprep.mubr.f32.mxu0 0.0
      %v3471 = vand.u32 %v3182, 4294901760
      %3472 = vmatmul.mubr.f32.gmra.mxu0 %v3471
      %v3473 = vpop.f32.mrf.mxu0
      %v3474 = vadd.f32 %v3305, %v3473
      %v3475 = vpop.f32.mrf.mxu0
      %3476 = vdwg.mxu0
      %3477 = vmatprep.subr.mxu0 0.0
      %v3478 = vand.u32 %v3153, 4294901760
      %v3479 = vsub.f32 %v3153, %v3478
      %3480 = vmatpush1.msra.mxu0 %v3479
      %3481 = vmatprep.subr.mxu0 0.0
      %v3482 = vand.u32 %v3147, 4294901760
      %v3483 = vsub.f32 %v3147, %v3482
      %3484 = vmatpush1.msra.mxu0 %v3483
      %3485 = vmatprep.subr.mxu0 0.0
      %v3486 = vand.u32 %v3141, 4294901760
      %v3487 = vsub.f32 %v3141, %v3486
      %3488 = vmatpush1.msra.mxu0 %v3487
      %3489 = vmatprep.subr.mxu0 0.0
      %v3490 = vand.u32 %v3135, 4294901760
      %v3491 = vsub.f32 %v3135, %v3490
      %3492 = vmatpush1.msra.mxu0 %v3491
      %3493 = vmatprep.subr.mxu0 0.0
      %v3494 = vand.u32 %v3129, 4294901760
      %v3495 = vsub.f32 %v3129, %v3494
      %3496 = vmatpush1.msra.mxu0 %v3495
      %3497 = vmatprep.subr.mxu0 0.0
      %v3498 = vand.u32 %v3123, 4294901760
      %v3499 = vsub.f32 %v3123, %v3498
      %3500 = vmatpush1.msra.mxu0 %v3499
      %3501 = vmatprep.subr.mxu0 0.0
      %v3502 = vand.u32 %v3117, 4294901760
      %v3503 = vsub.f32 %v3117, %v3502
      %3504 = vmatpush1.msra.mxu0 %v3503
      %3505 = vmatprep.subr.mxu0 0.0
      %v3506 = vand.u32 %v3111, 4294901760
      %v3507 = vsub.f32 %v3111, %v3506
      %3508 = vmatpush1.msra.mxu0 %v3507
      %3509 = vmatprep.subr.mxu0 0.0
      %v3510 = vand.u32 %v3105, 4294901760
      %v3511 = vsub.f32 %v3105, %v3510
      %3512 = vmatpush1.msra.mxu0 %v3511
      %3513 = vmatprep.subr.mxu0 0.0
      %v3514 = vand.u32 %v3099, 4294901760
      %v3515 = vsub.f32 %v3099, %v3514
      %3516 = vmatpush1.msra.mxu0 %v3515
      %3517 = vmatprep.subr.mxu0 0.0
      %v3518 = vand.u32 %v3093, 4294901760
      %v3519 = vsub.f32 %v3093, %v3518
      %3520 = vmatpush1.msra.mxu0 %v3519
      %3521 = vmatprep.subr.mxu0 0.0
      %v3522 = vand.u32 %v3087, 4294901760
      %v3523 = vsub.f32 %v3087, %v3522
      %3524 = vmatpush1.msra.mxu0 %v3523
      %3525 = vmatprep.subr.mxu0 0.0
      %v3526 = vand.u32 %v3081, 4294901760
      %v3527 = vsub.f32 %v3081, %v3526
      %3528 = vmatpush1.msra.mxu0 %v3527
      %3529 = vmatprep.subr.mxu0 0.0
      %v3530 = vand.u32 %v3075, 4294901760
      %v3531 = vsub.f32 %v3075, %v3530
      %3532 = vmatpush1.msra.mxu0 %v3531
      %3533 = vmatprep.subr.mxu0 0.0
      %v3534 = vand.u32 %v3069, 4294901760
      %v3535 = vsub.f32 %v3069, %v3534
      %3536 = vmatpush1.msra.mxu0 %v3535
      %3537 = vmatprep.subr.mxu0 0.0
      %v3538 = vand.u32 %v3063, 4294901760
      %v3539 = vsub.f32 %v3063, %v3538
      %3540 = vmatpush1.msra.mxu0 %v3539
      %3541 = vmatprep.subr.mxu0 0.0
      %3542 = vmatpush2.msra.mxu0 0.0
      %3543 = vmatprep.subr.mxu0 0.0
      %3544 = vmatpush2.msra.mxu0 0.0
      %3545 = vmatprep.subr.mxu0 0.0
      %3546 = vmatpush2.msra.mxu0 0.0
      %3547 = vmatprep.subr.mxu0 0.0
      %3548 = vmatpush2.msra.mxu0 0.0
      %3549 = vmatprep.subr.mxu0 0.0
      %3550 = vmatpush2.msra.mxu0 0.0
      %3551 = vmatprep.subr.mxu0 0.0
      %3552 = vmatpush2.msra.mxu0 0.0
      %3553 = vmatprep.subr.mxu0 0.0
      %3554 = vmatpush2.msra.mxu0 0.0
      %3555 = vmatprep.subr.mxu0 0.0
      %3556 = vmatpush2.msra.mxu0 0.0
      %3557 = vmatprep.subr.mxu0 0.0
      %3558 = vmatpush2.msra.mxu0 0.0
      %3559 = vmatprep.subr.mxu0 0.0
      %3560 = vmatpush2.msra.mxu0 0.0
      %3561 = vmatprep.subr.mxu0 0.0
      %3562 = vmatpush2.msra.mxu0 0.0
      %3563 = vmatprep.subr.mxu0 0.0
      %3564 = vmatpush2.msra.mxu0 0.0
      %3565 = vmatprep.subr.mxu0 0.0
      %3566 = vmatpush2.msra.mxu0 0.0
      %3567 = vmatprep.subr.mxu0 0.0
      %3568 = vmatpush2.msra.mxu0 0.0
      %3569 = vmatprep.subr.mxu0 0.0
      %3570 = vmatpush2.msra.mxu0 0.0
      %3571 = vmatprep.subr.mxu0 0.0
      %3572 = vmatpush2.msra.mxu0 0.0
      %3573 = vmatprep.mubr.f32.mxu0 0.0
      %v3574 = vand.u32 %v3179, 4294901760
      %v3575 = vsub.f32 %v3179, %v3574
      %3576 = vmatmul.mubr.f32.gmra.mxu0 %v3575
      %v3577 = vpop.f32.mrf.mxu0
      %v3578 = vadd.f32 %v3456, %v3577
      %v3579 = vpop.f32.mrf.mxu0
      %3580 = vmatprep.mubr.f32.mxu0 0.0
      %v3581 = vand.u32 %v3180, 4294901760
      %v3582 = vsub.f32 %v3180, %v3581
      %3583 = vmatmul.mubr.f32.gmra.mxu0 %v3582
      %v3584 = vpop.f32.mrf.mxu0
      %v3585 = vadd.f32 %v3462, %v3584
      %v3586 = vpop.f32.mrf.mxu0
      %3587 = vmatprep.mubr.f32.mxu0 0.0
      %v3588 = vand.u32 %v3181, 4294901760
      %v3589 = vsub.f32 %v3181, %v3588
      %3590 = vmatmul.mubr.f32.gmra.mxu0 %v3589
      %v3591 = vpop.f32.mrf.mxu0
      %v3592 = vadd.f32 %v3468, %v3591
      %v3593 = vpop.f32.mrf.mxu0
      %3594 = vmatprep.mubr.f32.mxu0 0.0
      %v3595 = vand.u32 %v3182, 4294901760
      %v3596 = vsub.f32 %v3182, %v3595
      %3597 = vmatmul.mubr.f32.gmra.mxu0 %v3596
      %v3598 = vpop.f32.mrf.mxu0
      %v3599 = vadd.f32 %v3474, %v3598
      %v3600 = vpop.f32.mrf.mxu0
      %3601 = vdwg.mxu0
      %3602 = vmatprep.subr.mxu0 0.0
      %v3603 = vand.u32 %v3153, 4294901760
      %3604 = vmatpush1.msra.mxu0 %v3603
      %3605 = vmatprep.subr.mxu0 0.0
      %v3606 = vand.u32 %v3147, 4294901760
      %3607 = vmatpush1.msra.mxu0 %v3606
      %3608 = vmatprep.subr.mxu0 0.0
      %v3609 = vand.u32 %v3141, 4294901760
      %3610 = vmatpush1.msra.mxu0 %v3609
      %3611 = vmatprep.subr.mxu0 0.0
      %v3612 = vand.u32 %v3135, 4294901760
      %3613 = vmatpush1.msra.mxu0 %v3612
      %3614 = vmatprep.subr.mxu0 0.0
      %v3615 = vand.u32 %v3129, 4294901760
      %3616 = vmatpush1.msra.mxu0 %v3615
      %3617 = vmatprep.subr.mxu0 0.0
      %v3618 = vand.u32 %v3123, 4294901760
      %3619 = vmatpush1.msra.mxu0 %v3618
      %3620 = vmatprep.subr.mxu0 0.0
      %v3621 = vand.u32 %v3117, 4294901760
      %3622 = vmatpush1.msra.mxu0 %v3621
      %3623 = vmatprep.subr.mxu0 0.0
      %v3624 = vand.u32 %v3111, 4294901760
      %3625 = vmatpush1.msra.mxu0 %v3624
      %3626 = vmatprep.subr.mxu0 0.0
      %v3627 = vand.u32 %v3105, 4294901760
      %3628 = vmatpush1.msra.mxu0 %v3627
      %3629 = vmatprep.subr.mxu0 0.0
      %v3630 = vand.u32 %v3099, 4294901760
      %3631 = vmatpush1.msra.mxu0 %v3630
      %3632 = vmatprep.subr.mxu0 0.0
      %v3633 = vand.u32 %v3093, 4294901760
      %3634 = vmatpush1.msra.mxu0 %v3633
      %3635 = vmatprep.subr.mxu0 0.0
      %v3636 = vand.u32 %v3087, 4294901760
      %3637 = vmatpush1.msra.mxu0 %v3636
      %3638 = vmatprep.subr.mxu0 0.0
      %v3639 = vand.u32 %v3081, 4294901760
      %3640 = vmatpush1.msra.mxu0 %v3639
      %3641 = vmatprep.subr.mxu0 0.0
      %v3642 = vand.u32 %v3075, 4294901760
      %3643 = vmatpush1.msra.mxu0 %v3642
      %3644 = vmatprep.subr.mxu0 0.0
      %v3645 = vand.u32 %v3069, 4294901760
      %3646 = vmatpush1.msra.mxu0 %v3645
      %3647 = vmatprep.subr.mxu0 0.0
      %v3648 = vand.u32 %v3063, 4294901760
      %3649 = vmatpush1.msra.mxu0 %v3648
      %3650 = vmatprep.subr.mxu0 0.0
      %3651 = vmatpush2.msra.mxu0 0.0
      %3652 = vmatprep.subr.mxu0 0.0
      %3653 = vmatpush2.msra.mxu0 0.0
      %3654 = vmatprep.subr.mxu0 0.0
      %3655 = vmatpush2.msra.mxu0 0.0
      %3656 = vmatprep.subr.mxu0 0.0
      %3657 = vmatpush2.msra.mxu0 0.0
      %3658 = vmatprep.subr.mxu0 0.0
      %3659 = vmatpush2.msra.mxu0 0.0
      %3660 = vmatprep.subr.mxu0 0.0
      %3661 = vmatpush2.msra.mxu0 0.0
      %3662 = vmatprep.subr.mxu0 0.0
      %3663 = vmatpush2.msra.mxu0 0.0
      %3664 = vmatprep.subr.mxu0 0.0
      %3665 = vmatpush2.msra.mxu0 0.0
      %3666 = vmatprep.subr.mxu0 0.0
      %3667 = vmatpush2.msra.mxu0 0.0
      %3668 = vmatprep.subr.mxu0 0.0
      %3669 = vmatpush2.msra.mxu0 0.0
      %3670 = vmatprep.subr.mxu0 0.0
      %3671 = vmatpush2.msra.mxu0 0.0
      %3672 = vmatprep.subr.mxu0 0.0
      %3673 = vmatpush2.msra.mxu0 0.0
      %3674 = vmatprep.subr.mxu0 0.0
      %3675 = vmatpush2.msra.mxu0 0.0
      %3676 = vmatprep.subr.mxu0 0.0
      %3677 = vmatpush2.msra.mxu0 0.0
      %3678 = vmatprep.subr.mxu0 0.0
      %3679 = vmatpush2.msra.mxu0 0.0
      %3680 = vmatprep.subr.mxu0 0.0
      %3681 = vmatpush2.msra.mxu0 0.0
      %3682 = vmatprep.mubr.f32.mxu0 0.0
      %v3683 = vand.u32 %v3179, 4294901760
      %v3684 = vsub.f32 %v3179, %v3683
      %v3685 = vand.u32 %v3684, 4294901760
      %3686 = vmatmul.mubr.f32.gmra.mxu0 %v3685
      %v3687 = vpop.f32.mrf.mxu0
      %v3688 = vadd.f32 %v3578, %v3687
      %v3689 = vpop.f32.mrf.mxu0
      %3690 = vmatprep.mubr.f32.mxu0 0.0
      %v3691 = vand.u32 %v3180, 4294901760
      %v3692 = vsub.f32 %v3180, %v3691
      %v3693 = vand.u32 %v3692, 4294901760
      %3694 = vmatmul.mubr.f32.gmra.mxu0 %v3693
      %v3695 = vpop.f32.mrf.mxu0
      %v3696 = vadd.f32 %v3585, %v3695
      %v3697 = vpop.f32.mrf.mxu0
      %3698 = vmatprep.mubr.f32.mxu0 0.0
      %v3699 = vand.u32 %v3181, 4294901760
      %v3700 = vsub.f32 %v3181, %v3699
      %v3701 = vand.u32 %v3700, 4294901760
      %3702 = vmatmul.mubr.f32.gmra.mxu0 %v3701
      %v3703 = vpop.f32.mrf.mxu0
      %v3704 = vadd.f32 %v3592, %v3703
      %v3705 = vpop.f32.mrf.mxu0
      %3706 = vmatprep.mubr.f32.mxu0 0.0
      %v3707 = vand.u32 %v3182, 4294901760
      %v3708 = vsub.f32 %v3182, %v3707
      %v3709 = vand.u32 %v3708, 4294901760
      %3710 = vmatmul.mubr.f32.gmra.mxu0 %v3709
      %v3711 = vpop.f32.mrf.mxu0
      %v3712 = vadd.f32 %v3599, %v3711
      %v3713 = vpop.f32.mrf.mxu0
      %3714 = vdwg.mxu0
      %3715 = vmatprep.subr.mxu0 0.0
      %v3716 = vand.u32 %v3153, 4294901760
      %v3717 = vsub.f32 %v3153, %v3716
      %v3718 = vand.u32 %v3717, 4294901760
      %3719 = vmatpush1.msra.mxu0 %v3718
      %3720 = vmatprep.subr.mxu0 0.0
      %v3721 = vand.u32 %v3147, 4294901760
      %v3722 = vsub.f32 %v3147, %v3721
      %v3723 = vand.u32 %v3722, 4294901760
      %3724 = vmatpush1.msra.mxu0 %v3723
      %3725 = vmatprep.subr.mxu0 0.0
      %v3726 = vand.u32 %v3141, 4294901760
      %v3727 = vsub.f32 %v3141, %v3726
      %v3728 = vand.u32 %v3727, 4294901760
      %3729 = vmatpush1.msra.mxu0 %v3728
      %3730 = vmatprep.subr.mxu0 0.0
      %v3731 = vand.u32 %v3135, 4294901760
      %v3732 = vsub.f32 %v3135, %v3731
      %v3733 = vand.u32 %v3732, 4294901760
      %3734 = vmatpush1.msra.mxu0 %v3733
      %3735 = vmatprep.subr.mxu0 0.0
      %v3736 = vand.u32 %v3129, 4294901760
      %v3737 = vsub.f32 %v3129, %v3736
      %v3738 = vand.u32 %v3737, 4294901760
      %3739 = vmatpush1.msra.mxu0 %v3738
      %3740 = vmatprep.subr.mxu0 0.0
      %v3741 = vand.u32 %v3123, 4294901760
      %v3742 = vsub.f32 %v3123, %v3741
      %v3743 = vand.u32 %v3742, 4294901760
      %3744 = vmatpush1.msra.mxu0 %v3743
      %3745 = vmatprep.subr.mxu0 0.0
      %v3746 = vand.u32 %v3117, 4294901760
      %v3747 = vsub.f32 %v3117, %v3746
      %v3748 = vand.u32 %v3747, 4294901760
      %3749 = vmatpush1.msra.mxu0 %v3748
      %3750 = vmatprep.subr.mxu0 0.0
      %v3751 = vand.u32 %v3111, 4294901760
      %v3752 = vsub.f32 %v3111, %v3751
      %v3753 = vand.u32 %v3752, 4294901760
      %3754 = vmatpush1.msra.mxu0 %v3753
      %3755 = vmatprep.subr.mxu0 0.0
      %v3756 = vand.u32 %v3105, 4294901760
      %v3757 = vsub.f32 %v3105, %v3756
      %v3758 = vand.u32 %v3757, 4294901760
      %3759 = vmatpush1.msra.mxu0 %v3758
      %3760 = vmatprep.subr.mxu0 0.0
      %v3761 = vand.u32 %v3099, 4294901760
      %v3762 = vsub.f32 %v3099, %v3761
      %v3763 = vand.u32 %v3762, 4294901760
      %3764 = vmatpush1.msra.mxu0 %v3763
      %3765 = vmatprep.subr.mxu0 0.0
      %v3766 = vand.u32 %v3093, 4294901760
      %v3767 = vsub.f32 %v3093, %v3766
      %v3768 = vand.u32 %v3767, 4294901760
      %3769 = vmatpush1.msra.mxu0 %v3768
      %3770 = vmatprep.subr.mxu0 0.0
      %v3771 = vand.u32 %v3087, 4294901760
      %v3772 = vsub.f32 %v3087, %v3771
      %v3773 = vand.u32 %v3772, 4294901760
      %3774 = vmatpush1.msra.mxu0 %v3773
      %3775 = vmatprep.subr.mxu0 0.0
      %v3776 = vand.u32 %v3081, 4294901760
      %v3777 = vsub.f32 %v3081, %v3776
      %v3778 = vand.u32 %v3777, 4294901760
      %3779 = vmatpush1.msra.mxu0 %v3778
      %3780 = vmatprep.subr.mxu0 0.0
      %v3781 = vand.u32 %v3075, 4294901760
      %v3782 = vsub.f32 %v3075, %v3781
      %v3783 = vand.u32 %v3782, 4294901760
      %3784 = vmatpush1.msra.mxu0 %v3783
      %3785 = vmatprep.subr.mxu0 0.0
      %v3786 = vand.u32 %v3069, 4294901760
      %v3787 = vsub.f32 %v3069, %v3786
      %v3788 = vand.u32 %v3787, 4294901760
      %3789 = vmatpush1.msra.mxu0 %v3788
      %3790 = vmatprep.subr.mxu0 0.0
      %v3791 = vand.u32 %v3063, 4294901760
      %v3792 = vsub.f32 %v3063, %v3791
      %v3793 = vand.u32 %v3792, 4294901760
      %3794 = vmatpush1.msra.mxu0 %v3793
      %3795 = vmatprep.subr.mxu0 0.0
      %3796 = vmatpush2.msra.mxu0 0.0
      %3797 = vmatprep.subr.mxu0 0.0
      %3798 = vmatpush2.msra.mxu0 0.0
      %3799 = vmatprep.subr.mxu0 0.0
      %3800 = vmatpush2.msra.mxu0 0.0
      %3801 = vmatprep.subr.mxu0 0.0
      %3802 = vmatpush2.msra.mxu0 0.0
      %3803 = vmatprep.subr.mxu0 0.0
      %3804 = vmatpush2.msra.mxu0 0.0
      %3805 = vmatprep.subr.mxu0 0.0
      %3806 = vmatpush2.msra.mxu0 0.0
      %3807 = vmatprep.subr.mxu0 0.0
      %3808 = vmatpush2.msra.mxu0 0.0
      %3809 = vmatprep.subr.mxu0 0.0
      %3810 = vmatpush2.msra.mxu0 0.0
      %3811 = vmatprep.subr.mxu0 0.0
      %3812 = vmatpush2.msra.mxu0 0.0
      %3813 = vmatprep.subr.mxu0 0.0
      %3814 = vmatpush2.msra.mxu0 0.0
      %3815 = vmatprep.subr.mxu0 0.0
      %3816 = vmatpush2.msra.mxu0 0.0
      %3817 = vmatprep.subr.mxu0 0.0
      %3818 = vmatpush2.msra.mxu0 0.0
      %3819 = vmatprep.subr.mxu0 0.0
      %3820 = vmatpush2.msra.mxu0 0.0
      %3821 = vmatprep.subr.mxu0 0.0
      %3822 = vmatpush2.msra.mxu0 0.0
      %3823 = vmatprep.subr.mxu0 0.0
      %3824 = vmatpush2.msra.mxu0 0.0
      %3825 = vmatprep.subr.mxu0 0.0
      %3826 = vmatpush2.msra.mxu0 0.0
      %3827 = vmatprep.mubr.f32.mxu0 0.0
      %v3828 = vand.u32 %v3179, 4294901760
      %3829 = vmatmul.mubr.f32.gmra.mxu0 %v3828
      %v3830 = vpop.f32.mrf.mxu0
      %v3831 = vadd.f32 %v3688, %v3830
      %v3832 = vpop.f32.mrf.mxu0
      %3833 = vmatprep.mubr.f32.mxu0 0.0
      %v3834 = vand.u32 %v3180, 4294901760
      %3835 = vmatmul.mubr.f32.gmra.mxu0 %v3834
      %v3836 = vpop.f32.mrf.mxu0
      %v3837 = vadd.f32 %v3696, %v3836
      %v3838 = vpop.f32.mrf.mxu0
      %3839 = vmatprep.mubr.f32.mxu0 0.0
      %v3840 = vand.u32 %v3181, 4294901760
      %3841 = vmatmul.mubr.f32.gmra.mxu0 %v3840
      %v3842 = vpop.f32.mrf.mxu0
      %v3843 = vadd.f32 %v3704, %v3842
      %v3844 = vpop.f32.mrf.mxu0
      %3845 = vmatprep.mubr.f32.mxu0 0.0
      %v3846 = vand.u32 %v3182, 4294901760
      %3847 = vmatmul.mubr.f32.gmra.mxu0 %v3846
      %v3848 = vpop.f32.mrf.mxu0
      %v3849 = vadd.f32 %v3712, %v3848
      %v3850 = vpop.f32.mrf.mxu0
      %3851 = vdwg.mxu0
      %3852 = vmatprep.subr.mxu0 0.0
      %v3853 = vand.u32 %v3153, 4294901760
      %3854 = vmatpush1.msra.mxu0 %v3853
      %3855 = vmatprep.subr.mxu0 0.0
      %v3856 = vand.u32 %v3147, 4294901760
      %3857 = vmatpush1.msra.mxu0 %v3856
      %3858 = vmatprep.subr.mxu0 0.0
      %v3859 = vand.u32 %v3141, 4294901760
      %3860 = vmatpush1.msra.mxu0 %v3859
      %3861 = vmatprep.subr.mxu0 0.0
      %v3862 = vand.u32 %v3135, 4294901760
      %3863 = vmatpush1.msra.mxu0 %v3862
      %3864 = vmatprep.subr.mxu0 0.0
      %v3865 = vand.u32 %v3129, 4294901760
      %3866 = vmatpush1.msra.mxu0 %v3865
      %3867 = vmatprep.subr.mxu0 0.0
      %v3868 = vand.u32 %v3123, 4294901760
      %3869 = vmatpush1.msra.mxu0 %v3868
      %3870 = vmatprep.subr.mxu0 0.0
      %v3871 = vand.u32 %v3117, 4294901760
      %3872 = vmatpush1.msra.mxu0 %v3871
      %3873 = vmatprep.subr.mxu0 0.0
      %v3874 = vand.u32 %v3111, 4294901760
      %3875 = vmatpush1.msra.mxu0 %v3874
      %3876 = vmatprep.subr.mxu0 0.0
      %v3877 = vand.u32 %v3105, 4294901760
      %3878 = vmatpush1.msra.mxu0 %v3877
      %3879 = vmatprep.subr.mxu0 0.0
      %v3880 = vand.u32 %v3099, 4294901760
      %3881 = vmatpush1.msra.mxu0 %v3880
      %3882 = vmatprep.subr.mxu0 0.0
      %v3883 = vand.u32 %v3093, 4294901760
      %3884 = vmatpush1.msra.mxu0 %v3883
      %3885 = vmatprep.subr.mxu0 0.0
      %v3886 = vand.u32 %v3087, 4294901760
      %3887 = vmatpush1.msra.mxu0 %v3886
      %3888 = vmatprep.subr.mxu0 0.0
      %v3889 = vand.u32 %v3081, 4294901760
      %3890 = vmatpush1.msra.mxu0 %v3889
      %3891 = vmatprep.subr.mxu0 0.0
      %v3892 = vand.u32 %v3075, 4294901760
      %3893 = vmatpush1.msra.mxu0 %v3892
      %3894 = vmatprep.subr.mxu0 0.0
      %v3895 = vand.u32 %v3069, 4294901760
      %3896 = vmatpush1.msra.mxu0 %v3895
      %3897 = vmatprep.subr.mxu0 0.0
      %v3898 = vand.u32 %v3063, 4294901760
      %3899 = vmatpush1.msra.mxu0 %v3898
      %3900 = vmatprep.subr.mxu0 0.0
      %3901 = vmatpush2.msra.mxu0 0.0
      %3902 = vmatprep.subr.mxu0 0.0
      %3903 = vmatpush2.msra.mxu0 0.0
      %3904 = vmatprep.subr.mxu0 0.0
      %3905 = vmatpush2.msra.mxu0 0.0
      %3906 = vmatprep.subr.mxu0 0.0
      %3907 = vmatpush2.msra.mxu0 0.0
      %3908 = vmatprep.subr.mxu0 0.0
      %3909 = vmatpush2.msra.mxu0 0.0
      %3910 = vmatprep.subr.mxu0 0.0
      %3911 = vmatpush2.msra.mxu0 0.0
      %3912 = vmatprep.subr.mxu0 0.0
      %3913 = vmatpush2.msra.mxu0 0.0
      %3914 = vmatprep.subr.mxu0 0.0
      %3915 = vmatpush2.msra.mxu0 0.0
      %3916 = vmatprep.subr.mxu0 0.0
      %3917 = vmatpush2.msra.mxu0 0.0
      %3918 = vmatprep.subr.mxu0 0.0
      %3919 = vmatpush2.msra.mxu0 0.0
      %3920 = vmatprep.subr.mxu0 0.0
      %3921 = vmatpush2.msra.mxu0 0.0
      %3922 = vmatprep.subr.mxu0 0.0
      %3923 = vmatpush2.msra.mxu0 0.0
      %3924 = vmatprep.subr.mxu0 0.0
      %3925 = vmatpush2.msra.mxu0 0.0
      %3926 = vmatprep.subr.mxu0 0.0
      %3927 = vmatpush2.msra.mxu0 0.0
      %3928 = vmatprep.subr.mxu0 0.0
      %3929 = vmatpush2.msra.mxu0 0.0
      %3930 = vmatprep.subr.mxu0 0.0
      %3931 = vmatpush2.msra.mxu0 0.0
      %3932 = vmatprep.mubr.f32.mxu0 0.0
      %v3933 = vand.u32 %v3179, 4294901760
      %3934 = vmatmul.mubr.f32.gmra.mxu0 %v3933
      %v3935 = vpop.f32.mrf.mxu0
      %v3936 = vadd.f32 %v3831, %v3935
      %v3937 = vpop.f32.mrf.mxu0
      %3938 = vmatprep.mubr.f32.mxu0 0.0
      %v3939 = vand.u32 %v3180, 4294901760
      %3940 = vmatmul.mubr.f32.gmra.mxu0 %v3939
      %v3941 = vpop.f32.mrf.mxu0
      %v3942 = vadd.f32 %v3837, %v3941
      %v3943 = vpop.f32.mrf.mxu0
      %3944 = vmatprep.mubr.f32.mxu0 0.0
      %v3945 = vand.u32 %v3181, 4294901760
      %3946 = vmatmul.mubr.f32.gmra.mxu0 %v3945
      %v3947 = vpop.f32.mrf.mxu0
      %v3948 = vadd.f32 %v3843, %v3947
      %v3949 = vpop.f32.mrf.mxu0
      %3950 = vmatprep.mubr.f32.mxu0 0.0
      %v3951 = vand.u32 %v3182, 4294901760
      %3952 = vmatmul.mubr.f32.gmra.mxu0 %v3951
      %v3953 = vpop.f32.mrf.mxu0
      %v3954 = vadd.f32 %v3849, %v3953
      %v3955 = vpop.f32.mrf.mxu0
      %3956 = vdwg.mxu0
      %v3957 = vadd.f32 %v3183, %v3936
      %v3958 = vadd.f32 %v3184, %v3942
      %v3959 = vadd.f32 %v3185, %v3948
      %v3960 = vadd.f32 %v3186, %v3954
      %3961 = vst [vmem:[#allocation2] sm:$0xff] %v3957
      %3962 = vst [vmem:[#allocation2 + $0x8] sm:$0xff] %v3958
      %3963 = vst [vmem:[#allocation2 + $0x10] sm:$0xff] %v3959
      %3964 = vst [vmem:[#allocation2 + $0x18] sm:$0xff] %v3960
      %p3965 = scmp.eq.s32.totalorder %s22, 1
      // Predicated region
      $region49: #{spline_conv.1} parent=43 // pred_check
        %p3966 = pneg %p3965
      $region50: #{spline_conv.1} parent=43 // pred_check_branch
        %3968 = sbr.rel (%p3966) target = $region52
      $region51: #{spline_conv.1} parent=43 // pred_region
        %v3969 = vld [vmem:[#allocation2] sm:$0xff]
        %v3970 = vld [vmem:[#allocation2 + $0x8] sm:$0xff]
        %v3971 = vld [vmem:[#allocation2 + $0x10] sm:$0xff]
        %v3972 = vld [vmem:[#allocation2 + $0x18] sm:$0xff]
        %v3973 = vmax.f32 %v3969, 1.0
        %v3974 = vmax.f32 %v3970, 1.0
        %v3975 = vmax.f32 %v3971, 1.0
        %v3976 = vmax.f32 %v3972, 1.0
        %v3977 = vrcp.pop %v3973
        %v3978 = vrcp.pop %v3974
        %v3979 = vrcp.pop %v3975
        %v3980 = vrcp.pop %v3976
        %v3981 = vmul.f32 %v3973, %v3977
        %v3982 = vmul.f32 %v3974, %v3978
        %v3983 = vmul.f32 %v3975, %v3979
        %v3984 = vmul.f32 %v3976, %v3980
        %v3985 = vsub.f32 2.0, %v3981
        %v3986 = vsub.f32 2.0, %v3982
        %v3987 = vsub.f32 2.0, %v3983
        %v3988 = vsub.f32 2.0, %v3984
        %v3989 = vmul.f32 %v3977, %v3985
        %v3990 = vmul.f32 %v3978, %v3986
        %v3991 = vmul.f32 %v3979, %v3987
        %v3992 = vmul.f32 %v3980, %v3988
        %s3993 = scalar_lea.vmem %s0, %s3161
        %v3994 = vld [vmem:[%s3993] sm:$0xff]
        %v3995 = vld [vmem:[%s3993 + $0x8] sm:$0xff]
        %v3996 = vld [vmem:[%s3993 + $0x10] sm:$0xff]
        %v3997 = vld [vmem:[%s3993 + $0x18] sm:$0xff]
        %v3998 = vld [vmem:[%s5] sm:$0xff]
        %v3999 = vld [vmem:[%s5 + $0x8] sm:$0xff]
        %v4001 = vsel %vm1953, %v3994, 0
        %v4004 = vsel %vm1953, %v3995, 0
        %v4007 = vsel %vm1953, %v3996, 0
        %v4010 = vsel %vm1953, %v3997, 0
        %4012 = vmatprep.subr.mxu0 0.0
        %4013 = vmatpush1.msra.mxu0 0.0
        %4014 = vmatprep.subr.mxu0 0.0
        %4015 = vmatpush1.msra.mxu0 0.0
        %4016 = vmatprep.subr.mxu0 0.0
        %4017 = vmatpush1.msra.mxu0 0.0
        %4018 = vmatprep.subr.mxu0 0.0
        %4019 = vmatpush1.msra.mxu0 0.0
        %4020 = vmatprep.subr.mxu0 0.0
        %4021 = vmatpush1.msra.mxu0 0.0
        %4022 = vmatprep.subr.mxu0 0.0
        %4023 = vmatpush1.msra.mxu0 0.0
        %4024 = vmatprep.subr.mxu0 0.0
        %4025 = vmatpush1.msra.mxu0 0.0
        %4026 = vmatprep.subr.mxu0 0.0
        %4027 = vmatpush1.msra.mxu0 0.0
        %4028 = vmatprep.subr.mxu0 0.0
        %4029 = vmatpush1.msra.mxu0 0.0
        %4030 = vmatprep.subr.mxu0 0.0
        %4031 = vmatpush1.msra.mxu0 0.0
        %4032 = vmatprep.subr.mxu0 0.0
        %4033 = vmatpush1.msra.mxu0 0.0
        %4034 = vmatprep.subr.mxu0 0.0
        %4035 = vmatpush1.msra.mxu0 0.0
        %4036 = vmatprep.subr.mxu0 0.0
        %4037 = vmatpush1.msra.mxu0 0.0
        %4038 = vmatprep.subr.mxu0 0.0
        %4039 = vmatpush1.msra.mxu0 0.0
        %4040 = vmatprep.subr.mxu0 0.0
        %v4041 = vand.u32 %v3999, 4294901760
        %4042 = vmatpush1.msra.mxu0 %v4041
        %4043 = vmatprep.subr.mxu0 0.0
        %v4044 = vand.u32 %v3998, 4294901760
        %4045 = vmatpush1.msra.mxu0 %v4044
        %4046 = vmatprep.subr.mxu0 0.0
        %4047 = vmatpush2.msra.mxu0 0.0
        %4048 = vmatprep.subr.mxu0 0.0
        %4049 = vmatpush2.msra.mxu0 0.0
        %4050 = vmatprep.subr.mxu0 0.0
        %4051 = vmatpush2.msra.mxu0 0.0
        %4052 = vmatprep.subr.mxu0 0.0
        %4053 = vmatpush2.msra.mxu0 0.0
        %4054 = vmatprep.subr.mxu0 0.0
        %4055 = vmatpush2.msra.mxu0 0.0
        %4056 = vmatprep.subr.mxu0 0.0
        %4057 = vmatpush2.msra.mxu0 0.0
        %4058 = vmatprep.subr.mxu0 0.0
        %4059 = vmatpush2.msra.mxu0 0.0
        %4060 = vmatprep.subr.mxu0 0.0
        %4061 = vmatpush2.msra.mxu0 0.0
        %4062 = vmatprep.subr.mxu0 0.0
        %4063 = vmatpush2.msra.mxu0 0.0
        %4064 = vmatprep.subr.mxu0 0.0
        %4065 = vmatpush2.msra.mxu0 0.0
        %4066 = vmatprep.subr.mxu0 0.0
        %4067 = vmatpush2.msra.mxu0 0.0
        %4068 = vmatprep.subr.mxu0 0.0
        %4069 = vmatpush2.msra.mxu0 0.0
        %4070 = vmatprep.subr.mxu0 0.0
        %4071 = vmatpush2.msra.mxu0 0.0
        %4072 = vmatprep.subr.mxu0 0.0
        %4073 = vmatpush2.msra.mxu0 0.0
        %4074 = vmatprep.subr.mxu0 0.0
        %4075 = vmatpush2.msra.mxu0 0.0
        %4076 = vmatprep.subr.mxu0 0.0
        %4077 = vmatpush2.msra.mxu0 0.0
        %4078 = vmatprep.mubr.f32.mxu0 0.0
        %v4079 = vand.u32 %v4001, 4294901760
        %v4080 = vsub.f32 %v4001, %v4079
        %v4081 = vand.u32 %v4080, 4294901760
        %v4082 = vsub.f32 %v4080, %v4081
        %v4083 = vand.u32 %v4082, 4294901760
        %4084 = vmatmul.mubr.f32.gmra.mxu0 %v4083
        %v4085 = vpop.f32.mrf.mxu0
        %v4086 = vadd.f32 0.0, %v4085
        %v4087 = vpop.f32.mrf.mxu0
        %4088 = vmatprep.mubr.f32.mxu0 0.0
        %v4089 = vand.u32 %v4004, 4294901760
        %v4090 = vsub.f32 %v4004, %v4089
        %v4091 = vand.u32 %v4090, 4294901760
        %v4092 = vsub.f32 %v4090, %v4091
        %v4093 = vand.u32 %v4092, 4294901760
        %4094 = vmatmul.mubr.f32.gmra.mxu0 %v4093
        %v4095 = vpop.f32.mrf.mxu0
        %v4096 = vadd.f32 0.0, %v4095
        %v4097 = vpop.f32.mrf.mxu0
        %4098 = vmatprep.mubr.f32.mxu0 0.0
        %v4099 = vand.u32 %v4007, 4294901760
        %v4100 = vsub.f32 %v4007, %v4099
        %v4101 = vand.u32 %v4100, 4294901760
        %v4102 = vsub.f32 %v4100, %v4101
        %v4103 = vand.u32 %v4102, 4294901760
        %4104 = vmatmul.mubr.f32.gmra.mxu0 %v4103
        %v4105 = vpop.f32.mrf.mxu0
        %v4106 = vadd.f32 0.0, %v4105
        %v4107 = vpop.f32.mrf.mxu0
        %4108 = vmatprep.mubr.f32.mxu0 0.0
        %v4109 = vand.u32 %v4010, 4294901760
        %v4110 = vsub.f32 %v4010, %v4109
        %v4111 = vand.u32 %v4110, 4294901760
        %v4112 = vsub.f32 %v4110, %v4111
        %v4113 = vand.u32 %v4112, 4294901760
        %4114 = vmatmul.mubr.f32.gmra.mxu0 %v4113
        %v4115 = vpop.f32.mrf.mxu0
        %v4116 = vadd.f32 0.0, %v4115
        %v4117 = vpop.f32.mrf.mxu0
        %4118 = vdwg.mxu0
        %4119 = vmatprep.subr.mxu0 0.0
        %4120 = vmatpush1.msra.mxu0 0.0
        %4121 = vmatprep.subr.mxu0 0.0
        %4122 = vmatpush1.msra.mxu0 0.0
        %4123 = vmatprep.subr.mxu0 0.0
        %4124 = vmatpush1.msra.mxu0 0.0
        %4125 = vmatprep.subr.mxu0 0.0
        %4126 = vmatpush1.msra.mxu0 0.0
        %4127 = vmatprep.subr.mxu0 0.0
        %4128 = vmatpush1.msra.mxu0 0.0
        %4129 = vmatprep.subr.mxu0 0.0
        %4130 = vmatpush1.msra.mxu0 0.0
        %4131 = vmatprep.subr.mxu0 0.0
        %4132 = vmatpush1.msra.mxu0 0.0
        %4133 = vmatprep.subr.mxu0 0.0
        %4134 = vmatpush1.msra.mxu0 0.0
        %4135 = vmatprep.subr.mxu0 0.0
        %4136 = vmatpush1.msra.mxu0 0.0
        %4137 = vmatprep.subr.mxu0 0.0
        %4138 = vmatpush1.msra.mxu0 0.0
        %4139 = vmatprep.subr.mxu0 0.0
        %4140 = vmatpush1.msra.mxu0 0.0
        %4141 = vmatprep.subr.mxu0 0.0
        %4142 = vmatpush1.msra.mxu0 0.0
        %4143 = vmatprep.subr.mxu0 0.0
        %4144 = vmatpush1.msra.mxu0 0.0
        %4145 = vmatprep.subr.mxu0 0.0
        %4146 = vmatpush1.msra.mxu0 0.0
        %4147 = vmatprep.subr.mxu0 0.0
        %v4148 = vand.u32 %v3999, 4294901760
        %v4149 = vsub.f32 %v3999, %v4148
        %v4150 = vand.u32 %v4149, 4294901760
        %v4151 = vsub.f32 %v4149, %v4150
        %v4152 = vand.u32 %v4151, 4294901760
        %4153 = vmatpush1.msra.mxu0 %v4152
        %4154 = vmatprep.subr.mxu0 0.0
        %v4155 = vand.u32 %v3998, 4294901760
        %v4156 = vsub.f32 %v3998, %v4155
        %v4157 = vand.u32 %v4156, 4294901760
        %v4158 = vsub.f32 %v4156, %v4157
        %v4159 = vand.u32 %v4158, 4294901760
        %4160 = vmatpush1.msra.mxu0 %v4159
        %4161 = vmatprep.subr.mxu0 0.0
        %4162 = vmatpush2.msra.mxu0 0.0
        %4163 = vmatprep.subr.mxu0 0.0
        %4164 = vmatpush2.msra.mxu0 0.0
        %4165 = vmatprep.subr.mxu0 0.0
        %4166 = vmatpush2.msra.mxu0 0.0
        %4167 = vmatprep.subr.mxu0 0.0
        %4168 = vmatpush2.msra.mxu0 0.0
        %4169 = vmatprep.subr.mxu0 0.0
        %4170 = vmatpush2.msra.mxu0 0.0
        %4171 = vmatprep.subr.mxu0 0.0
        %4172 = vmatpush2.msra.mxu0 0.0
        %4173 = vmatprep.subr.mxu0 0.0
        %4174 = vmatpush2.msra.mxu0 0.0
        %4175 = vmatprep.subr.mxu0 0.0
        %4176 = vmatpush2.msra.mxu0 0.0
        %4177 = vmatprep.subr.mxu0 0.0
        %4178 = vmatpush2.msra.mxu0 0.0
        %4179 = vmatprep.subr.mxu0 0.0
        %4180 = vmatpush2.msra.mxu0 0.0
        %4181 = vmatprep.subr.mxu0 0.0
        %4182 = vmatpush2.msra.mxu0 0.0
        %4183 = vmatprep.subr.mxu0 0.0
        %4184 = vmatpush2.msra.mxu0 0.0
        %4185 = vmatprep.subr.mxu0 0.0
        %4186 = vmatpush2.msra.mxu0 0.0
        %4187 = vmatprep.subr.mxu0 0.0
        %4188 = vmatpush2.msra.mxu0 0.0
        %4189 = vmatprep.subr.mxu0 0.0
        %4190 = vmatpush2.msra.mxu0 0.0
        %4191 = vmatprep.subr.mxu0 0.0
        %4192 = vmatpush2.msra.mxu0 0.0
        %4193 = vmatprep.mubr.f32.mxu0 0.0
        %v4194 = vand.u32 %v4001, 4294901760
        %4195 = vmatmul.mubr.f32.gmra.mxu0 %v4194
        %v4196 = vpop.f32.mrf.mxu0
        %v4197 = vadd.f32 %v4086, %v4196
        %v4198 = vpop.f32.mrf.mxu0
        %4199 = vmatprep.mubr.f32.mxu0 0.0
        %v4200 = vand.u32 %v4004, 4294901760
        %4201 = vmatmul.mubr.f32.gmra.mxu0 %v4200
        %v4202 = vpop.f32.mrf.mxu0
        %v4203 = vadd.f32 %v4096, %v4202
        %v4204 = vpop.f32.mrf.mxu0
        %4205 = vmatprep.mubr.f32.mxu0 0.0
        %v4206 = vand.u32 %v4007, 4294901760
        %4207 = vmatmul.mubr.f32.gmra.mxu0 %v4206
        %v4208 = vpop.f32.mrf.mxu0
        %v4209 = vadd.f32 %v4106, %v4208
        %v4210 = vpop.f32.mrf.mxu0
        %4211 = vmatprep.mubr.f32.mxu0 0.0
        %v4212 = vand.u32 %v4010, 4294901760
        %4213 = vmatmul.mubr.f32.gmra.mxu0 %v4212
        %v4214 = vpop.f32.mrf.mxu0
        %v4215 = vadd.f32 %v4116, %v4214
        %v4216 = vpop.f32.mrf.mxu0
        %4217 = vdwg.mxu0
        %4218 = vmatprep.subr.mxu0 0.0
        %4219 = vmatpush1.msra.mxu0 0.0
        %4220 = vmatprep.subr.mxu0 0.0
        %4221 = vmatpush1.msra.mxu0 0.0
        %4222 = vmatprep.subr.mxu0 0.0
        %4223 = vmatpush1.msra.mxu0 0.0
        %4224 = vmatprep.subr.mxu0 0.0
        %4225 = vmatpush1.msra.mxu0 0.0
        %4226 = vmatprep.subr.mxu0 0.0
        %4227 = vmatpush1.msra.mxu0 0.0
        %4228 = vmatprep.subr.mxu0 0.0
        %4229 = vmatpush1.msra.mxu0 0.0
        %4230 = vmatprep.subr.mxu0 0.0
        %4231 = vmatpush1.msra.mxu0 0.0
        %4232 = vmatprep.subr.mxu0 0.0
        %4233 = vmatpush1.msra.mxu0 0.0
        %4234 = vmatprep.subr.mxu0 0.0
        %4235 = vmatpush1.msra.mxu0 0.0
        %4236 = vmatprep.subr.mxu0 0.0
        %4237 = vmatpush1.msra.mxu0 0.0
        %4238 = vmatprep.subr.mxu0 0.0
        %4239 = vmatpush1.msra.mxu0 0.0
        %4240 = vmatprep.subr.mxu0 0.0
        %4241 = vmatpush1.msra.mxu0 0.0
        %4242 = vmatprep.subr.mxu0 0.0
        %4243 = vmatpush1.msra.mxu0 0.0
        %4244 = vmatprep.subr.mxu0 0.0
        %4245 = vmatpush1.msra.mxu0 0.0
        %4246 = vmatprep.subr.mxu0 0.0
        %v4247 = vand.u32 %v3999, 4294901760
        %v4248 = vsub.f32 %v3999, %v4247
        %4249 = vmatpush1.msra.mxu0 %v4248
        %4250 = vmatprep.subr.mxu0 0.0
        %v4251 = vand.u32 %v3998, 4294901760
        %v4252 = vsub.f32 %v3998, %v4251
        %4253 = vmatpush1.msra.mxu0 %v4252
        %4254 = vmatprep.subr.mxu0 0.0
        %4255 = vmatpush2.msra.mxu0 0.0
        %4256 = vmatprep.subr.mxu0 0.0
        %4257 = vmatpush2.msra.mxu0 0.0
        %4258 = vmatprep.subr.mxu0 0.0
        %4259 = vmatpush2.msra.mxu0 0.0
        %4260 = vmatprep.subr.mxu0 0.0
        %4261 = vmatpush2.msra.mxu0 0.0
        %4262 = vmatprep.subr.mxu0 0.0
        %4263 = vmatpush2.msra.mxu0 0.0
        %4264 = vmatprep.subr.mxu0 0.0
        %4265 = vmatpush2.msra.mxu0 0.0
        %4266 = vmatprep.subr.mxu0 0.0
        %4267 = vmatpush2.msra.mxu0 0.0
        %4268 = vmatprep.subr.mxu0 0.0
        %4269 = vmatpush2.msra.mxu0 0.0
        %4270 = vmatprep.subr.mxu0 0.0
        %4271 = vmatpush2.msra.mxu0 0.0
        %4272 = vmatprep.subr.mxu0 0.0
        %4273 = vmatpush2.msra.mxu0 0.0
        %4274 = vmatprep.subr.mxu0 0.0
        %4275 = vmatpush2.msra.mxu0 0.0
        %4276 = vmatprep.subr.mxu0 0.0
        %4277 = vmatpush2.msra.mxu0 0.0
        %4278 = vmatprep.subr.mxu0 0.0
        %4279 = vmatpush2.msra.mxu0 0.0
        %4280 = vmatprep.subr.mxu0 0.0
        %4281 = vmatpush2.msra.mxu0 0.0
        %4282 = vmatprep.subr.mxu0 0.0
        %4283 = vmatpush2.msra.mxu0 0.0
        %4284 = vmatprep.subr.mxu0 0.0
        %4285 = vmatpush2.msra.mxu0 0.0
        %4286 = vmatprep.mubr.f32.mxu0 0.0
        %v4287 = vand.u32 %v4001, 4294901760
        %v4288 = vsub.f32 %v4001, %v4287
        %4289 = vmatmul.mubr.f32.gmra.mxu0 %v4288
        %v4290 = vpop.f32.mrf.mxu0
        %v4291 = vadd.f32 %v4197, %v4290
        %v4292 = vpop.f32.mrf.mxu0
        %4293 = vmatprep.mubr.f32.mxu0 0.0
        %v4294 = vand.u32 %v4004, 4294901760
        %v4295 = vsub.f32 %v4004, %v4294
        %4296 = vmatmul.mubr.f32.gmra.mxu0 %v4295
        %v4297 = vpop.f32.mrf.mxu0
        %v4298 = vadd.f32 %v4203, %v4297
        %v4299 = vpop.f32.mrf.mxu0
        %4300 = vmatprep.mubr.f32.mxu0 0.0
        %v4301 = vand.u32 %v4007, 4294901760
        %v4302 = vsub.f32 %v4007, %v4301
        %4303 = vmatmul.mubr.f32.gmra.mxu0 %v4302
        %v4304 = vpop.f32.mrf.mxu0
        %v4305 = vadd.f32 %v4209, %v4304
        %v4306 = vpop.f32.mrf.mxu0
        %4307 = vmatprep.mubr.f32.mxu0 0.0
        %v4308 = vand.u32 %v4010, 4294901760
        %v4309 = vsub.f32 %v4010, %v4308
        %4310 = vmatmul.mubr.f32.gmra.mxu0 %v4309
        %v4311 = vpop.f32.mrf.mxu0
        %v4312 = vadd.f32 %v4215, %v4311
        %v4313 = vpop.f32.mrf.mxu0
        %4314 = vdwg.mxu0
        %4315 = vmatprep.subr.mxu0 0.0
        %4316 = vmatpush1.msra.mxu0 0.0
        %4317 = vmatprep.subr.mxu0 0.0
        %4318 = vmatpush1.msra.mxu0 0.0
        %4319 = vmatprep.subr.mxu0 0.0
        %4320 = vmatpush1.msra.mxu0 0.0
        %4321 = vmatprep.subr.mxu0 0.0
        %4322 = vmatpush1.msra.mxu0 0.0
        %4323 = vmatprep.subr.mxu0 0.0
        %4324 = vmatpush1.msra.mxu0 0.0
        %4325 = vmatprep.subr.mxu0 0.0
        %4326 = vmatpush1.msra.mxu0 0.0
        %4327 = vmatprep.subr.mxu0 0.0
        %4328 = vmatpush1.msra.mxu0 0.0
        %4329 = vmatprep.subr.mxu0 0.0
        %4330 = vmatpush1.msra.mxu0 0.0
        %4331 = vmatprep.subr.mxu0 0.0
        %4332 = vmatpush1.msra.mxu0 0.0
        %4333 = vmatprep.subr.mxu0 0.0
        %4334 = vmatpush1.msra.mxu0 0.0
        %4335 = vmatprep.subr.mxu0 0.0
        %4336 = vmatpush1.msra.mxu0 0.0
        %4337 = vmatprep.subr.mxu0 0.0
        %4338 = vmatpush1.msra.mxu0 0.0
        %4339 = vmatprep.subr.mxu0 0.0
        %4340 = vmatpush1.msra.mxu0 0.0
        %4341 = vmatprep.subr.mxu0 0.0
        %4342 = vmatpush1.msra.mxu0 0.0
        %4343 = vmatprep.subr.mxu0 0.0
        %v4344 = vand.u32 %v3999, 4294901760
        %4345 = vmatpush1.msra.mxu0 %v4344
        %4346 = vmatprep.subr.mxu0 0.0
        %v4347 = vand.u32 %v3998, 4294901760
        %4348 = vmatpush1.msra.mxu0 %v4347
        %4349 = vmatprep.subr.mxu0 0.0
        %4350 = vmatpush2.msra.mxu0 0.0
        %4351 = vmatprep.subr.mxu0 0.0
        %4352 = vmatpush2.msra.mxu0 0.0
        %4353 = vmatprep.subr.mxu0 0.0
        %4354 = vmatpush2.msra.mxu0 0.0
        %4355 = vmatprep.subr.mxu0 0.0
        %4356 = vmatpush2.msra.mxu0 0.0
        %4357 = vmatprep.subr.mxu0 0.0
        %4358 = vmatpush2.msra.mxu0 0.0
        %4359 = vmatprep.subr.mxu0 0.0
        %4360 = vmatpush2.msra.mxu0 0.0
        %4361 = vmatprep.subr.mxu0 0.0
        %4362 = vmatpush2.msra.mxu0 0.0
        %4363 = vmatprep.subr.mxu0 0.0
        %4364 = vmatpush2.msra.mxu0 0.0
        %4365 = vmatprep.subr.mxu0 0.0
        %4366 = vmatpush2.msra.mxu0 0.0
        %4367 = vmatprep.subr.mxu0 0.0
        %4368 = vmatpush2.msra.mxu0 0.0
        %4369 = vmatprep.subr.mxu0 0.0
        %4370 = vmatpush2.msra.mxu0 0.0
        %4371 = vmatprep.subr.mxu0 0.0
        %4372 = vmatpush2.msra.mxu0 0.0
        %4373 = vmatprep.subr.mxu0 0.0
        %4374 = vmatpush2.msra.mxu0 0.0
        %4375 = vmatprep.subr.mxu0 0.0
        %4376 = vmatpush2.msra.mxu0 0.0
        %4377 = vmatprep.subr.mxu0 0.0
        %4378 = vmatpush2.msra.mxu0 0.0
        %4379 = vmatprep.subr.mxu0 0.0
        %4380 = vmatpush2.msra.mxu0 0.0
        %4381 = vmatprep.mubr.f32.mxu0 0.0
        %v4382 = vand.u32 %v4001, 4294901760
        %v4383 = vsub.f32 %v4001, %v4382
        %v4384 = vand.u32 %v4383, 4294901760
        %4385 = vmatmul.mubr.f32.gmra.mxu0 %v4384
        %v4386 = vpop.f32.mrf.mxu0
        %v4387 = vadd.f32 %v4291, %v4386
        %v4388 = vpop.f32.mrf.mxu0
        %4389 = vmatprep.mubr.f32.mxu0 0.0
        %v4390 = vand.u32 %v4004, 4294901760
        %v4391 = vsub.f32 %v4004, %v4390
        %v4392 = vand.u32 %v4391, 4294901760
        %4393 = vmatmul.mubr.f32.gmra.mxu0 %v4392
        %v4394 = vpop.f32.mrf.mxu0
        %v4395 = vadd.f32 %v4298, %v4394
        %v4396 = vpop.f32.mrf.mxu0
        %4397 = vmatprep.mubr.f32.mxu0 0.0
        %v4398 = vand.u32 %v4007, 4294901760
        %v4399 = vsub.f32 %v4007, %v4398
        %v4400 = vand.u32 %v4399, 4294901760
        %4401 = vmatmul.mubr.f32.gmra.mxu0 %v4400
        %v4402 = vpop.f32.mrf.mxu0
        %v4403 = vadd.f32 %v4305, %v4402
        %v4404 = vpop.f32.mrf.mxu0
        %4405 = vmatprep.mubr.f32.mxu0 0.0
        %v4406 = vand.u32 %v4010, 4294901760
        %v4407 = vsub.f32 %v4010, %v4406
        %v4408 = vand.u32 %v4407, 4294901760
        %4409 = vmatmul.mubr.f32.gmra.mxu0 %v4408
        %v4410 = vpop.f32.mrf.mxu0
        %v4411 = vadd.f32 %v4312, %v4410
        %v4412 = vpop.f32.mrf.mxu0
        %4413 = vdwg.mxu0
        %4414 = vmatprep.subr.mxu0 0.0
        %4415 = vmatpush1.msra.mxu0 0.0
        %4416 = vmatprep.subr.mxu0 0.0
        %4417 = vmatpush1.msra.mxu0 0.0
        %4418 = vmatprep.subr.mxu0 0.0
        %4419 = vmatpush1.msra.mxu0 0.0
        %4420 = vmatprep.subr.mxu0 0.0
        %4421 = vmatpush1.msra.mxu0 0.0
        %4422 = vmatprep.subr.mxu0 0.0
        %4423 = vmatpush1.msra.mxu0 0.0
        %4424 = vmatprep.subr.mxu0 0.0
        %4425 = vmatpush1.msra.mxu0 0.0
        %4426 = vmatprep.subr.mxu0 0.0
        %4427 = vmatpush1.msra.mxu0 0.0
        %4428 = vmatprep.subr.mxu0 0.0
        %4429 = vmatpush1.msra.mxu0 0.0
        %4430 = vmatprep.subr.mxu0 0.0
        %4431 = vmatpush1.msra.mxu0 0.0
        %4432 = vmatprep.subr.mxu0 0.0
        %4433 = vmatpush1.msra.mxu0 0.0
        %4434 = vmatprep.subr.mxu0 0.0
        %4435 = vmatpush1.msra.mxu0 0.0
        %4436 = vmatprep.subr.mxu0 0.0
        %4437 = vmatpush1.msra.mxu0 0.0
        %4438 = vmatprep.subr.mxu0 0.0
        %4439 = vmatpush1.msra.mxu0 0.0
        %4440 = vmatprep.subr.mxu0 0.0
        %4441 = vmatpush1.msra.mxu0 0.0
        %4442 = vmatprep.subr.mxu0 0.0
        %v4443 = vand.u32 %v3999, 4294901760
        %v4444 = vsub.f32 %v3999, %v4443
        %v4445 = vand.u32 %v4444, 4294901760
        %4446 = vmatpush1.msra.mxu0 %v4445
        %4447 = vmatprep.subr.mxu0 0.0
        %v4448 = vand.u32 %v3998, 4294901760
        %v4449 = vsub.f32 %v3998, %v4448
        %v4450 = vand.u32 %v4449, 4294901760
        %4451 = vmatpush1.msra.mxu0 %v4450
        %4452 = vmatprep.subr.mxu0 0.0
        %4453 = vmatpush2.msra.mxu0 0.0
        %4454 = vmatprep.subr.mxu0 0.0
        %4455 = vmatpush2.msra.mxu0 0.0
        %4456 = vmatprep.subr.mxu0 0.0
        %4457 = vmatpush2.msra.mxu0 0.0
        %4458 = vmatprep.subr.mxu0 0.0
        %4459 = vmatpush2.msra.mxu0 0.0
        %4460 = vmatprep.subr.mxu0 0.0
        %4461 = vmatpush2.msra.mxu0 0.0
        %4462 = vmatprep.subr.mxu0 0.0
        %4463 = vmatpush2.msra.mxu0 0.0
        %4464 = vmatprep.subr.mxu0 0.0
        %4465 = vmatpush2.msra.mxu0 0.0
        %4466 = vmatprep.subr.mxu0 0.0
        %4467 = vmatpush2.msra.mxu0 0.0
        %4468 = vmatprep.subr.mxu0 0.0
        %4469 = vmatpush2.msra.mxu0 0.0
        %4470 = vmatprep.subr.mxu0 0.0
        %4471 = vmatpush2.msra.mxu0 0.0
        %4472 = vmatprep.subr.mxu0 0.0
        %4473 = vmatpush2.msra.mxu0 0.0
        %4474 = vmatprep.subr.mxu0 0.0
        %4475 = vmatpush2.msra.mxu0 0.0
        %4476 = vmatprep.subr.mxu0 0.0
        %4477 = vmatpush2.msra.mxu0 0.0
        %4478 = vmatprep.subr.mxu0 0.0
        %4479 = vmatpush2.msra.mxu0 0.0
        %4480 = vmatprep.subr.mxu0 0.0
        %4481 = vmatpush2.msra.mxu0 0.0
        %4482 = vmatprep.subr.mxu0 0.0
        %4483 = vmatpush2.msra.mxu0 0.0
        %4484 = vmatprep.mubr.f32.mxu0 0.0
        %v4485 = vand.u32 %v4001, 4294901760
        %4486 = vmatmul.mubr.f32.gmra.mxu0 %v4485
        %v4487 = vpop.f32.mrf.mxu0
        %v4488 = vadd.f32 %v4387, %v4487
        %v4489 = vpop.f32.mrf.mxu0
        %4490 = vmatprep.mubr.f32.mxu0 0.0
        %v4491 = vand.u32 %v4004, 4294901760
        %4492 = vmatmul.mubr.f32.gmra.mxu0 %v4491
        %v4493 = vpop.f32.mrf.mxu0
        %v4494 = vadd.f32 %v4395, %v4493
        %v4495 = vpop.f32.mrf.mxu0
        %4496 = vmatprep.mubr.f32.mxu0 0.0
        %v4497 = vand.u32 %v4007, 4294901760
        %4498 = vmatmul.mubr.f32.gmra.mxu0 %v4497
        %v4499 = vpop.f32.mrf.mxu0
        %v4500 = vadd.f32 %v4403, %v4499
        %v4501 = vpop.f32.mrf.mxu0
        %4502 = vmatprep.mubr.f32.mxu0 0.0
        %v4503 = vand.u32 %v4010, 4294901760
        %4504 = vmatmul.mubr.f32.gmra.mxu0 %v4503
        %v4505 = vpop.f32.mrf.mxu0
        %v4506 = vadd.f32 %v4411, %v4505
        %v4507 = vpop.f32.mrf.mxu0
        %4508 = vdwg.mxu0
        %4509 = vmatprep.subr.mxu0 0.0
        %4510 = vmatpush1.msra.mxu0 0.0
        %4511 = vmatprep.subr.mxu0 0.0
        %4512 = vmatpush1.msra.mxu0 0.0
        %4513 = vmatprep.subr.mxu0 0.0
        %4514 = vmatpush1.msra.mxu0 0.0
        %4515 = vmatprep.subr.mxu0 0.0
        %4516 = vmatpush1.msra.mxu0 0.0
        %4517 = vmatprep.subr.mxu0 0.0
        %4518 = vmatpush1.msra.mxu0 0.0
        %4519 = vmatprep.subr.mxu0 0.0
        %4520 = vmatpush1.msra.mxu0 0.0
        %4521 = vmatprep.subr.mxu0 0.0
        %4522 = vmatpush1.msra.mxu0 0.0
        %4523 = vmatprep.subr.mxu0 0.0
        %4524 = vmatpush1.msra.mxu0 0.0
        %4525 = vmatprep.subr.mxu0 0.0
        %4526 = vmatpush1.msra.mxu0 0.0
        %4527 = vmatprep.subr.mxu0 0.0
        %4528 = vmatpush1.msra.mxu0 0.0
        %4529 = vmatprep.subr.mxu0 0.0
        %4530 = vmatpush1.msra.mxu0 0.0
        %4531 = vmatprep.subr.mxu0 0.0
        %4532 = vmatpush1.msra.mxu0 0.0
        %4533 = vmatprep.subr.mxu0 0.0
        %4534 = vmatpush1.msra.mxu0 0.0
        %4535 = vmatprep.subr.mxu0 0.0
        %4536 = vmatpush1.msra.mxu0 0.0
        %4537 = vmatprep.subr.mxu0 0.0
        %v4538 = vand.u32 %v3999, 4294901760
        %4539 = vmatpush1.msra.mxu0 %v4538
        %4540 = vmatprep.subr.mxu0 0.0
        %v4541 = vand.u32 %v3998, 4294901760
        %4542 = vmatpush1.msra.mxu0 %v4541
        %4543 = vmatprep.subr.mxu0 0.0
        %4544 = vmatpush2.msra.mxu0 0.0
        %4545 = vmatprep.subr.mxu0 0.0
        %4546 = vmatpush2.msra.mxu0 0.0
        %4547 = vmatprep.subr.mxu0 0.0
        %4548 = vmatpush2.msra.mxu0 0.0
        %4549 = vmatprep.subr.mxu0 0.0
        %4550 = vmatpush2.msra.mxu0 0.0
        %4551 = vmatprep.subr.mxu0 0.0
        %4552 = vmatpush2.msra.mxu0 0.0
        %4553 = vmatprep.subr.mxu0 0.0
        %4554 = vmatpush2.msra.mxu0 0.0
        %4555 = vmatprep.subr.mxu0 0.0
        %4556 = vmatpush2.msra.mxu0 0.0
        %4557 = vmatprep.subr.mxu0 0.0
        %4558 = vmatpush2.msra.mxu0 0.0
        %4559 = vmatprep.subr.mxu0 0.0
        %4560 = vmatpush2.msra.mxu0 0.0
        %4561 = vmatprep.subr.mxu0 0.0
        %4562 = vmatpush2.msra.mxu0 0.0
        %4563 = vmatprep.subr.mxu0 0.0
        %4564 = vmatpush2.msra.mxu0 0.0
        %4565 = vmatprep.subr.mxu0 0.0
        %4566 = vmatpush2.msra.mxu0 0.0
        %4567 = vmatprep.subr.mxu0 0.0
        %4568 = vmatpush2.msra.mxu0 0.0
        %4569 = vmatprep.subr.mxu0 0.0
        %4570 = vmatpush2.msra.mxu0 0.0
        %4571 = vmatprep.subr.mxu0 0.0
        %4572 = vmatpush2.msra.mxu0 0.0
        %4573 = vmatprep.subr.mxu0 0.0
        %4574 = vmatpush2.msra.mxu0 0.0
        %4575 = vmatprep.mubr.f32.mxu0 0.0
        %v4576 = vand.u32 %v4001, 4294901760
        %4577 = vmatmul.mubr.f32.gmra.mxu0 %v4576
        %v4578 = vpop.f32.mrf.mxu0
        %v4579 = vadd.f32 %v4488, %v4578
        %v4580 = vpop.f32.mrf.mxu0
        %4581 = vmatprep.mubr.f32.mxu0 0.0
        %v4582 = vand.u32 %v4004, 4294901760
        %4583 = vmatmul.mubr.f32.gmra.mxu0 %v4582
        %v4584 = vpop.f32.mrf.mxu0
        %v4585 = vadd.f32 %v4494, %v4584
        %v4586 = vpop.f32.mrf.mxu0
        %4587 = vmatprep.mubr.f32.mxu0 0.0
        %v4588 = vand.u32 %v4007, 4294901760
        %4589 = vmatmul.mubr.f32.gmra.mxu0 %v4588
        %v4590 = vpop.f32.mrf.mxu0
        %v4591 = vadd.f32 %v4500, %v4590
        %v4592 = vpop.f32.mrf.mxu0
        %4593 = vmatprep.mubr.f32.mxu0 0.0
        %v4594 = vand.u32 %v4010, 4294901760
        %4595 = vmatmul.mubr.f32.gmra.mxu0 %v4594
        %v4596 = vpop.f32.mrf.mxu0
        %v4597 = vadd.f32 %v4506, %v4596
        %v4598 = vpop.f32.mrf.mxu0
        %4599 = vdwg.mxu0
        %4601 = vset.pattern.permute.xlu0 32
        %4602 = vperm.xlu0 %4601, %v3989
        %v4603 = vpop.permute.xlu0 %4602
        %4606 = vset.pattern.permute.xlu0 32
        %4607 = vperm.xlu0 %4606, %v3990
        %v4608 = vpop.permute.xlu0 %4607
        %4611 = vset.pattern.permute.xlu0 32
        %4612 = vperm.xlu0 %4611, %v3991
        %v4613 = vpop.permute.xlu0 %4612
        %4616 = vset.pattern.permute.xlu0 32
        %4617 = vperm.xlu0 %4616, %v3992
        %v4618 = vpop.permute.xlu0 %4617
        %v4620 = vmul.f32 %v3969, %v4603
        %v4621 = vmul.f32 %v3970, %v4608
        %v4622 = vmul.f32 %v3971, %v4613
        %v4623 = vmul.f32 %v3972, %v4618
        %v4624 = vadd.f32 %v4620, %v4579
        %v4625 = vadd.f32 %v4621, %v4585
        %v4626 = vadd.f32 %v4622, %v4591
        %v4627 = vadd.f32 %v4623, %v4597
        %4628 = vst [vmem:[%s301] sm:$0xff] %v4624
        %4629 = vst [vmem:[%s301 + $0x8] sm:$0xff] %v4625
        %4630 = vst [vmem:[%s301 + $0x10] sm:$0xff] %v4626
        %4631 = vst [vmem:[%s301 + $0x18] sm:$0xff] %v4627
      $region52: #{spline_conv.1} parent=43 // pred_fallthru
        _
      %s4632 = smul.u32 4, %s21
      %p4633 = scmp.lt.s32.totalorder %s4632, 7
      %s4634 = scalar_select %p4633, %s4632, 7
      %s4635 = smul.addr %s4634, 8
      %s4636 = scalar_lea.vmem %s6, %s4635
      // Predicated region
      $region53: #{spline_conv.1} parent=43 // pred_check
        %p4637 = pneg %p188
      $region54: #{spline_conv.1} parent=43 // pred_check_branch
        %4639 = sbr.rel (%p4637) target = $region56
      $region55: #{spline_conv.1} parent=43 // pred_region
        %s4640 = smul.u32 4, %s21
      $region56: #{spline_conv.1} parent=43 // pred_fallthru
        _
    $region44: #{spline_conv.1} parent=5 // pred_fallthru
      _
    %p4641 = scmp.le.s32.totalorder 2, %s12
    // Predicated region
    $region57: #{spline_conv.1} parent=5 // pred_check
      %p4642 = pneg %p4641
    $region58: #{spline_conv.1} parent=5 // pred_check_branch
      %4644 = sbr.rel (%p4642) target = $region60
    $region59: #{spline_conv.1} parent=5 // pred_region
      %s4645 = ssub.s32 %s12, 2
      // Predicated region
      $region61: #{spline_conv.1} parent=59 // pred_check
        %p4646 = pneg %p194
      $region62: #{spline_conv.1} parent=59 // pred_check_branch
        %4648 = sbr.rel (%p4646) target = $region64
      $region63: #{spline_conv.1} parent=59 // pred_region
        %s4649 = smul.u32 4, %s23
        %p4650 = scmp.lt.s32.totalorder %s4649, 7
        %s4651 = scalar_select %p4650, %s4649, 7
        %s4652 = smul.addr %s4651, 8
        %s4653 = scalar_lea.vmem %s6, %s4652
      $region64: #{spline_conv.1} parent=59 // pred_fallthru
        _
    $region60: #{spline_conv.1} parent=5 // pred_fallthru
      _
  $region6: #{spline_conv.1} parent=0 // loop_footer
    %s16 = sadd.s32 1, %s12
  $region7: #{spline_conv.1} parent=0 // loop_footer_branch
    %11 = sbr.rel target = $region3
  $region8: #{spline_conv.1} parent=0 // loop_exit
    _

</llo_original>
